<compile_context>
chip_gen: v7x
topology: tpu7x:2x2x1
jax: 0.10.0
libtpu: 0.0.40
codegen_flags: <defaults>
</compile_context>

<pallas_src>
import jax
import jax.numpy as jnp
import numpy as np
from jax import lax
from jax.experimental import pallas as pl
from jax.experimental.pallas import tpu as pltpu

# Logical (PyTorch) dims.
X_DIM = 784
HIDDEN_DIM = 400
LATENT_DIM = 200

# Lane-padded dims (multiples of 128).
X_PAD = 896   # 784 -> 7*128
H_PAD = 512   # 400 -> 4*128
L_PAD = 256   # 200 -> 2*128

_MAX_BATCH_TILE = 256  # rows per grid step once the batch gets large


def _round_up(n, m):
    return ((n + m - 1) // m) * m


def _vae_kernel(x_ref, eps_ref,
                w1_ref, b1_ref, w2_ref, b2_ref, wms_ref, bms_ref,
                dw1_ref, db1_ref, dw2_ref, db2_ref, dw3_ref, db3_ref,
                xhat_ref, mean_ref, std_ref):
    f32 = jnp.float32
    leaky = lambda v: jnp.where(v > 0, v, 0.2 * v)  # nn.LeakyReLU(0.2)

    x = x_ref[...]

    # ---- Encoder: bf16 weights upcast in-register, f32 MXU accumulation ----
    h = leaky(jnp.dot(x, w1_ref[...].astype(f32), preferred_element_type=f32) + b1_ref[...])
    h = leaky(jnp.dot(h, w2_ref[...].astype(f32), preferred_element_type=f32) + b2_ref[...])

    # Fused mean|std head: one lane-dense [H_PAD, 2*L_PAD] matmul, then
    # 128-aligned slices.
    ms = jnp.dot(h, wms_ref[...].astype(f32), preferred_element_type=f32) + bms_ref[...]
    mean = ms[:, :L_PAD]
    std = ms[:, L_PAD:]

    # ---- Reparameterize: z = mean + std * epsilon ----
    z = mean + std * eps_ref[...]

    # ---- Decoder ----
    d = leaky(jnp.dot(z, dw1_ref[...].astype(f32), preferred_element_type=f32) + db1_ref[...])
    d = leaky(jnp.dot(d, dw2_ref[...].astype(f32), preferred_element_type=f32) + db2_ref[...])
    logits = jnp.dot(d, dw3_ref[...].astype(f32), preferred_element_type=f32) + db3_ref[...]

    xhat_ref[...] = jax.nn.sigmoid(logits)
    mean_ref[...] = mean
    std_ref[...] = std


@jax.jit
def vae_forward(x, eps, params):
    """x: [B, 784] f32, eps: [B, 200] f32, params: padded bf16/f32 tuple.

    Returns (x_hat [B,784], mean [B,200], std [B,200]) in f32.
    """
    B = x.shape[0]

    # Batch tiling: single block for small batches, 256-row tiles otherwise.
    b8 = _round_up(B, 8)
    if b8 <= _MAX_BATCH_TILE:
        tb, b_pad = b8, b8
    else:
        tb = _MAX_BATCH_TILE
        b_pad = _round_up(B, tb)

    # Zero-pad activations to lane-dense, sublane-aligned shapes.
    xp = jnp.zeros((b_pad, X_PAD), jnp.float32).at[:B, :X_DIM].set(x)
    ep = jnp.zeros((b_pad, L_PAD), jnp.float32).at[:B, :LATENT_DIM].set(eps)

    grid = (b_pad // tb,)
    row_spec = lambda cols: pl.BlockSpec((tb, cols), lambda i: (i, 0))
    # Constant block index -> weight blocks are reused (not re-fetched) across steps.
    full_spec = lambda a: pl.BlockSpec(a.shape, lambda i: (0, 0))

    in_specs = [row_spec(X_PAD), row_spec(L_PAD)] + [full_spec(p) for p in params]

    xhat_p, mean_p, std_p = pl.pallas_call(
        _vae_kernel,
        grid=grid,
        out_shape=(
            jax.ShapeDtypeStruct((b_pad, X_PAD), jnp.float32),
            jax.ShapeDtypeStruct((b_pad, L_PAD), jnp.float32),
            jax.ShapeDtypeStruct((b_pad, L_PAD), jnp.float32),
        ),
        in_specs=in_specs,
        out_specs=(row_spec(X_PAD), row_spec(L_PAD), row_spec(L_PAD)),
        compiler_params=pltpu.CompilerParams(
            dimension_semantics=("parallel",),
            vmem_limit_bytes=32 << 20,   # fits v5e/v6e/v7x; real footprint ~13 MiB
        ),
    )(xp, ep, *params)

    return (xhat_p[:B, :X_DIM], mean_p[:B, :LATENT_DIM], std_p[:B, :LATENT_DIM])


def _linear_params(key, fan_in, fan_out):
    """PyTorch-style uniform(-1/sqrt(fan_in), 1/sqrt(fan_in)); stored (in, out)."""
    kw, kb = jax.random.split(key)
    bound = 1.0 / np.sqrt(fan_in)
    w = jax.random.uniform(kw, (fan_in, fan_out), jnp.float32, -bound, bound)
    b = jax.random.uniform(kb, (fan_out,), jnp.float32, -bound, bound)
    return w, b


def _pad_wb(w, b, in_pad, out_pad):
    """Zero-pad weight/bias to lane-aligned shapes; weight cast to bf16."""
    fi, fo = w.shape
    wp = jnp.zeros((in_pad, out_pad), jnp.float32).at[:fi, :fo].set(w).astype(jnp.bfloat16)
    bp = jnp.zeros((1, out_pad), jnp.float32).at[0, :fo].set(b)
    return wp, bp


def init_params(key):
    keys = jax.random.split(key, 7)
    w1, b1 = _linear_params(keys[0], X_DIM, HIDDEN_DIM)       # enc FC_input
    w2, b2 = _linear_params(keys[1], HIDDEN_DIM, HIDDEN_DIM)  # enc FC_input2
    wm, bm = _linear_params(keys[2], HIDDEN_DIM, LATENT_DIM)  # enc FC_mean
    ws, bs = _linear_params(keys[3], HIDDEN_DIM, LATENT_DIM)  # enc FC_var ("std")
    dw1, db1 = _linear_params(keys[4], LATENT_DIM, HIDDEN_DIM)  # dec FC_hidden
    dw2, db2 = _linear_params(keys[5], HIDDEN_DIM, HIDDEN_DIM)  # dec FC_hidden2
    dw3, db3 = _linear_params(keys[6], HIDDEN_DIM, X_DIM)       # dec FC_output

    w1p, b1p = _pad_wb(w1, b1, X_PAD, H_PAD)
    w2p, b2p = _pad_wb(w2, b2, H_PAD, H_PAD)
    # Fused mean|std head: each padded to L_PAD cols then concatenated -> (H_PAD, 2*L_PAD).
    wmp, bmp = _pad_wb(wm, bm, H_PAD, L_PAD)
    wsp, bsp = _pad_wb(ws, bs, H_PAD, L_PAD)
    wmsp = jnp.concatenate([wmp, wsp], axis=1)
    bmsp = jnp.concatenate([bmp, bsp], axis=1)
    dw1p, db1p = _pad_wb(dw1, db1, L_PAD, H_PAD)
    dw2p, db2p = _pad_wb(dw2, db2, H_PAD, H_PAD)
    dw3p, db3p = _pad_wb(dw3, db3, H_PAD, X_PAD)
    return (w1p, b1p, w2p, b2p, wmsp, bmsp,
            dw1p, db1p, dw2p, db2p, dw3p, db3p)


def _reference(x, eps, params):
    """Pure-JAX reference on the same padded bf16 params (f32 math)."""
    (w1, b1, w2, b2, wms, bms, dw1, db1, dw2, db2, dw3, db3) = params
    f32 = jnp.float32
    hi = lax.Precision.HIGHEST
    leaky = lambda v: jnp.where(v > 0, v, 0.2 * v)
    dot = lambda a, b: jnp.dot(a, b.astype(f32), precision=hi)

    xp = jnp.zeros((x.shape[0], X_PAD), f32).at[:, :X_DIM].set(x)
    ep = jnp.zeros((eps.shape[0], L_PAD), f32).at[:, :LATENT_DIM].set(eps)

    h = leaky(dot(xp, w1) + b1)
    h = leaky(dot(h, w2) + b2)
    ms = dot(h, wms) + bms
    mean = ms[:, :L_PAD]
    std = ms[:, L_PAD:]
    z = mean + std * ep
    d = leaky(dot(z, dw1) + db1)
    d = leaky(dot(d, dw2) + db2)
    xhat = jax.nn.sigmoid(dot(d, dw3) + db3)
    return (xhat[:, :X_DIM], mean[:, :LATENT_DIM], std[:, :LATENT_DIM])


if __name__ == "__main__":
    key = jax.random.PRNGKey(0)
    k_x, k_eps, k_p = jax.random.split(key, 3)

    B = 8  # small batch
    x = jax.random.uniform(k_x, (B, X_DIM), jnp.float32)          # flattened 28x28 images
    eps = jax.random.normal(k_eps, (B, LATENT_DIM), jnp.float32)  # torch.randn_like(std)
    # TODO(synk): epsilon sampling (torch.randn_like) is done host-side and passed in.
    params = init_params(k_p)

    x_hat, mean, std = vae_forward(x, eps, params)
    jax.block_until_ready((x_hat, mean, std))

    # Sanity check against a pure-JAX reference using the same padded params.
    r_xhat, r_mean, r_std = _reference(x, eps, params)
    assert x_hat.shape == (B, X_DIM) and mean.shape == (B, LATENT_DIM) and std.shape == (B, LATENT_DIM)
    assert np.allclose(np.asarray(x_hat), np.asarray(r_xhat), atol=2e-4), "x_hat mismatch"
    assert np.allclose(np.asarray(mean), np.asarray(r_mean), atol=2e-4), "mean mismatch"
    assert np.allclose(np.asarray(std), np.asarray(r_std), atol=2e-4), "std mismatch"

    print("KERNEL_OK")
</pallas_src>

<mosaic_0001>
module attributes {stable_mosaic.version = 11 : i64} {
  func.func @_vae_kernel(%arg0: i32, %arg1: memref<8x896xf32, #tpu.memory_space<vmem>>, %arg2: memref<8x256xf32, #tpu.memory_space<vmem>>, %arg3: memref<896x512xbf16, #tpu.memory_space<vmem>>, %arg4: memref<1x512xf32, #tpu.memory_space<vmem>>, %arg5: memref<512x512xbf16, #tpu.memory_space<vmem>>, %arg6: memref<1x512xf32, #tpu.memory_space<vmem>>, %arg7: memref<512x512xbf16, #tpu.memory_space<vmem>>, %arg8: memref<1x512xf32, #tpu.memory_space<vmem>>, %arg9: memref<256x512xbf16, #tpu.memory_space<vmem>>, %arg10: memref<1x512xf32, #tpu.memory_space<vmem>>, %arg11: memref<512x512xbf16, #tpu.memory_space<vmem>>, %arg12: memref<1x512xf32, #tpu.memory_space<vmem>>, %arg13: memref<512x896xbf16, #tpu.memory_space<vmem>>, %arg14: memref<1x896xf32, #tpu.memory_space<vmem>>, %arg15: memref<8x896xf32, #tpu.memory_space<vmem>>, %arg16: memref<8x256xf32, #tpu.memory_space<vmem>>, %arg17: memref<8x256xf32, #tpu.memory_space<vmem>>) attributes {dimension_semantics = [#tpu.dimension_semantics<parallel>], iteration_bounds = array<i64: 1>, scalar_prefetch = 0 : i64, scratch_operands = 0 : i64, tpu.core_type = #tpu.core_type<tc>, window_params = [{transform_indices = @transform_0, window_bounds = array<i64: 8, 896>}, {transform_indices = @transform_1, window_bounds = array<i64: 8, 256>}, {pipeline_mode = #tpu.pipeline_mode<synchronous>, transform_indices = @transform_2, window_bounds = array<i64: 896, 512>}, {pipeline_mode = #tpu.pipeline_mode<synchronous>, transform_indices = @transform_3, window_bounds = array<i64: 1, 512>}, {pipeline_mode = #tpu.pipeline_mode<synchronous>, transform_indices = @transform_4, window_bounds = array<i64: 512, 512>}, {pipeline_mode = #tpu.pipeline_mode<synchronous>, transform_indices = @transform_5, window_bounds = array<i64: 1, 512>}, {pipeline_mode = #tpu.pipeline_mode<synchronous>, transform_indices = @transform_6, window_bounds = array<i64: 512, 512>}, {pipeline_mode = #tpu.pipeline_mode<synchronous>, transform_indices = @transform_7, window_bounds = array<i64: 1, 512>}, {pipeline_mode = #tpu.pipeline_mode<synchronous>, transform_indices = @transform_8, window_bounds = array<i64: 256, 512>}, {pipeline_mode = #tpu.pipeline_mode<synchronous>, transform_indices = @transform_9, window_bounds = array<i64: 1, 512>}, {pipeline_mode = #tpu.pipeline_mode<synchronous>, transform_indices = @transform_10, window_bounds = array<i64: 512, 512>}, {pipeline_mode = #tpu.pipeline_mode<synchronous>, transform_indices = @transform_11, window_bounds = array<i64: 1, 512>}, {pipeline_mode = #tpu.pipeline_mode<synchronous>, transform_indices = @transform_12, window_bounds = array<i64: 512, 896>}, {pipeline_mode = #tpu.pipeline_mode<synchronous>, transform_indices = @transform_13, window_bounds = array<i64: 1, 896>}, {transform_indices = @transform_14, window_bounds = array<i64: 8, 896>}, {transform_indices = @transform_15, window_bounds = array<i64: 8, 256>}, {transform_indices = @transform_16, window_bounds = array<i64: 8, 256>}]} {
    %c0 = arith.constant 0 : index
    %c0_0 = arith.constant 0 : index
    %0 = vector.load %arg1[%c0, %c0_0] : memref<8x896xf32, #tpu.memory_space<vmem>>, vector<8x896xf32>
    %c0_1 = arith.constant 0 : index
    %c0_2 = arith.constant 0 : index
    %1 = vector.load %arg3[%c0_1, %c0_2] : memref<896x512xbf16, #tpu.memory_space<vmem>>, vector<896x512xbf16>
    %2 = arith.extf %1 : vector<896x512xbf16> to vector<896x512xf32>
    %cst = arith.constant dense<0.000000e+00> : vector<8x512xf32>
    %3 = tpu.matmul %0, %2, %cst {dimension_numbers = #tpu.dot_dimension_numbers<[1], [0], [0], [1], [0, 0, 1, 1], [], []>} : vector<8x896xf32>, vector<896x512xf32>, vector<8x512xf32> -> vector<8x512xf32>
    %c0_3 = arith.constant 0 : index
    %c0_4 = arith.constant 0 : index
    %4 = vector.load %arg4[%c0_3, %c0_4] : memref<1x512xf32, #tpu.memory_space<vmem>>, vector<1x512xf32>
    %5 = vector.broadcast %4 : vector<1x512xf32> to vector<8x512xf32>
    %6 = arith.addf %3, %5 : vector<8x512xf32>
    %cst_5 = arith.constant 0.000000e+00 : f32
    %7 = vector.broadcast %cst_5 : f32 to vector<8x512xf32>
    %8 = arith.cmpf ogt, %6, %7 : vector<8x512xf32>
    %cst_6 = arith.constant 2.000000e-01 : f32
    %9 = vector.broadcast %cst_6 : f32 to vector<8x512xf32>
    %10 = arith.mulf %9, %6 : vector<8x512xf32>
    %11 = arith.select %8, %6, %10 : vector<8x512xi1>, vector<8x512xf32>
    %c0_7 = arith.constant 0 : index
    %c0_8 = arith.constant 0 : index
    %12 = vector.load %arg5[%c0_7, %c0_8] : memref<512x512xbf16, #tpu.memory_space<vmem>>, vector<512x512xbf16>
    %13 = arith.extf %12 : vector<512x512xbf16> to vector<512x512xf32>
    %cst_9 = arith.constant dense<0.000000e+00> : vector<8x512xf32>
    %14 = tpu.matmul %11, %13, %cst_9 {dimension_numbers = #tpu.dot_dimension_numbers<[1], [0], [0], [1], [0, 0, 1, 1], [], []>} : vector<8x512xf32>, vector<512x512xf32>, vector<8x512xf32> -> vector<8x512xf32>
    %c0_10 = arith.constant 0 : index
    %c0_11 = arith.constant 0 : index
    %15 = vector.load %arg6[%c0_10, %c0_11] : memref<1x512xf32, #tpu.memory_space<vmem>>, vector<1x512xf32>
    %16 = vector.broadcast %15 : vector<1x512xf32> to vector<8x512xf32>
    %17 = arith.addf %14, %16 : vector<8x512xf32>
    %cst_12 = arith.constant 0.000000e+00 : f32
    %18 = vector.broadcast %cst_12 : f32 to vector<8x512xf32>
    %19 = arith.cmpf ogt, %17, %18 : vector<8x512xf32>
    %cst_13 = arith.constant 2.000000e-01 : f32
    %20 = vector.broadcast %cst_13 : f32 to vector<8x512xf32>
    %21 = arith.mulf %20, %17 : vector<8x512xf32>
    %22 = arith.select %19, %17, %21 : vector<8x512xi1>, vector<8x512xf32>
    %c0_14 = arith.constant 0 : index
    %c0_15 = arith.constant 0 : index
    %23 = vector.load %arg7[%c0_14, %c0_15] : memref<512x512xbf16, #tpu.memory_space<vmem>>, vector<512x512xbf16>
    %24 = arith.extf %23 : vector<512x512xbf16> to vector<512x512xf32>
    %cst_16 = arith.constant dense<0.000000e+00> : vector<8x512xf32>
    %25 = tpu.matmul %22, %24, %cst_16 {dimension_numbers = #tpu.dot_dimension_numbers<[1], [0], [0], [1], [0, 0, 1, 1], [], []>} : vector<8x512xf32>, vector<512x512xf32>, vector<8x512xf32> -> vector<8x512xf32>
    %c0_17 = arith.constant 0 : index
    %c0_18 = arith.constant 0 : index
    %26 = vector.load %arg8[%c0_17, %c0_18] : memref<1x512xf32, #tpu.memory_space<vmem>>, vector<1x512xf32>
    %27 = vector.broadcast %26 : vector<1x512xf32> to vector<8x512xf32>
    %28 = arith.addf %25, %27 : vector<8x512xf32>
    %29 = vector.extract_strided_slice %28 {offsets = [0, 0], sizes = [8, 256], strides = [1, 1]} : vector<8x512xf32> to vector<8x256xf32>
    %30 = vector.extract_strided_slice %28 {offsets = [0, 256], sizes = [8, 256], strides = [1, 1]} : vector<8x512xf32> to vector<8x256xf32>
    %c0_19 = arith.constant 0 : index
    %c0_20 = arith.constant 0 : index
    %31 = vector.load %arg2[%c0_19, %c0_20] : memref<8x256xf32, #tpu.memory_space<vmem>>, vector<8x256xf32>
    %32 = arith.mulf %30, %31 : vector<8x256xf32>
    %33 = arith.addf %29, %32 : vector<8x256xf32>
    %c0_21 = arith.constant 0 : index
    %c0_22 = arith.constant 0 : index
    %34 = vector.load %arg9[%c0_21, %c0_22] : memref<256x512xbf16, #tpu.memory_space<vmem>>, vector<256x512xbf16>
    %35 = arith.extf %34 : vector<256x512xbf16> to vector<256x512xf32>
    %cst_23 = arith.constant dense<0.000000e+00> : vector<8x512xf32>
    %36 = tpu.matmul %33, %35, %cst_23 {dimension_numbers = #tpu.dot_dimension_numbers<[1], [0], [0], [1], [0, 0, 1, 1], [], []>} : vector<8x256xf32>, vector<256x512xf32>, vector<8x512xf32> -> vector<8x512xf32>
    %c0_24 = arith.constant 0 : index
    %c0_25 = arith.constant 0 : index
    %37 = vector.load %arg10[%c0_24, %c0_25] : memref<1x512xf32, #tpu.memory_space<vmem>>, vector<1x512xf32>
    %38 = vector.broadcast %37 : vector<1x512xf32> to vector<8x512xf32>
    %39 = arith.addf %36, %38 : vector<8x512xf32>
    %cst_26 = arith.constant 0.000000e+00 : f32
    %40 = vector.broadcast %cst_26 : f32 to vector<8x512xf32>
    %41 = arith.cmpf ogt, %39, %40 : vector<8x512xf32>
    %cst_27 = arith.constant 2.000000e-01 : f32
    %42 = vector.broadcast %cst_27 : f32 to vector<8x512xf32>
    %43 = arith.mulf %42, %39 : vector<8x512xf32>
    %44 = arith.select %41, %39, %43 : vector<8x512xi1>, vector<8x512xf32>
    %c0_28 = arith.constant 0 : index
    %c0_29 = arith.constant 0 : index
    %45 = vector.load %arg11[%c0_28, %c0_29] : memref<512x512xbf16, #tpu.memory_space<vmem>>, vector<512x512xbf16>
    %46 = arith.extf %45 : vector<512x512xbf16> to vector<512x512xf32>
    %cst_30 = arith.constant dense<0.000000e+00> : vector<8x512xf32>
    %47 = tpu.matmul %44, %46, %cst_30 {dimension_numbers = #tpu.dot_dimension_numbers<[1], [0], [0], [1], [0, 0, 1, 1], [], []>} : vector<8x512xf32>, vector<512x512xf32>, vector<8x512xf32> -> vector<8x512xf32>
    %c0_31 = arith.constant 0 : index
    %c0_32 = arith.constant 0 : index
    %48 = vector.load %arg12[%c0_31, %c0_32] : memref<1x512xf32, #tpu.memory_space<vmem>>, vector<1x512xf32>
    %49 = vector.broadcast %48 : vector<1x512xf32> to vector<8x512xf32>
    %50 = arith.addf %47, %49 : vector<8x512xf32>
    %cst_33 = arith.constant 0.000000e+00 : f32
    %51 = vector.broadcast %cst_33 : f32 to vector<8x512xf32>
    %52 = arith.cmpf ogt, %50, %51 : vector<8x512xf32>
    %cst_34 = arith.constant 2.000000e-01 : f32
    %53 = vector.broadcast %cst_34 : f32 to vector<8x512xf32>
    %54 = arith.mulf %53, %50 : vector<8x512xf32>
    %55 = arith.select %52, %50, %54 : vector<8x512xi1>, vector<8x512xf32>
    %c0_35 = arith.constant 0 : index
    %c0_36 = arith.constant 0 : index
    %56 = vector.load %arg13[%c0_35, %c0_36] : memref<512x896xbf16, #tpu.memory_space<vmem>>, vector<512x896xbf16>
    %57 = arith.extf %56 : vector<512x896xbf16> to vector<512x896xf32>
    %cst_37 = arith.constant dense<0.000000e+00> : vector<8x896xf32>
    %58 = tpu.matmul %55, %57, %cst_37 {dimension_numbers = #tpu.dot_dimension_numbers<[1], [0], [0], [1], [0, 0, 1, 1], [], []>} : vector<8x512xf32>, vector<512x896xf32>, vector<8x896xf32> -> vector<8x896xf32>
    %c0_38 = arith.constant 0 : index
    %c0_39 = arith.constant 0 : index
    %59 = vector.load %arg14[%c0_38, %c0_39] : memref<1x896xf32, #tpu.memory_space<vmem>>, vector<1x896xf32>
    %60 = vector.broadcast %59 : vector<1x896xf32> to vector<8x896xf32>
    %61 = arith.addf %58, %60 : vector<8x896xf32>
    %62 = arith.negf %61 : vector<8x896xf32>
    %63 = math.exp %62 : vector<8x896xf32>
    %cst_40 = arith.constant 1.000000e+00 : f32
    %64 = vector.broadcast %cst_40 : f32 to vector<8x896xf32>
    %65 = arith.addf %64, %63 : vector<8x896xf32>
    %66 = arith.divf %64, %65 : vector<8x896xf32>
    %c0_41 = arith.constant 0 : index
    %c0_42 = arith.constant 0 : index
    %67 = vector.load %arg15[%c0_41, %c0_42] : memref<8x896xf32, #tpu.memory_space<vmem>>, vector<8x896xf32>
    tpu.vector_store %arg15[%c0_41, %c0_42], %66 {strides = array<i32>} : memref<8x896xf32, #tpu.memory_space<vmem>>, vector<8x896xf32>,
    %c0_43 = arith.constant 0 : index
    %c0_44 = arith.constant 0 : index
    %68 = vector.load %arg16[%c0_43, %c0_44] : memref<8x256xf32, #tpu.memory_space<vmem>>, vector<8x256xf32>
    tpu.vector_store %arg16[%c0_43, %c0_44], %29 {strides = array<i32>} : memref<8x256xf32, #tpu.memory_space<vmem>>, vector<8x256xf32>,
    %c0_45 = arith.constant 0 : index
    %c0_46 = arith.constant 0 : index
    %69 = vector.load %arg17[%c0_45, %c0_46] : memref<8x256xf32, #tpu.memory_space<vmem>>, vector<8x256xf32>
    tpu.vector_store %arg17[%c0_45, %c0_46], %30 {strides = array<i32>} : memref<8x256xf32, #tpu.memory_space<vmem>>, vector<8x256xf32>,
    return
  }
  func.func @transform_0(%arg0: i32) -> (i32, i32) {
    %c0_i32 = arith.constant 0 : i32
    %c0_i32_0 = arith.constant 0 : i32
    return %arg0, %c0_i32 : i32, i32
  }
  func.func @transform_1(%arg0: i32) -> (i32, i32) {
    %c0_i32 = arith.constant 0 : i32
    %c0_i32_0 = arith.constant 0 : i32
    return %arg0, %c0_i32 : i32, i32
  }
  func.func @transform_2(%arg0: i32) -> (i32, i32) {
    %c0_i32 = arith.constant 0 : i32
    %c0_i32_0 = arith.constant 0 : i32
    %c0_i32_1 = arith.constant 0 : i32
    return %c0_i32, %c0_i32_0 : i32, i32
  }
  func.func @transform_3(%arg0: i32) -> (i32, i32) {
    %c0_i32 = arith.constant 0 : i32
    %c0_i32_0 = arith.constant 0 : i32
    %c0_i32_1 = arith.constant 0 : i32
    return %c0_i32, %c0_i32_0 : i32, i32
  }
  func.func @transform_4(%arg0: i32) -> (i32, i32) {
    %c0_i32 = arith.constant 0 : i32
    %c0_i32_0 = arith.constant 0 : i32
    %c0_i32_1 = arith.constant 0 : i32
    return %c0_i32, %c0_i32_0 : i32, i32
  }
  func.func @transform_5(%arg0: i32) -> (i32, i32) {
    %c0_i32 = arith.constant 0 : i32
    %c0_i32_0 = arith.constant 0 : i32
    %c0_i32_1 = arith.constant 0 : i32
    return %c0_i32, %c0_i32_0 : i32, i32
  }
  func.func @transform_6(%arg0: i32) -> (i32, i32) {
    %c0_i32 = arith.constant 0 : i32
    %c0_i32_0 = arith.constant 0 : i32
    %c0_i32_1 = arith.constant 0 : i32
    return %c0_i32, %c0_i32_0 : i32, i32
  }
  func.func @transform_7(%arg0: i32) -> (i32, i32) {
    %c0_i32 = arith.constant 0 : i32
    %c0_i32_0 = arith.constant 0 : i32
    %c0_i32_1 = arith.constant 0 : i32
    return %c0_i32, %c0_i32_0 : i32, i32
  }
  func.func @transform_8(%arg0: i32) -> (i32, i32) {
    %c0_i32 = arith.constant 0 : i32
    %c0_i32_0 = arith.constant 0 : i32
    %c0_i32_1 = arith.constant 0 : i32
    return %c0_i32, %c0_i32_0 : i32, i32
  }
  func.func @transform_9(%arg0: i32) -> (i32, i32) {
    %c0_i32 = arith.constant 0 : i32
    %c0_i32_0 = arith.constant 0 : i32
    %c0_i32_1 = arith.constant 0 : i32
    return %c0_i32, %c0_i32_0 : i32, i32
  }
  func.func @transform_10(%arg0: i32) -> (i32, i32) {
    %c0_i32 = arith.constant 0 : i32
    %c0_i32_0 = arith.constant 0 : i32
    %c0_i32_1 = arith.constant 0 : i32
    return %c0_i32, %c0_i32_0 : i32, i32
  }
  func.func @transform_11(%arg0: i32) -> (i32, i32) {
    %c0_i32 = arith.constant 0 : i32
    %c0_i32_0 = arith.constant 0 : i32
    %c0_i32_1 = arith.constant 0 : i32
    return %c0_i32, %c0_i32_0 : i32, i32
  }
  func.func @transform_12(%arg0: i32) -> (i32, i32) {
    %c0_i32 = arith.constant 0 : i32
    %c0_i32_0 = arith.constant 0 : i32
    %c0_i32_1 = arith.constant 0 : i32
    return %c0_i32, %c0_i32_0 : i32, i32
  }
  func.func @transform_13(%arg0: i32) -> (i32, i32) {
    %c0_i32 = arith.constant 0 : i32
    %c0_i32_0 = arith.constant 0 : i32
    %c0_i32_1 = arith.constant 0 : i32
    return %c0_i32, %c0_i32_0 : i32, i32
  }
  func.func @transform_14(%arg0: i32) -> (i32, i32) {
    %c0_i32 = arith.constant 0 : i32
    %c0_i32_0 = arith.constant 0 : i32
    return %arg0, %c0_i32 : i32, i32
  }
  func.func @transform_15(%arg0: i32) -> (i32, i32) {
    %c0_i32 = arith.constant 0 : i32
    %c0_i32_0 = arith.constant 0 : i32
    return %arg0, %c0_i32 : i32, i32
  }
  func.func @transform_16(%arg0: i32) -> (i32, i32) {
    %c0_i32 = arith.constant 0 : i32
    %c0_i32_0 = arith.constant 0 : i32
    return %arg0, %c0_i32 : i32, i32
  }
}

</mosaic_0001>

<llo_original>
// kernel: vae_forward.1
$region0: #{vae_forward.1}
  #allocation0 [shape = 'u32[]', space=smem, size = 0x4, offset = 0x4, fixed_abs, tag = 'smem constant byte address 0x4 - core index']
  #allocation1 [shape = 'u32[144,128]{1,0:T(1,128)}', space=vmem, size = 0x12000, scoped, tag = 'internal scratch']
  %s0 = inlined_call_operand.vmem [shape: f32[8,896], index: 0, kind: input, shape index: {}]
  %s1 = inlined_call_operand.vmem [shape: f32[8,256], index: 1, kind: input, shape index: {}]
  %s2 = inlined_call_operand.hbm [shape: bf16[896,512], index: 2, kind: input, shape index: {}]
  %s3 = inlined_call_operand.vmem [shape: f32[1,512], index: 3, kind: input, shape index: {}]
  %s4 = inlined_call_operand.hbm [shape: bf16[512,512], index: 4, kind: input, shape index: {}]
  %s5 = inlined_call_operand.vmem [shape: f32[1,512], index: 5, kind: input, shape index: {}]
  %s6 = inlined_call_operand.hbm [shape: bf16[512,512], index: 6, kind: input, shape index: {}]
  %s7 = inlined_call_operand.vmem [shape: f32[1,512], index: 7, kind: input, shape index: {}]
  %s8 = inlined_call_operand.hbm [shape: bf16[256,512], index: 8, kind: input, shape index: {}]
  %s9 = inlined_call_operand.vmem [shape: f32[1,512], index: 9, kind: input, shape index: {}]
  %s10 = inlined_call_operand.hbm [shape: bf16[512,512], index: 10, kind: input, shape index: {}]
  %s11 = inlined_call_operand.vmem [shape: f32[1,512], index: 11, kind: input, shape index: {}]
  %s12 = inlined_call_operand.hbm [shape: bf16[512,896], index: 12, kind: input, shape index: {}]
  %s13 = inlined_call_operand.vmem [shape: f32[1,896], index: 13, kind: input, shape index: {}]
  %s14 = inlined_call_operand.hbm [shape: f32[8,896], index: 14, kind: output, shape index: {0}]
  %s15 = inlined_call_operand.hbm [shape: f32[8,256], index: 15, kind: output, shape index: {1}]
  %s16 = inlined_call_operand.hbm [shape: f32[8,256], index: 16, kind: output, shape index: {2}]
  %17 = xla_tuple %s14, %s15, %s16
  %s18 = sld [smem:[#allocation0]]
  $region106: #{vae_forward.1} parent=0
    _
  %s20 = ssub.s32 1, %s18
  %s21 = scalar_select 0, %s20, %s18
  $region1: #{vae_forward.1} parent=0
    #allocation2 [shape = 'u8[917504]{0}', space=vmem, size = 0xe0000, scoped, tag = 'input window, operand 2, single buffered']
    #allocation3 [shape = 's32[1]{0}', space=sflag, size = 0x4, scoped, tag = 'scoped memory for vae_forward.1']
    #allocation4 [shape = 's32[1]{0}', space=sflag, size = 0x4, scoped, tag = 'scoped memory for vae_forward.1']
    #allocation5 [shape = 'u8[524288]{0}', space=vmem, size = 0x80000, scoped, tag = 'input window, operand 4, single buffered']
    #allocation6 [shape = 's32[1]{0}', space=sflag, size = 0x4, scoped, tag = 'scoped memory for vae_forward.1']
    #allocation7 [shape = 'u8[524288]{0}', space=vmem, size = 0x80000, scoped, tag = 'input window, operand 6, single buffered']
    #allocation8 [shape = 'u8[262144]{0}', space=vmem, size = 0x40000, scoped, tag = 'input window, operand 8, single buffered']
    #allocation9 [shape = 's32[1]{0}', space=sflag, size = 0x4, scoped, tag = 'scoped memory for vae_forward.1']
    #allocation10 [shape = 'u8[524288]{0}', space=vmem, size = 0x80000, scoped, tag = 'input window, operand 10, single buffered']
    #allocation11 [shape = 'u8[917504]{0}', space=vmem, size = 0xe0000, scoped, tag = 'input window, operand 12, single buffered']
    #allocation12 [shape = 's32[1]{0}', space=sflag, size = 0x4, scoped, tag = 'scoped memory for vae_forward.1']
    #allocation13 [shape = 'u8[28672]{0}', space=vmem, size = 0x7000, scoped, tag = 'output window, operand 0, single buffered']
    #allocation14 [shape = 'u8[8192]{0}', space=vmem, size = 0x2000, scoped, tag = 'output window, operand 1, single buffered']
    #allocation15 [shape = 's32[1]{0}', space=sflag, size = 0x4, scoped, tag = 'scoped memory for vae_forward.1']
    #allocation16 [shape = 'u8[8192]{0}', space=vmem, size = 0x2000, scoped, tag = 'output window, operand 2, single buffered']
    %22 = vsyncpa [#allocation3], 0
    %23 = vsyncpa [#allocation6], 0
    %24 = vsyncpa [#allocation9], 0
    %25 = vsyncpa [#allocation12], 0
    %26 = vsyncpa [#allocation4], 0
    %27 = vsyncpa [#allocation15], 0
    // Predicated region
    $region2: #{vae_forward.1} parent=1 // pred_check
      _
    $region3: #{vae_forward.1} parent=1 // pred_check_branch
      %29 = sbr.rel (0) target = $region5
    $region4: #{vae_forward.1} parent=1 // pred_region
      _
    $region5: #{vae_forward.1} parent=1 // pred_fallthru
      _
    // Predicated region
    $region6: #{vae_forward.1} parent=1 // pred_check
      _
    $region7: #{vae_forward.1} parent=1 // pred_check_branch
      %31 = sbr.rel (0) target = $region9
    $region8: #{vae_forward.1} parent=1 // pred_region
      _
    $region9: #{vae_forward.1} parent=1 // pred_fallthru
      _
    // Predicated region
    $region10: #{vae_forward.1} parent=1 // pred_check
      _
    $region11: #{vae_forward.1} parent=1 // pred_check_branch
      %33 = sbr.rel (0) target = $region13
    $region12: #{vae_forward.1} parent=1 // pred_region
      %s35 = ssub.s32 28672, 28672
      %36 = vsyncadd [#allocation3], %s35
      %s37 = sshll.u32 [#allocation2], 4
      %s38 = int_to_ptr.vmem [resolvable:$true] %s37
      %43 = dma.hbm_to_vmem [thread:$0]  %s2, 28672, %s38, [#allocation3], 256, 256, 16
    $region13: #{vae_forward.1} parent=1 // pred_fallthru
      _
    // Predicated region
    $region14: #{vae_forward.1} parent=1 // pred_check
      _
    $region15: #{vae_forward.1} parent=1 // pred_check_branch
      %45 = sbr.rel (0) target = $region17
    $region16: #{vae_forward.1} parent=1 // pred_region
      _
    $region17: #{vae_forward.1} parent=1 // pred_fallthru
      _
    // Predicated region
    $region18: #{vae_forward.1} parent=1 // pred_check
      _
    $region19: #{vae_forward.1} parent=1 // pred_check_branch
      %47 = sbr.rel (0) target = $region21
    $region20: #{vae_forward.1} parent=1 // pred_region
      %s49 = ssub.s32 16384, 16384
      %50 = vsyncadd [#allocation6], %s49
      %s51 = sshll.u32 [#allocation5], 4
      %s52 = int_to_ptr.vmem [resolvable:$true] %s51
      %57 = dma.hbm_to_vmem [thread:$0]  %s4, 16384, %s52, [#allocation6], 256, 256, 16
    $region21: #{vae_forward.1} parent=1 // pred_fallthru
      _
    // Predicated region
    $region22: #{vae_forward.1} parent=1 // pred_check
      _
    $region23: #{vae_forward.1} parent=1 // pred_check_branch
      %59 = sbr.rel (0) target = $region25
    $region24: #{vae_forward.1} parent=1 // pred_region
      _
    $region25: #{vae_forward.1} parent=1 // pred_fallthru
      _
    // Predicated region
    $region26: #{vae_forward.1} parent=1 // pred_check
      _
    $region27: #{vae_forward.1} parent=1 // pred_check_branch
      %61 = sbr.rel (0) target = $region29
    $region28: #{vae_forward.1} parent=1 // pred_region
      %s63 = ssub.s32 16384, 16384
      %64 = vsyncadd [#allocation6], %s63
      %s65 = sshll.u32 [#allocation7], 4
      %s66 = int_to_ptr.vmem [resolvable:$true] %s65
      %71 = dma.hbm_to_vmem [thread:$0]  %s6, 16384, %s66, [#allocation6], 256, 256, 16
    $region29: #{vae_forward.1} parent=1 // pred_fallthru
      _
    // Predicated region
    $region30: #{vae_forward.1} parent=1 // pred_check
      _
    $region31: #{vae_forward.1} parent=1 // pred_check_branch
      %73 = sbr.rel (0) target = $region33
    $region32: #{vae_forward.1} parent=1 // pred_region
      _
    $region33: #{vae_forward.1} parent=1 // pred_fallthru
      _
    // Predicated region
    $region34: #{vae_forward.1} parent=1 // pred_check
      _
    $region35: #{vae_forward.1} parent=1 // pred_check_branch
      %75 = sbr.rel (0) target = $region37
    $region36: #{vae_forward.1} parent=1 // pred_region
      %s77 = ssub.s32 8192, 8192
      %78 = vsyncadd [#allocation9], %s77
      %s79 = sshll.u32 [#allocation8], 4
      %s80 = int_to_ptr.vmem [resolvable:$true] %s79
      %85 = dma.hbm_to_vmem [thread:$0]  %s8, 8192, %s80, [#allocation9], 256, 256, 16
    $region37: #{vae_forward.1} parent=1 // pred_fallthru
      _
    // Predicated region
    $region38: #{vae_forward.1} parent=1 // pred_check
      _
    $region39: #{vae_forward.1} parent=1 // pred_check_branch
      %87 = sbr.rel (0) target = $region41
    $region40: #{vae_forward.1} parent=1 // pred_region
      _
    $region41: #{vae_forward.1} parent=1 // pred_fallthru
      _
    // Predicated region
    $region42: #{vae_forward.1} parent=1 // pred_check
      _
    $region43: #{vae_forward.1} parent=1 // pred_check_branch
      %89 = sbr.rel (0) target = $region45
    $region44: #{vae_forward.1} parent=1 // pred_region
      %s91 = ssub.s32 16384, 16384
      %92 = vsyncadd [#allocation9], %s91
      %s93 = sshll.u32 [#allocation10], 4
      %s94 = int_to_ptr.vmem [resolvable:$true] %s93
      %99 = dma.hbm_to_vmem [thread:$0]  %s10, 16384, %s94, [#allocation9], 256, 256, 16
    $region45: #{vae_forward.1} parent=1 // pred_fallthru
      _
    // Predicated region
    $region46: #{vae_forward.1} parent=1 // pred_check
      _
    $region47: #{vae_forward.1} parent=1 // pred_check_branch
      %101 = sbr.rel (0) target = $region49
    $region48: #{vae_forward.1} parent=1 // pred_region
      _
    $region49: #{vae_forward.1} parent=1 // pred_fallthru
      _
    // Predicated region
    $region50: #{vae_forward.1} parent=1 // pred_check
      _
    $region51: #{vae_forward.1} parent=1 // pred_check_branch
      %103 = sbr.rel (0) target = $region53
    $region52: #{vae_forward.1} parent=1 // pred_region
      %s105 = ssub.s32 28672, 28672
      %106 = vsyncadd [#allocation12], %s105
      %s107 = sshll.u32 [#allocation11], 4
      %s108 = int_to_ptr.vmem [resolvable:$true] %s107
      %113 = dma.hbm_to_vmem [thread:$0]  %s12, 28672, %s108, [#allocation12], 448, 448, 28
    $region53: #{vae_forward.1} parent=1 // pred_fallthru
      _
    // Predicated region
    $region54: #{vae_forward.1} parent=1 // pred_check
      _
    $region55: #{vae_forward.1} parent=1 // pred_check_branch
      %115 = sbr.rel (0) target = $region57
    $region56: #{vae_forward.1} parent=1 // pred_region
      _
    $region57: #{vae_forward.1} parent=1 // pred_fallthru
      _
    // Predicated region
    $region58: #{vae_forward.1} parent=1 // pred_check
      _
    $region59: #{vae_forward.1} parent=1 // pred_check_branch
      %117 = sbr.rel (0) target = $region61
    $region60: #{vae_forward.1} parent=1 // pred_region
      %118 = dma.done [#allocation3], 28672
    $region61: #{vae_forward.1} parent=1 // pred_fallthru
      _
    // Predicated region
    $region62: #{vae_forward.1} parent=1 // pred_check
      _
    $region63: #{vae_forward.1} parent=1 // pred_check_branch
      %120 = sbr.rel (0) target = $region65
    $region64: #{vae_forward.1} parent=1 // pred_region
      %121 = dma.done [#allocation6], 16384
    $region65: #{vae_forward.1} parent=1 // pred_fallthru
      _
    // Predicated region
    $region66: #{vae_forward.1} parent=1 // pred_check
      _
    $region67: #{vae_forward.1} parent=1 // pred_check_branch
      %123 = sbr.rel (0) target = $region69
    $region68: #{vae_forward.1} parent=1 // pred_region
      %124 = dma.done [#allocation6], 16384
    $region69: #{vae_forward.1} parent=1 // pred_fallthru
      _
    // Predicated region
    $region70: #{vae_forward.1} parent=1 // pred_check
      _
    $region71: #{vae_forward.1} parent=1 // pred_check_branch
      %126 = sbr.rel (0) target = $region73
    $region72: #{vae_forward.1} parent=1 // pred_region
      %127 = dma.done [#allocation9], 8192
    $region73: #{vae_forward.1} parent=1 // pred_fallthru
      _
    // Predicated region
    $region74: #{vae_forward.1} parent=1 // pred_check
      _
    $region75: #{vae_forward.1} parent=1 // pred_check_branch
      %129 = sbr.rel (0) target = $region77
    $region76: #{vae_forward.1} parent=1 // pred_region
      %130 = dma.done [#allocation9], 16384
    $region77: #{vae_forward.1} parent=1 // pred_fallthru
      _
    // Predicated region
    $region78: #{vae_forward.1} parent=1 // pred_check
      _
    $region79: #{vae_forward.1} parent=1 // pred_check_branch
      %132 = sbr.rel (0) target = $region81
    $region80: #{vae_forward.1} parent=1 // pred_region
      %133 = dma.done [#allocation12], 28672
    $region81: #{vae_forward.1} parent=1 // pred_fallthru
      _
    %v134 = vld [vmem:[%s0] sm:$0xff]
    %v135 = vld [vmem:[%s0 + $0x8] sm:$0xff]
    %v136 = vld [vmem:[%s0 + $0x10] sm:$0xff]
    %v137 = vld [vmem:[%s0 + $0x18] sm:$0xff]
    %v138 = vld [vmem:[%s0 + $0x20] sm:$0xff]
    %v139 = vld [vmem:[%s0 + $0x28] sm:$0xff]
    %v140 = vld [vmem:[%s0 + $0x30] sm:$0xff]
    %v141 = vld [vmem:[#allocation2] sm:$0xff]
    %v142 = vld [vmem:[#allocation2 + $0x8] sm:$0xff]
    %v143 = vld [vmem:[#allocation2 + $0x10] sm:$0xff]
    %v144 = vld [vmem:[#allocation2 + $0x18] sm:$0xff]
    %v145 = vld [vmem:[#allocation2 + $0x20] sm:$0xff]
    %v146 = vld [vmem:[#allocation2 + $0x28] sm:$0xff]
    %v147 = vld [vmem:[#allocation2 + $0x30] sm:$0xff]
    %v148 = vld [vmem:[#allocation2 + $0x38] sm:$0xff]
    %v149 = vld [vmem:[#allocation2 + $0x40] sm:$0xff]
    %v150 = vld [vmem:[#allocation2 + $0x48] sm:$0xff]
    %v151 = vld [vmem:[#allocation2 + $0x50] sm:$0xff]
    %v152 = vld [vmem:[#allocation2 + $0x58] sm:$0xff]
    %v153 = vld [vmem:[#allocation2 + $0x60] sm:$0xff]
    %v154 = vld [vmem:[#allocation2 + $0x68] sm:$0xff]
    %v155 = vld [vmem:[#allocation2 + $0x70] sm:$0xff]
    %v156 = vld [vmem:[#allocation2 + $0x78] sm:$0xff]
    %v157 = vld [vmem:[#allocation2 + $0x80] sm:$0xff]
    %v158 = vld [vmem:[#allocation2 + $0x88] sm:$0xff]
    %v159 = vld [vmem:[#allocation2 + $0x90] sm:$0xff]
    %v160 = vld [vmem:[#allocation2 + $0x98] sm:$0xff]
    %v161 = vld [vmem:[#allocation2 + $0xa0] sm:$0xff]
    %v162 = vld [vmem:[#allocation2 + $0xa8] sm:$0xff]
    %v163 = vld [vmem:[#allocation2 + $0xb0] sm:$0xff]
    %v164 = vld [vmem:[#allocation2 + $0xb8] sm:$0xff]
    %v165 = vld [vmem:[#allocation2 + $0xc0] sm:$0xff]
    %v166 = vld [vmem:[#allocation2 + $0xc8] sm:$0xff]
    %v167 = vld [vmem:[#allocation2 + $0xd0] sm:$0xff]
    %v168 = vld [vmem:[#allocation2 + $0xd8] sm:$0xff]
    %v169 = vld [vmem:[#allocation2 + $0xe0] sm:$0xff]
    %v170 = vld [vmem:[#allocation2 + $0xe8] sm:$0xff]
    %v171 = vld [vmem:[#allocation2 + $0xf0] sm:$0xff]
    %v172 = vld [vmem:[#allocation2 + $0xf8] sm:$0xff]
    %v173 = vld [vmem:[#allocation2 + $0x100] sm:$0xff]
    %v174 = vld [vmem:[#allocation2 + $0x108] sm:$0xff]
    %v175 = vld [vmem:[#allocation2 + $0x110] sm:$0xff]
    %v176 = vld [vmem:[#allocation2 + $0x118] sm:$0xff]
    %v177 = vld [vmem:[#allocation2 + $0x120] sm:$0xff]
    %v178 = vld [vmem:[#allocation2 + $0x128] sm:$0xff]
    %v179 = vld [vmem:[#allocation2 + $0x130] sm:$0xff]
    %v180 = vld [vmem:[#allocation2 + $0x138] sm:$0xff]
    %v181 = vld [vmem:[#allocation2 + $0x140] sm:$0xff]
    %v182 = vld [vmem:[#allocation2 + $0x148] sm:$0xff]
    %v183 = vld [vmem:[#allocation2 + $0x150] sm:$0xff]
    %v184 = vld [vmem:[#allocation2 + $0x158] sm:$0xff]
    %v185 = vld [vmem:[#allocation2 + $0x160] sm:$0xff]
    %v186 = vld [vmem:[#allocation2 + $0x168] sm:$0xff]
    %v187 = vld [vmem:[#allocation2 + $0x170] sm:$0xff]
    %v188 = vld [vmem:[#allocation2 + $0x178] sm:$0xff]
    %v189 = vld [vmem:[#allocation2 + $0x180] sm:$0xff]
    %v190 = vld [vmem:[#allocation2 + $0x188] sm:$0xff]
    %v191 = vld [vmem:[#allocation2 + $0x190] sm:$0xff]
    %v192 = vld [vmem:[#allocation2 + $0x198] sm:$0xff]
    %v193 = vld [vmem:[#allocation2 + $0x1a0] sm:$0xff]
    %v194 = vld [vmem:[#allocation2 + $0x1a8] sm:$0xff]
    %v195 = vld [vmem:[#allocation2 + $0x1b0] sm:$0xff]
    %v196 = vld [vmem:[#allocation2 + $0x1b8] sm:$0xff]
    %v197 = vld [vmem:[#allocation2 + $0x1c0] sm:$0xff]
    %v198 = vld [vmem:[#allocation2 + $0x1c8] sm:$0xff]
    %v199 = vld [vmem:[#allocation2 + $0x1d0] sm:$0xff]
    %v200 = vld [vmem:[#allocation2 + $0x1d8] sm:$0xff]
    %v201 = vld [vmem:[#allocation2 + $0x1e0] sm:$0xff]
    %v202 = vld [vmem:[#allocation2 + $0x1e8] sm:$0xff]
    %v203 = vld [vmem:[#allocation2 + $0x1f0] sm:$0xff]
    %v204 = vld [vmem:[#allocation2 + $0x1f8] sm:$0xff]
    %v205 = vld [vmem:[#allocation2 + $0x200] sm:$0xff]
    %v206 = vld [vmem:[#allocation2 + $0x208] sm:$0xff]
    %v207 = vld [vmem:[#allocation2 + $0x210] sm:$0xff]
    %v208 = vld [vmem:[#allocation2 + $0x218] sm:$0xff]
    %v209 = vld [vmem:[#allocation2 + $0x220] sm:$0xff]
    %v210 = vld [vmem:[#allocation2 + $0x228] sm:$0xff]
    %v211 = vld [vmem:[#allocation2 + $0x230] sm:$0xff]
    %v212 = vld [vmem:[#allocation2 + $0x238] sm:$0xff]
    %v213 = vld [vmem:[#allocation2 + $0x240] sm:$0xff]
    %v214 = vld [vmem:[#allocation2 + $0x248] sm:$0xff]
    %v215 = vld [vmem:[#allocation2 + $0x250] sm:$0xff]
    %v216 = vld [vmem:[#allocation2 + $0x258] sm:$0xff]
    %v217 = vld [vmem:[#allocation2 + $0x260] sm:$0xff]
    %v218 = vld [vmem:[#allocation2 + $0x268] sm:$0xff]
    %v219 = vld [vmem:[#allocation2 + $0x270] sm:$0xff]
    %v220 = vld [vmem:[#allocation2 + $0x278] sm:$0xff]
    %v221 = vld [vmem:[#allocation2 + $0x280] sm:$0xff]
    %v222 = vld [vmem:[#allocation2 + $0x288] sm:$0xff]
    %v223 = vld [vmem:[#allocation2 + $0x290] sm:$0xff]
    %v224 = vld [vmem:[#allocation2 + $0x298] sm:$0xff]
    %v225 = vld [vmem:[#allocation2 + $0x2a0] sm:$0xff]
    %v226 = vld [vmem:[#allocation2 + $0x2a8] sm:$0xff]
    %v227 = vld [vmem:[#allocation2 + $0x2b0] sm:$0xff]
    %v228 = vld [vmem:[#allocation2 + $0x2b8] sm:$0xff]
    %v229 = vld [vmem:[#allocation2 + $0x2c0] sm:$0xff]
    %v230 = vld [vmem:[#allocation2 + $0x2c8] sm:$0xff]
    %v231 = vld [vmem:[#allocation2 + $0x2d0] sm:$0xff]
    %v232 = vld [vmem:[#allocation2 + $0x2d8] sm:$0xff]
    %v233 = vld [vmem:[#allocation2 + $0x2e0] sm:$0xff]
    %v234 = vld [vmem:[#allocation2 + $0x2e8] sm:$0xff]
    %v235 = vld [vmem:[#allocation2 + $0x2f0] sm:$0xff]
    %v236 = vld [vmem:[#allocation2 + $0x2f8] sm:$0xff]
    %v237 = vld [vmem:[#allocation2 + $0x300] sm:$0xff]
    %v238 = vld [vmem:[#allocation2 + $0x308] sm:$0xff]
    %v239 = vld [vmem:[#allocation2 + $0x310] sm:$0xff]
    %v240 = vld [vmem:[#allocation2 + $0x318] sm:$0xff]
    %v241 = vld [vmem:[#allocation2 + $0x320] sm:$0xff]
    %v242 = vld [vmem:[#allocation2 + $0x328] sm:$0xff]
    %v243 = vld [vmem:[#allocation2 + $0x330] sm:$0xff]
    %v244 = vld [vmem:[#allocation2 + $0x338] sm:$0xff]
    %v245 = vld [vmem:[#allocation2 + $0x340] sm:$0xff]
    %v246 = vld [vmem:[#allocation2 + $0x348] sm:$0xff]
    %v247 = vld [vmem:[#allocation2 + $0x350] sm:$0xff]
    %v248 = vld [vmem:[#allocation2 + $0x358] sm:$0xff]
    %v249 = vld [vmem:[#allocation2 + $0x360] sm:$0xff]
    %v250 = vld [vmem:[#allocation2 + $0x368] sm:$0xff]
    %v251 = vld [vmem:[#allocation2 + $0x370] sm:$0xff]
    %v252 = vld [vmem:[#allocation2 + $0x378] sm:$0xff]
    %v253 = vld [vmem:[#allocation2 + $0x380] sm:$0xff]
    %v254 = vld [vmem:[#allocation2 + $0x388] sm:$0xff]
    %v255 = vld [vmem:[#allocation2 + $0x390] sm:$0xff]
    %v256 = vld [vmem:[#allocation2 + $0x398] sm:$0xff]
    %v257 = vld [vmem:[#allocation2 + $0x3a0] sm:$0xff]
    %v258 = vld [vmem:[#allocation2 + $0x3a8] sm:$0xff]
    %v259 = vld [vmem:[#allocation2 + $0x3b0] sm:$0xff]
    %v260 = vld [vmem:[#allocation2 + $0x3b8] sm:$0xff]
    %v261 = vld [vmem:[#allocation2 + $0x3c0] sm:$0xff]
    %v262 = vld [vmem:[#allocation2 + $0x3c8] sm:$0xff]
    %v263 = vld [vmem:[#allocation2 + $0x3d0] sm:$0xff]
    %v264 = vld [vmem:[#allocation2 + $0x3d8] sm:$0xff]
    %v265 = vld [vmem:[#allocation2 + $0x3e0] sm:$0xff]
    %v266 = vld [vmem:[#allocation2 + $0x3e8] sm:$0xff]
    %v267 = vld [vmem:[#allocation2 + $0x3f0] sm:$0xff]
    %v268 = vld [vmem:[#allocation2 + $0x3f8] sm:$0xff]
    %v269 = vld [vmem:[#allocation2 + $0x400] sm:$0xff]
    %v270 = vld [vmem:[#allocation2 + $0x408] sm:$0xff]
    %v271 = vld [vmem:[#allocation2 + $0x410] sm:$0xff]
    %v272 = vld [vmem:[#allocation2 + $0x418] sm:$0xff]
    %v273 = vld [vmem:[#allocation2 + $0x420] sm:$0xff]
    %v274 = vld [vmem:[#allocation2 + $0x428] sm:$0xff]
    %v275 = vld [vmem:[#allocation2 + $0x430] sm:$0xff]
    %v276 = vld [vmem:[#allocation2 + $0x438] sm:$0xff]
    %v277 = vld [vmem:[#allocation2 + $0x440] sm:$0xff]
    %v278 = vld [vmem:[#allocation2 + $0x448] sm:$0xff]
    %v279 = vld [vmem:[#allocation2 + $0x450] sm:$0xff]
    %v280 = vld [vmem:[#allocation2 + $0x458] sm:$0xff]
    %v281 = vld [vmem:[#allocation2 + $0x460] sm:$0xff]
    %v282 = vld [vmem:[#allocation2 + $0x468] sm:$0xff]
    %v283 = vld [vmem:[#allocation2 + $0x470] sm:$0xff]
    %v284 = vld [vmem:[#allocation2 + $0x478] sm:$0xff]
    %v285 = vld [vmem:[#allocation2 + $0x480] sm:$0xff]
    %v286 = vld [vmem:[#allocation2 + $0x488] sm:$0xff]
    %v287 = vld [vmem:[#allocation2 + $0x490] sm:$0xff]
    %v288 = vld [vmem:[#allocation2 + $0x498] sm:$0xff]
    %v289 = vld [vmem:[#allocation2 + $0x4a0] sm:$0xff]
    %v290 = vld [vmem:[#allocation2 + $0x4a8] sm:$0xff]
    %v291 = vld [vmem:[#allocation2 + $0x4b0] sm:$0xff]
    %v292 = vld [vmem:[#allocation2 + $0x4b8] sm:$0xff]
    %v293 = vld [vmem:[#allocation2 + $0x4c0] sm:$0xff]
    %v294 = vld [vmem:[#allocation2 + $0x4c8] sm:$0xff]
    %v295 = vld [vmem:[#allocation2 + $0x4d0] sm:$0xff]
    %v296 = vld [vmem:[#allocation2 + $0x4d8] sm:$0xff]
    %v297 = vld [vmem:[#allocation2 + $0x4e0] sm:$0xff]
    %v298 = vld [vmem:[#allocation2 + $0x4e8] sm:$0xff]
    %v299 = vld [vmem:[#allocation2 + $0x4f0] sm:$0xff]
    %v300 = vld [vmem:[#allocation2 + $0x4f8] sm:$0xff]
    %v301 = vld [vmem:[#allocation2 + $0x500] sm:$0xff]
    %v302 = vld [vmem:[#allocation2 + $0x508] sm:$0xff]
    %v303 = vld [vmem:[#allocation2 + $0x510] sm:$0xff]
    %v304 = vld [vmem:[#allocation2 + $0x518] sm:$0xff]
    %v305 = vld [vmem:[#allocation2 + $0x520] sm:$0xff]
    %v306 = vld [vmem:[#allocation2 + $0x528] sm:$0xff]
    %v307 = vld [vmem:[#allocation2 + $0x530] sm:$0xff]
    %v308 = vld [vmem:[#allocation2 + $0x538] sm:$0xff]
    %v309 = vld [vmem:[#allocation2 + $0x540] sm:$0xff]
    %v310 = vld [vmem:[#allocation2 + $0x548] sm:$0xff]
    %v311 = vld [vmem:[#allocation2 + $0x550] sm:$0xff]
    %v312 = vld [vmem:[#allocation2 + $0x558] sm:$0xff]
    %v313 = vld [vmem:[#allocation2 + $0x560] sm:$0xff]
    %v314 = vld [vmem:[#allocation2 + $0x568] sm:$0xff]
    %v315 = vld [vmem:[#allocation2 + $0x570] sm:$0xff]
    %v316 = vld [vmem:[#allocation2 + $0x578] sm:$0xff]
    %v317 = vld [vmem:[#allocation2 + $0x580] sm:$0xff]
    %v318 = vld [vmem:[#allocation2 + $0x588] sm:$0xff]
    %v319 = vld [vmem:[#allocation2 + $0x590] sm:$0xff]
    %v320 = vld [vmem:[#allocation2 + $0x598] sm:$0xff]
    %v321 = vld [vmem:[#allocation2 + $0x5a0] sm:$0xff]
    %v322 = vld [vmem:[#allocation2 + $0x5a8] sm:$0xff]
    %v323 = vld [vmem:[#allocation2 + $0x5b0] sm:$0xff]
    %v324 = vld [vmem:[#allocation2 + $0x5b8] sm:$0xff]
    %v325 = vld [vmem:[#allocation2 + $0x5c0] sm:$0xff]
    %v326 = vld [vmem:[#allocation2 + $0x5c8] sm:$0xff]
    %v327 = vld [vmem:[#allocation2 + $0x5d0] sm:$0xff]
    %v328 = vld [vmem:[#allocation2 + $0x5d8] sm:$0xff]
    %v329 = vld [vmem:[#allocation2 + $0x5e0] sm:$0xff]
    %v330 = vld [vmem:[#allocation2 + $0x5e8] sm:$0xff]
    %v331 = vld [vmem:[#allocation2 + $0x5f0] sm:$0xff]
    %v332 = vld [vmem:[#allocation2 + $0x5f8] sm:$0xff]
    %v333 = vld [vmem:[#allocation2 + $0x600] sm:$0xff]
    %v334 = vld [vmem:[#allocation2 + $0x608] sm:$0xff]
    %v335 = vld [vmem:[#allocation2 + $0x610] sm:$0xff]
    %v336 = vld [vmem:[#allocation2 + $0x618] sm:$0xff]
    %v337 = vld [vmem:[#allocation2 + $0x620] sm:$0xff]
    %v338 = vld [vmem:[#allocation2 + $0x628] sm:$0xff]
    %v339 = vld [vmem:[#allocation2 + $0x630] sm:$0xff]
    %v340 = vld [vmem:[#allocation2 + $0x638] sm:$0xff]
    %v341 = vld [vmem:[#allocation2 + $0x640] sm:$0xff]
    %v342 = vld [vmem:[#allocation2 + $0x648] sm:$0xff]
    %v343 = vld [vmem:[#allocation2 + $0x650] sm:$0xff]
    %v344 = vld [vmem:[#allocation2 + $0x658] sm:$0xff]
    %v345 = vld [vmem:[#allocation2 + $0x660] sm:$0xff]
    %v346 = vld [vmem:[#allocation2 + $0x668] sm:$0xff]
    %v347 = vld [vmem:[#allocation2 + $0x670] sm:$0xff]
    %v348 = vld [vmem:[#allocation2 + $0x678] sm:$0xff]
    %v349 = vld [vmem:[#allocation2 + $0x680] sm:$0xff]
    %v350 = vld [vmem:[#allocation2 + $0x688] sm:$0xff]
    %v351 = vld [vmem:[#allocation2 + $0x690] sm:$0xff]
    %v352 = vld [vmem:[#allocation2 + $0x698] sm:$0xff]
    %v353 = vld [vmem:[#allocation2 + $0x6a0] sm:$0xff]
    %v354 = vld [vmem:[#allocation2 + $0x6a8] sm:$0xff]
    %v355 = vld [vmem:[#allocation2 + $0x6b0] sm:$0xff]
    %v356 = vld [vmem:[#allocation2 + $0x6b8] sm:$0xff]
    %v357 = vld [vmem:[#allocation2 + $0x6c0] sm:$0xff]
    %v358 = vld [vmem:[#allocation2 + $0x6c8] sm:$0xff]
    %v359 = vld [vmem:[#allocation2 + $0x6d0] sm:$0xff]
    %v360 = vld [vmem:[#allocation2 + $0x6d8] sm:$0xff]
    %v361 = vld [vmem:[#allocation2 + $0x6e0] sm:$0xff]
    %v362 = vld [vmem:[#allocation2 + $0x6e8] sm:$0xff]
    %v363 = vld [vmem:[#allocation2 + $0x6f0] sm:$0xff]
    %v364 = vld [vmem:[#allocation2 + $0x6f8] sm:$0xff]
    %v365 = vunpack.c.l.bf16 %v141
    %v366 = vunpack.c.h.bf16 %v141
    %v367 = vunpack.c.l.bf16 %v142
    %v368 = vunpack.c.h.bf16 %v142
    %v369 = vunpack.c.l.bf16 %v143
    %v370 = vunpack.c.h.bf16 %v143
    %v371 = vunpack.c.l.bf16 %v144
    %v372 = vunpack.c.h.bf16 %v144
    %v373 = vunpack.c.l.bf16 %v145
    %v374 = vunpack.c.h.bf16 %v145
    %v375 = vunpack.c.l.bf16 %v146
    %v376 = vunpack.c.h.bf16 %v146
    %v377 = vunpack.c.l.bf16 %v147
    %v378 = vunpack.c.h.bf16 %v147
    %v379 = vunpack.c.l.bf16 %v148
    %v380 = vunpack.c.h.bf16 %v148
    %v381 = vunpack.c.l.bf16 %v149
    %v382 = vunpack.c.h.bf16 %v149
    %v383 = vunpack.c.l.bf16 %v150
    %v384 = vunpack.c.h.bf16 %v150
    %v385 = vunpack.c.l.bf16 %v151
    %v386 = vunpack.c.h.bf16 %v151
    %v387 = vunpack.c.l.bf16 %v152
    %v388 = vunpack.c.h.bf16 %v152
    %v389 = vunpack.c.l.bf16 %v153
    %v390 = vunpack.c.h.bf16 %v153
    %v391 = vunpack.c.l.bf16 %v154
    %v392 = vunpack.c.h.bf16 %v154
    %v393 = vunpack.c.l.bf16 %v155
    %v394 = vunpack.c.h.bf16 %v155
    %v395 = vunpack.c.l.bf16 %v156
    %v396 = vunpack.c.h.bf16 %v156
    %v397 = vunpack.c.l.bf16 %v157
    %v398 = vunpack.c.h.bf16 %v157
    %v399 = vunpack.c.l.bf16 %v158
    %v400 = vunpack.c.h.bf16 %v158
    %v401 = vunpack.c.l.bf16 %v159
    %v402 = vunpack.c.h.bf16 %v159
    %v403 = vunpack.c.l.bf16 %v160
    %v404 = vunpack.c.h.bf16 %v160
    %v405 = vunpack.c.l.bf16 %v161
    %v406 = vunpack.c.h.bf16 %v161
    %v407 = vunpack.c.l.bf16 %v162
    %v408 = vunpack.c.h.bf16 %v162
    %v409 = vunpack.c.l.bf16 %v163
    %v410 = vunpack.c.h.bf16 %v163
    %v411 = vunpack.c.l.bf16 %v164
    %v412 = vunpack.c.h.bf16 %v164
    %v413 = vunpack.c.l.bf16 %v165
    %v414 = vunpack.c.h.bf16 %v165
    %v415 = vunpack.c.l.bf16 %v166
    %v416 = vunpack.c.h.bf16 %v166
    %v417 = vunpack.c.l.bf16 %v167
    %v418 = vunpack.c.h.bf16 %v167
    %v419 = vunpack.c.l.bf16 %v168
    %v420 = vunpack.c.h.bf16 %v168
    %v421 = vunpack.c.l.bf16 %v169
    %v422 = vunpack.c.h.bf16 %v169
    %v423 = vunpack.c.l.bf16 %v170
    %v424 = vunpack.c.h.bf16 %v170
    %v425 = vunpack.c.l.bf16 %v171
    %v426 = vunpack.c.h.bf16 %v171
    %v427 = vunpack.c.l.bf16 %v172
    %v428 = vunpack.c.h.bf16 %v172
    %v429 = vunpack.c.l.bf16 %v173
    %v430 = vunpack.c.h.bf16 %v173
    %v431 = vunpack.c.l.bf16 %v174
    %v432 = vunpack.c.h.bf16 %v174
    %v433 = vunpack.c.l.bf16 %v175
    %v434 = vunpack.c.h.bf16 %v175
    %v435 = vunpack.c.l.bf16 %v176
    %v436 = vunpack.c.h.bf16 %v176
    %v437 = vunpack.c.l.bf16 %v177
    %v438 = vunpack.c.h.bf16 %v177
    %v439 = vunpack.c.l.bf16 %v178
    %v440 = vunpack.c.h.bf16 %v178
    %v441 = vunpack.c.l.bf16 %v179
    %v442 = vunpack.c.h.bf16 %v179
    %v443 = vunpack.c.l.bf16 %v180
    %v444 = vunpack.c.h.bf16 %v180
    %v445 = vunpack.c.l.bf16 %v181
    %v446 = vunpack.c.h.bf16 %v181
    %v447 = vunpack.c.l.bf16 %v182
    %v448 = vunpack.c.h.bf16 %v182
    %v449 = vunpack.c.l.bf16 %v183
    %v450 = vunpack.c.h.bf16 %v183
    %v451 = vunpack.c.l.bf16 %v184
    %v452 = vunpack.c.h.bf16 %v184
    %v453 = vunpack.c.l.bf16 %v185
    %v454 = vunpack.c.h.bf16 %v185
    %v455 = vunpack.c.l.bf16 %v186
    %v456 = vunpack.c.h.bf16 %v186
    %v457 = vunpack.c.l.bf16 %v187
    %v458 = vunpack.c.h.bf16 %v187
    %v459 = vunpack.c.l.bf16 %v188
    %v460 = vunpack.c.h.bf16 %v188
    %v461 = vunpack.c.l.bf16 %v189
    %v462 = vunpack.c.h.bf16 %v189
    %v463 = vunpack.c.l.bf16 %v190
    %v464 = vunpack.c.h.bf16 %v190
    %v465 = vunpack.c.l.bf16 %v191
    %v466 = vunpack.c.h.bf16 %v191
    %v467 = vunpack.c.l.bf16 %v192
    %v468 = vunpack.c.h.bf16 %v192
    %v469 = vunpack.c.l.bf16 %v193
    %v470 = vunpack.c.h.bf16 %v193
    %v471 = vunpack.c.l.bf16 %v194
    %v472 = vunpack.c.h.bf16 %v194
    %v473 = vunpack.c.l.bf16 %v195
    %v474 = vunpack.c.h.bf16 %v195
    %v475 = vunpack.c.l.bf16 %v196
    %v476 = vunpack.c.h.bf16 %v196
    %v477 = vunpack.c.l.bf16 %v197
    %v478 = vunpack.c.h.bf16 %v197
    %v479 = vunpack.c.l.bf16 %v198
    %v480 = vunpack.c.h.bf16 %v198
    %v481 = vunpack.c.l.bf16 %v199
    %v482 = vunpack.c.h.bf16 %v199
    %v483 = vunpack.c.l.bf16 %v200
    %v484 = vunpack.c.h.bf16 %v200
    %v485 = vunpack.c.l.bf16 %v201
    %v486 = vunpack.c.h.bf16 %v201
    %v487 = vunpack.c.l.bf16 %v202
    %v488 = vunpack.c.h.bf16 %v202
    %v489 = vunpack.c.l.bf16 %v203
    %v490 = vunpack.c.h.bf16 %v203
    %v491 = vunpack.c.l.bf16 %v204
    %v492 = vunpack.c.h.bf16 %v204
    %v493 = vunpack.c.l.bf16 %v205
    %v494 = vunpack.c.h.bf16 %v205
    %v495 = vunpack.c.l.bf16 %v206
    %v496 = vunpack.c.h.bf16 %v206
    %v497 = vunpack.c.l.bf16 %v207
    %v498 = vunpack.c.h.bf16 %v207
    %v499 = vunpack.c.l.bf16 %v208
    %v500 = vunpack.c.h.bf16 %v208
    %v501 = vunpack.c.l.bf16 %v209
    %v502 = vunpack.c.h.bf16 %v209
    %v503 = vunpack.c.l.bf16 %v210
    %v504 = vunpack.c.h.bf16 %v210
    %v505 = vunpack.c.l.bf16 %v211
    %v506 = vunpack.c.h.bf16 %v211
    %v507 = vunpack.c.l.bf16 %v212
    %v508 = vunpack.c.h.bf16 %v212
    %v509 = vunpack.c.l.bf16 %v213
    %v510 = vunpack.c.h.bf16 %v213
    %v511 = vunpack.c.l.bf16 %v214
    %v512 = vunpack.c.h.bf16 %v214
    %v513 = vunpack.c.l.bf16 %v215
    %v514 = vunpack.c.h.bf16 %v215
    %v515 = vunpack.c.l.bf16 %v216
    %v516 = vunpack.c.h.bf16 %v216
    %v517 = vunpack.c.l.bf16 %v217
    %v518 = vunpack.c.h.bf16 %v217
    %v519 = vunpack.c.l.bf16 %v218
    %v520 = vunpack.c.h.bf16 %v218
    %v521 = vunpack.c.l.bf16 %v219
    %v522 = vunpack.c.h.bf16 %v219
    %v523 = vunpack.c.l.bf16 %v220
    %v524 = vunpack.c.h.bf16 %v220
    %v525 = vunpack.c.l.bf16 %v221
    %v526 = vunpack.c.h.bf16 %v221
    %v527 = vunpack.c.l.bf16 %v222
    %v528 = vunpack.c.h.bf16 %v222
    %v529 = vunpack.c.l.bf16 %v223
    %v530 = vunpack.c.h.bf16 %v223
    %v531 = vunpack.c.l.bf16 %v224
    %v532 = vunpack.c.h.bf16 %v224
    %v533 = vunpack.c.l.bf16 %v225
    %v534 = vunpack.c.h.bf16 %v225
    %v535 = vunpack.c.l.bf16 %v226
    %v536 = vunpack.c.h.bf16 %v226
    %v537 = vunpack.c.l.bf16 %v227
    %v538 = vunpack.c.h.bf16 %v227
    %v539 = vunpack.c.l.bf16 %v228
    %v540 = vunpack.c.h.bf16 %v228
    %v541 = vunpack.c.l.bf16 %v229
    %v542 = vunpack.c.h.bf16 %v229
    %v543 = vunpack.c.l.bf16 %v230
    %v544 = vunpack.c.h.bf16 %v230
    %v545 = vunpack.c.l.bf16 %v231
    %v546 = vunpack.c.h.bf16 %v231
    %v547 = vunpack.c.l.bf16 %v232
    %v548 = vunpack.c.h.bf16 %v232
    %v549 = vunpack.c.l.bf16 %v233
    %v550 = vunpack.c.h.bf16 %v233
    %v551 = vunpack.c.l.bf16 %v234
    %v552 = vunpack.c.h.bf16 %v234
    %v553 = vunpack.c.l.bf16 %v235
    %v554 = vunpack.c.h.bf16 %v235
    %v555 = vunpack.c.l.bf16 %v236
    %v556 = vunpack.c.h.bf16 %v236
    %v557 = vunpack.c.l.bf16 %v237
    %v558 = vunpack.c.h.bf16 %v237
    %v559 = vunpack.c.l.bf16 %v238
    %v560 = vunpack.c.h.bf16 %v238
    %v561 = vunpack.c.l.bf16 %v239
    %v562 = vunpack.c.h.bf16 %v239
    %v563 = vunpack.c.l.bf16 %v240
    %v564 = vunpack.c.h.bf16 %v240
    %v565 = vunpack.c.l.bf16 %v241
    %v566 = vunpack.c.h.bf16 %v241
    %v567 = vunpack.c.l.bf16 %v242
    %v568 = vunpack.c.h.bf16 %v242
    %v569 = vunpack.c.l.bf16 %v243
    %v570 = vunpack.c.h.bf16 %v243
    %v571 = vunpack.c.l.bf16 %v244
    %v572 = vunpack.c.h.bf16 %v244
    %v573 = vunpack.c.l.bf16 %v245
    %v574 = vunpack.c.h.bf16 %v245
    %v575 = vunpack.c.l.bf16 %v246
    %v576 = vunpack.c.h.bf16 %v246
    %v577 = vunpack.c.l.bf16 %v247
    %v578 = vunpack.c.h.bf16 %v247
    %v579 = vunpack.c.l.bf16 %v248
    %v580 = vunpack.c.h.bf16 %v248
    %v581 = vunpack.c.l.bf16 %v249
    %v582 = vunpack.c.h.bf16 %v249
    %v583 = vunpack.c.l.bf16 %v250
    %v584 = vunpack.c.h.bf16 %v250
    %v585 = vunpack.c.l.bf16 %v251
    %v586 = vunpack.c.h.bf16 %v251
    %v587 = vunpack.c.l.bf16 %v252
    %v588 = vunpack.c.h.bf16 %v252
    %v589 = vunpack.c.l.bf16 %v253
    %v590 = vunpack.c.h.bf16 %v253
    %v591 = vunpack.c.l.bf16 %v254
    %v592 = vunpack.c.h.bf16 %v254
    %v593 = vunpack.c.l.bf16 %v255
    %v594 = vunpack.c.h.bf16 %v255
    %v595 = vunpack.c.l.bf16 %v256
    %v596 = vunpack.c.h.bf16 %v256
    %v597 = vunpack.c.l.bf16 %v257
    %v598 = vunpack.c.h.bf16 %v257
    %v599 = vunpack.c.l.bf16 %v258
    %v600 = vunpack.c.h.bf16 %v258
    %v601 = vunpack.c.l.bf16 %v259
    %v602 = vunpack.c.h.bf16 %v259
    %v603 = vunpack.c.l.bf16 %v260
    %v604 = vunpack.c.h.bf16 %v260
    %v605 = vunpack.c.l.bf16 %v261
    %v606 = vunpack.c.h.bf16 %v261
    %v607 = vunpack.c.l.bf16 %v262
    %v608 = vunpack.c.h.bf16 %v262
    %v609 = vunpack.c.l.bf16 %v263
    %v610 = vunpack.c.h.bf16 %v263
    %v611 = vunpack.c.l.bf16 %v264
    %v612 = vunpack.c.h.bf16 %v264
    %v613 = vunpack.c.l.bf16 %v265
    %v614 = vunpack.c.h.bf16 %v265
    %v615 = vunpack.c.l.bf16 %v266
    %v616 = vunpack.c.h.bf16 %v266
    %v617 = vunpack.c.l.bf16 %v267
    %v618 = vunpack.c.h.bf16 %v267
    %v619 = vunpack.c.l.bf16 %v268
    %v620 = vunpack.c.h.bf16 %v268
    %v621 = vunpack.c.l.bf16 %v269
    %v622 = vunpack.c.h.bf16 %v269
    %v623 = vunpack.c.l.bf16 %v270
    %v624 = vunpack.c.h.bf16 %v270
    %v625 = vunpack.c.l.bf16 %v271
    %v626 = vunpack.c.h.bf16 %v271
    %v627 = vunpack.c.l.bf16 %v272
    %v628 = vunpack.c.h.bf16 %v272
    %v629 = vunpack.c.l.bf16 %v273
    %v630 = vunpack.c.h.bf16 %v273
    %v631 = vunpack.c.l.bf16 %v274
    %v632 = vunpack.c.h.bf16 %v274
    %v633 = vunpack.c.l.bf16 %v275
    %v634 = vunpack.c.h.bf16 %v275
    %v635 = vunpack.c.l.bf16 %v276
    %v636 = vunpack.c.h.bf16 %v276
    %v637 = vunpack.c.l.bf16 %v277
    %v638 = vunpack.c.h.bf16 %v277
    %v639 = vunpack.c.l.bf16 %v278
    %v640 = vunpack.c.h.bf16 %v278
    %v641 = vunpack.c.l.bf16 %v279
    %v642 = vunpack.c.h.bf16 %v279
    %v643 = vunpack.c.l.bf16 %v280
    %v644 = vunpack.c.h.bf16 %v280
    %v645 = vunpack.c.l.bf16 %v281
    %v646 = vunpack.c.h.bf16 %v281
    %v647 = vunpack.c.l.bf16 %v282
    %v648 = vunpack.c.h.bf16 %v282
    %v649 = vunpack.c.l.bf16 %v283
    %v650 = vunpack.c.h.bf16 %v283
    %v651 = vunpack.c.l.bf16 %v284
    %v652 = vunpack.c.h.bf16 %v284
    %v653 = vunpack.c.l.bf16 %v285
    %v654 = vunpack.c.h.bf16 %v285
    %v655 = vunpack.c.l.bf16 %v286
    %v656 = vunpack.c.h.bf16 %v286
    %v657 = vunpack.c.l.bf16 %v287
    %v658 = vunpack.c.h.bf16 %v287
    %v659 = vunpack.c.l.bf16 %v288
    %v660 = vunpack.c.h.bf16 %v288
    %v661 = vunpack.c.l.bf16 %v289
    %v662 = vunpack.c.h.bf16 %v289
    %v663 = vunpack.c.l.bf16 %v290
    %v664 = vunpack.c.h.bf16 %v290
    %v665 = vunpack.c.l.bf16 %v291
    %v666 = vunpack.c.h.bf16 %v291
    %v667 = vunpack.c.l.bf16 %v292
    %v668 = vunpack.c.h.bf16 %v292
    %v669 = vunpack.c.l.bf16 %v293
    %v670 = vunpack.c.h.bf16 %v293
    %v671 = vunpack.c.l.bf16 %v294
    %v672 = vunpack.c.h.bf16 %v294
    %v673 = vunpack.c.l.bf16 %v295
    %v674 = vunpack.c.h.bf16 %v295
    %v675 = vunpack.c.l.bf16 %v296
    %v676 = vunpack.c.h.bf16 %v296
    %v677 = vunpack.c.l.bf16 %v297
    %v678 = vunpack.c.h.bf16 %v297
    %v679 = vunpack.c.l.bf16 %v298
    %v680 = vunpack.c.h.bf16 %v298
    %v681 = vunpack.c.l.bf16 %v299
    %v682 = vunpack.c.h.bf16 %v299
    %v683 = vunpack.c.l.bf16 %v300
    %v684 = vunpack.c.h.bf16 %v300
    %v685 = vunpack.c.l.bf16 %v301
    %v686 = vunpack.c.h.bf16 %v301
    %v687 = vunpack.c.l.bf16 %v302
    %v688 = vunpack.c.h.bf16 %v302
    %v689 = vunpack.c.l.bf16 %v303
    %v690 = vunpack.c.h.bf16 %v303
    %v691 = vunpack.c.l.bf16 %v304
    %v692 = vunpack.c.h.bf16 %v304
    %v693 = vunpack.c.l.bf16 %v305
    %v694 = vunpack.c.h.bf16 %v305
    %v695 = vunpack.c.l.bf16 %v306
    %v696 = vunpack.c.h.bf16 %v306
    %v697 = vunpack.c.l.bf16 %v307
    %v698 = vunpack.c.h.bf16 %v307
    %v699 = vunpack.c.l.bf16 %v308
    %v700 = vunpack.c.h.bf16 %v308
    %v701 = vunpack.c.l.bf16 %v309
    %v702 = vunpack.c.h.bf16 %v309
    %v703 = vunpack.c.l.bf16 %v310
    %v704 = vunpack.c.h.bf16 %v310
    %v705 = vunpack.c.l.bf16 %v311
    %v706 = vunpack.c.h.bf16 %v311
    %v707 = vunpack.c.l.bf16 %v312
    %v708 = vunpack.c.h.bf16 %v312
    %v709 = vunpack.c.l.bf16 %v313
    %v710 = vunpack.c.h.bf16 %v313
    %v711 = vunpack.c.l.bf16 %v314
    %v712 = vunpack.c.h.bf16 %v314
    %v713 = vunpack.c.l.bf16 %v315
    %v714 = vunpack.c.h.bf16 %v315
    %v715 = vunpack.c.l.bf16 %v316
    %v716 = vunpack.c.h.bf16 %v316
    %v717 = vunpack.c.l.bf16 %v317
    %v718 = vunpack.c.h.bf16 %v317
    %v719 = vunpack.c.l.bf16 %v318
    %v720 = vunpack.c.h.bf16 %v318
    %v721 = vunpack.c.l.bf16 %v319
    %v722 = vunpack.c.h.bf16 %v319
    %v723 = vunpack.c.l.bf16 %v320
    %v724 = vunpack.c.h.bf16 %v320
    %v725 = vunpack.c.l.bf16 %v321
    %v726 = vunpack.c.h.bf16 %v321
    %v727 = vunpack.c.l.bf16 %v322
    %v728 = vunpack.c.h.bf16 %v322
    %v729 = vunpack.c.l.bf16 %v323
    %v730 = vunpack.c.h.bf16 %v323
    %v731 = vunpack.c.l.bf16 %v324
    %v732 = vunpack.c.h.bf16 %v324
    %v733 = vunpack.c.l.bf16 %v325
    %v734 = vunpack.c.h.bf16 %v325
    %v735 = vunpack.c.l.bf16 %v326
    %v736 = vunpack.c.h.bf16 %v326
    %v737 = vunpack.c.l.bf16 %v327
    %v738 = vunpack.c.h.bf16 %v327
    %v739 = vunpack.c.l.bf16 %v328
    %v740 = vunpack.c.h.bf16 %v328
    %v741 = vunpack.c.l.bf16 %v329
    %v742 = vunpack.c.h.bf16 %v329
    %v743 = vunpack.c.l.bf16 %v330
    %v744 = vunpack.c.h.bf16 %v330
    %v745 = vunpack.c.l.bf16 %v331
    %v746 = vunpack.c.h.bf16 %v331
    %v747 = vunpack.c.l.bf16 %v332
    %v748 = vunpack.c.h.bf16 %v332
    %v749 = vunpack.c.l.bf16 %v333
    %v750 = vunpack.c.h.bf16 %v333
    %v751 = vunpack.c.l.bf16 %v334
    %v752 = vunpack.c.h.bf16 %v334
    %v753 = vunpack.c.l.bf16 %v335
    %v754 = vunpack.c.h.bf16 %v335
    %v755 = vunpack.c.l.bf16 %v336
    %v756 = vunpack.c.h.bf16 %v336
    %v757 = vunpack.c.l.bf16 %v337
    %v758 = vunpack.c.h.bf16 %v337
    %v759 = vunpack.c.l.bf16 %v338
    %v760 = vunpack.c.h.bf16 %v338
    %v761 = vunpack.c.l.bf16 %v339
    %v762 = vunpack.c.h.bf16 %v339
    %v763 = vunpack.c.l.bf16 %v340
    %v764 = vunpack.c.h.bf16 %v340
    %v765 = vunpack.c.l.bf16 %v341
    %v766 = vunpack.c.h.bf16 %v341
    %v767 = vunpack.c.l.bf16 %v342
    %v768 = vunpack.c.h.bf16 %v342
    %v769 = vunpack.c.l.bf16 %v343
    %v770 = vunpack.c.h.bf16 %v343
    %v771 = vunpack.c.l.bf16 %v344
    %v772 = vunpack.c.h.bf16 %v344
    %v773 = vunpack.c.l.bf16 %v345
    %v774 = vunpack.c.h.bf16 %v345
    %v775 = vunpack.c.l.bf16 %v346
    %v776 = vunpack.c.h.bf16 %v346
    %v777 = vunpack.c.l.bf16 %v347
    %v778 = vunpack.c.h.bf16 %v347
    %v779 = vunpack.c.l.bf16 %v348
    %v780 = vunpack.c.h.bf16 %v348
    %v781 = vunpack.c.l.bf16 %v349
    %v782 = vunpack.c.h.bf16 %v349
    %v783 = vunpack.c.l.bf16 %v350
    %v784 = vunpack.c.h.bf16 %v350
    %v785 = vunpack.c.l.bf16 %v351
    %v786 = vunpack.c.h.bf16 %v351
    %v787 = vunpack.c.l.bf16 %v352
    %v788 = vunpack.c.h.bf16 %v352
    %v789 = vunpack.c.l.bf16 %v353
    %v790 = vunpack.c.h.bf16 %v353
    %v791 = vunpack.c.l.bf16 %v354
    %v792 = vunpack.c.h.bf16 %v354
    %v793 = vunpack.c.l.bf16 %v355
    %v794 = vunpack.c.h.bf16 %v355
    %v795 = vunpack.c.l.bf16 %v356
    %v796 = vunpack.c.h.bf16 %v356
    %v797 = vunpack.c.l.bf16 %v357
    %v798 = vunpack.c.h.bf16 %v357
    %v799 = vunpack.c.l.bf16 %v358
    %v800 = vunpack.c.h.bf16 %v358
    %v801 = vunpack.c.l.bf16 %v359
    %v802 = vunpack.c.h.bf16 %v359
    %v803 = vunpack.c.l.bf16 %v360
    %v804 = vunpack.c.h.bf16 %v360
    %v805 = vunpack.c.l.bf16 %v361
    %v806 = vunpack.c.h.bf16 %v361
    %v807 = vunpack.c.l.bf16 %v362
    %v808 = vunpack.c.h.bf16 %v362
    %v809 = vunpack.c.l.bf16 %v363
    %v810 = vunpack.c.h.bf16 %v363
    %v811 = vunpack.c.l.bf16 %v364
    %v812 = vunpack.c.h.bf16 %v364
    %v813 = vld [vmem:[%s3] sm:$0xf]
    %v815 = vlaneseq
    %v816 = vshrl.u32 %v815, 7
    %v817 = vsub.s32 0, %v816
    %v818 = vrot.slane %v813, %v817
    %v819 = vlaneseq
    %v820 = vshrl.u32 %v819, 7
    %v821 = vsub.s32 1, %v820
    %v822 = vrot.slane %v813, %v821
    %v823 = vlaneseq
    %v824 = vshrl.u32 %v823, 7
    %v825 = vsub.s32 2, %v824
    %v826 = vrot.slane %v813, %v825
    %v827 = vlaneseq
    %v828 = vshrl.u32 %v827, 7
    %v829 = vsub.s32 3, %v828
    %v830 = vrot.slane %v813, %v829
    %835 = vmatprep.subr.mxu0 %v366
    %836 = vmatpush1.msra.mxu0 %v365
    %837 = vmatprep.subr.mxu0 %v370
    %838 = vmatpush1.msra.mxu0 %v369
    %839 = vmatprep.subr.mxu0 %v374
    %840 = vmatpush1.msra.mxu0 %v373
    %841 = vmatprep.subr.mxu0 %v378
    %842 = vmatpush1.msra.mxu0 %v377
    %843 = vmatprep.subr.mxu0 %v382
    %844 = vmatpush1.msra.mxu0 %v381
    %845 = vmatprep.subr.mxu0 %v386
    %846 = vmatpush1.msra.mxu0 %v385
    %847 = vmatprep.subr.mxu0 %v390
    %848 = vmatpush1.msra.mxu0 %v389
    %849 = vmatprep.subr.mxu0 %v394
    %850 = vmatpush1.msra.mxu0 %v393
    %851 = vmatprep.subr.mxu0 %v398
    %852 = vmatpush1.msra.mxu0 %v397
    %853 = vmatprep.subr.mxu0 %v402
    %854 = vmatpush1.msra.mxu0 %v401
    %855 = vmatprep.subr.mxu0 %v406
    %856 = vmatpush1.msra.mxu0 %v405
    %857 = vmatprep.subr.mxu0 %v410
    %858 = vmatpush1.msra.mxu0 %v409
    %859 = vmatprep.subr.mxu0 %v414
    %860 = vmatpush1.msra.mxu0 %v413
    %861 = vmatprep.subr.mxu0 %v418
    %862 = vmatpush1.msra.mxu0 %v417
    %863 = vmatprep.subr.mxu0 %v422
    %864 = vmatpush1.msra.mxu0 %v421
    %865 = vmatprep.subr.mxu0 %v426
    %866 = vmatpush1.msra.mxu0 %v425
    %867 = vmatprep.subr.mxu0 %v430
    %868 = vmatpush1.msra.mxu0 %v429
    %869 = vmatprep.subr.mxu0 %v434
    %870 = vmatpush1.msra.mxu0 %v433
    %871 = vmatprep.subr.mxu0 %v438
    %872 = vmatpush1.msra.mxu0 %v437
    %873 = vmatprep.subr.mxu0 %v442
    %874 = vmatpush1.msra.mxu0 %v441
    %875 = vmatprep.subr.mxu0 %v446
    %876 = vmatpush1.msra.mxu0 %v445
    %877 = vmatprep.subr.mxu0 %v450
    %878 = vmatpush1.msra.mxu0 %v449
    %879 = vmatprep.subr.mxu0 %v454
    %880 = vmatpush1.msra.mxu0 %v453
    %881 = vmatprep.subr.mxu0 %v458
    %882 = vmatpush1.msra.mxu0 %v457
    %883 = vmatprep.subr.mxu0 %v462
    %884 = vmatpush1.msra.mxu0 %v461
    %885 = vmatprep.subr.mxu0 %v466
    %886 = vmatpush1.msra.mxu0 %v465
    %887 = vmatprep.subr.mxu0 %v470
    %888 = vmatpush1.msra.mxu0 %v469
    %889 = vmatprep.subr.mxu0 %v474
    %890 = vmatpush1.msra.mxu0 %v473
    %891 = vmatprep.subr.mxu0 %v478
    %892 = vmatpush1.msra.mxu0 %v477
    %893 = vmatprep.subr.mxu0 %v482
    %894 = vmatpush1.msra.mxu0 %v481
    %895 = vmatprep.subr.mxu0 %v486
    %896 = vmatpush1.msra.mxu0 %v485
    %897 = vmatprep.subr.mxu0 %v490
    %898 = vmatpush1.msra.mxu0 %v489
    %899 = vmatprep.mubr.f32.mxu0 %v135
    %900 = vmatmul.mubr.f32.gmra.mrb[0].mxu0 %v134
    %v901 = vpop.f32.mrb[0].mxu0
    %v902 = vadd.f32 %v818, %v901
    %v903 = vpop.f32.mrb[0].mxu0
    %v904 = vadd.f32 %v822, %v903
    %905 = vdwg.mxu0
    %906 = vmatprep.subr.mxu0 %v494
    %907 = vmatpush1.msra.mxu0 %v493
    %908 = vmatprep.subr.mxu0 %v498
    %909 = vmatpush1.msra.mxu0 %v497
    %910 = vmatprep.subr.mxu0 %v502
    %911 = vmatpush1.msra.mxu0 %v501
    %912 = vmatprep.subr.mxu0 %v506
    %913 = vmatpush1.msra.mxu0 %v505
    %914 = vmatprep.subr.mxu0 %v510
    %915 = vmatpush1.msra.mxu0 %v509
    %916 = vmatprep.subr.mxu0 %v514
    %917 = vmatpush1.msra.mxu0 %v513
    %918 = vmatprep.subr.mxu0 %v518
    %919 = vmatpush1.msra.mxu0 %v517
    %920 = vmatprep.subr.mxu0 %v522
    %921 = vmatpush1.msra.mxu0 %v521
    %922 = vmatprep.subr.mxu0 %v526
    %923 = vmatpush1.msra.mxu0 %v525
    %924 = vmatprep.subr.mxu0 %v530
    %925 = vmatpush1.msra.mxu0 %v529
    %926 = vmatprep.subr.mxu0 %v534
    %927 = vmatpush1.msra.mxu0 %v533
    %928 = vmatprep.subr.mxu0 %v538
    %929 = vmatpush1.msra.mxu0 %v537
    %930 = vmatprep.subr.mxu0 %v542
    %931 = vmatpush1.msra.mxu0 %v541
    %932 = vmatprep.subr.mxu0 %v546
    %933 = vmatpush1.msra.mxu0 %v545
    %934 = vmatprep.subr.mxu0 %v550
    %935 = vmatpush1.msra.mxu0 %v549
    %936 = vmatprep.subr.mxu0 %v554
    %937 = vmatpush1.msra.mxu0 %v553
    %938 = vmatprep.subr.mxu0 %v558
    %939 = vmatpush1.msra.mxu0 %v557
    %940 = vmatprep.subr.mxu0 %v562
    %941 = vmatpush1.msra.mxu0 %v561
    %942 = vmatprep.subr.mxu0 %v566
    %943 = vmatpush1.msra.mxu0 %v565
    %944 = vmatprep.subr.mxu0 %v570
    %945 = vmatpush1.msra.mxu0 %v569
    %946 = vmatprep.subr.mxu0 %v574
    %947 = vmatpush1.msra.mxu0 %v573
    %948 = vmatprep.subr.mxu0 %v578
    %949 = vmatpush1.msra.mxu0 %v577
    %950 = vmatprep.subr.mxu0 %v582
    %951 = vmatpush1.msra.mxu0 %v581
    %952 = vmatprep.subr.mxu0 %v586
    %953 = vmatpush1.msra.mxu0 %v585
    %954 = vmatprep.subr.mxu0 %v590
    %955 = vmatpush1.msra.mxu0 %v589
    %956 = vmatprep.subr.mxu0 %v594
    %957 = vmatpush1.msra.mxu0 %v593
    %958 = vmatprep.subr.mxu0 %v598
    %959 = vmatpush1.msra.mxu0 %v597
    %960 = vmatprep.subr.mxu0 %v602
    %961 = vmatpush1.msra.mxu0 %v601
    %962 = vmatprep.subr.mxu0 %v606
    %963 = vmatpush1.msra.mxu0 %v605
    %964 = vmatprep.subr.mxu0 %v610
    %965 = vmatpush1.msra.mxu0 %v609
    %966 = vmatprep.subr.mxu0 %v614
    %967 = vmatpush1.msra.mxu0 %v613
    %968 = vmatprep.subr.mxu0 %v618
    %969 = vmatpush1.msra.mxu0 %v617
    %970 = vmatprep.mubr.f32.mxu0 %v137
    %971 = vmatmul.mubr.f32.gmra.mrb[0].mxu0 %v136
    %v972 = vpop.f32.mrb[0].mxu0
    %v973 = vadd.f32 %v902, %v972
    %v974 = vpop.f32.mrb[0].mxu0
    %v975 = vadd.f32 %v904, %v974
    %976 = vdwg.mxu0
    %977 = vmatprep.subr.mxu0 %v622
    %978 = vmatpush1.msra.mxu0 %v621
    %979 = vmatprep.subr.mxu0 %v626
    %980 = vmatpush1.msra.mxu0 %v625
    %981 = vmatprep.subr.mxu0 %v630
    %982 = vmatpush1.msra.mxu0 %v629
    %983 = vmatprep.subr.mxu0 %v634
    %984 = vmatpush1.msra.mxu0 %v633
    %985 = vmatprep.subr.mxu0 %v638
    %986 = vmatpush1.msra.mxu0 %v637
    %987 = vmatprep.subr.mxu0 %v642
    %988 = vmatpush1.msra.mxu0 %v641
    %989 = vmatprep.subr.mxu0 %v646
    %990 = vmatpush1.msra.mxu0 %v645
    %991 = vmatprep.subr.mxu0 %v650
    %992 = vmatpush1.msra.mxu0 %v649
    %993 = vmatprep.subr.mxu0 %v654
    %994 = vmatpush1.msra.mxu0 %v653
    %995 = vmatprep.subr.mxu0 %v658
    %996 = vmatpush1.msra.mxu0 %v657
    %997 = vmatprep.subr.mxu0 %v662
    %998 = vmatpush1.msra.mxu0 %v661
    %999 = vmatprep.subr.mxu0 %v666
    %1000 = vmatpush1.msra.mxu0 %v665
    %1001 = vmatprep.subr.mxu0 %v670
    %1002 = vmatpush1.msra.mxu0 %v669
    %1003 = vmatprep.subr.mxu0 %v674
    %1004 = vmatpush1.msra.mxu0 %v673
    %1005 = vmatprep.subr.mxu0 %v678
    %1006 = vmatpush1.msra.mxu0 %v677
    %1007 = vmatprep.subr.mxu0 %v682
    %1008 = vmatpush1.msra.mxu0 %v681
    %1009 = vmatprep.subr.mxu0 %v686
    %1010 = vmatpush1.msra.mxu0 %v685
    %1011 = vmatprep.subr.mxu0 %v690
    %1012 = vmatpush1.msra.mxu0 %v689
    %1013 = vmatprep.subr.mxu0 %v694
    %1014 = vmatpush1.msra.mxu0 %v693
    %1015 = vmatprep.subr.mxu0 %v698
    %1016 = vmatpush1.msra.mxu0 %v697
    %1017 = vmatprep.subr.mxu0 %v702
    %1018 = vmatpush1.msra.mxu0 %v701
    %1019 = vmatprep.subr.mxu0 %v706
    %1020 = vmatpush1.msra.mxu0 %v705
    %1021 = vmatprep.subr.mxu0 %v710
    %1022 = vmatpush1.msra.mxu0 %v709
    %1023 = vmatprep.subr.mxu0 %v714
    %1024 = vmatpush1.msra.mxu0 %v713
    %1025 = vmatprep.subr.mxu0 %v718
    %1026 = vmatpush1.msra.mxu0 %v717
    %1027 = vmatprep.subr.mxu0 %v722
    %1028 = vmatpush1.msra.mxu0 %v721
    %1029 = vmatprep.subr.mxu0 %v726
    %1030 = vmatpush1.msra.mxu0 %v725
    %1031 = vmatprep.subr.mxu0 %v730
    %1032 = vmatpush1.msra.mxu0 %v729
    %1033 = vmatprep.subr.mxu0 %v734
    %1034 = vmatpush1.msra.mxu0 %v733
    %1035 = vmatprep.subr.mxu0 %v738
    %1036 = vmatpush1.msra.mxu0 %v737
    %1037 = vmatprep.subr.mxu0 %v742
    %1038 = vmatpush1.msra.mxu0 %v741
    %1039 = vmatprep.subr.mxu0 %v746
    %1040 = vmatpush1.msra.mxu0 %v745
    %1041 = vmatprep.mubr.f32.mxu0 %v139
    %1042 = vmatmul.mubr.f32.gmra.mrb[0].mxu0 %v138
    %v1043 = vpop.f32.mrb[0].mxu0
    %v1044 = vadd.f32 %v973, %v1043
    %v1045 = vpop.f32.mrb[0].mxu0
    %v1046 = vadd.f32 %v975, %v1045
    %1047 = vdwg.mxu0
    %1048 = vmatprep.subr.mxu0 %v750
    %1049 = vmatpush1.msra.mxu0 %v749
    %1050 = vmatprep.subr.mxu0 %v754
    %1051 = vmatpush1.msra.mxu0 %v753
    %1052 = vmatprep.subr.mxu0 %v758
    %1053 = vmatpush1.msra.mxu0 %v757
    %1054 = vmatprep.subr.mxu0 %v762
    %1055 = vmatpush1.msra.mxu0 %v761
    %1056 = vmatprep.subr.mxu0 %v766
    %1057 = vmatpush1.msra.mxu0 %v765
    %1058 = vmatprep.subr.mxu0 %v770
    %1059 = vmatpush1.msra.mxu0 %v769
    %1060 = vmatprep.subr.mxu0 %v774
    %1061 = vmatpush1.msra.mxu0 %v773
    %1062 = vmatprep.subr.mxu0 %v778
    %1063 = vmatpush1.msra.mxu0 %v777
    %1064 = vmatprep.subr.mxu0 %v782
    %1065 = vmatpush1.msra.mxu0 %v781
    %1066 = vmatprep.subr.mxu0 %v786
    %1067 = vmatpush1.msra.mxu0 %v785
    %1068 = vmatprep.subr.mxu0 %v790
    %1069 = vmatpush1.msra.mxu0 %v789
    %1070 = vmatprep.subr.mxu0 %v794
    %1071 = vmatpush1.msra.mxu0 %v793
    %1072 = vmatprep.subr.mxu0 %v798
    %1073 = vmatpush1.msra.mxu0 %v797
    %1074 = vmatprep.subr.mxu0 %v802
    %1075 = vmatpush1.msra.mxu0 %v801
    %1076 = vmatprep.subr.mxu0 %v806
    %1077 = vmatpush1.msra.mxu0 %v805
    %1078 = vmatprep.subr.mxu0 %v810
    %1079 = vmatpush1.msra.mxu0 %v809
    %1080 = vmatprep.subr.mxu0 0.0
    %1081 = vmatpush1.msra.mxu0 0.0
    %1082 = vmatprep.subr.mxu0 0.0
    %1083 = vmatpush1.msra.mxu0 0.0
    %1084 = vmatprep.subr.mxu0 0.0
    %1085 = vmatpush1.msra.mxu0 0.0
    %1086 = vmatprep.subr.mxu0 0.0
    %1087 = vmatpush1.msra.mxu0 0.0
    %1088 = vmatprep.subr.mxu0 0.0
    %1089 = vmatpush1.msra.mxu0 0.0
    %1090 = vmatprep.subr.mxu0 0.0
    %1091 = vmatpush1.msra.mxu0 0.0
    %1092 = vmatprep.subr.mxu0 0.0
    %1093 = vmatpush1.msra.mxu0 0.0
    %1094 = vmatprep.subr.mxu0 0.0
    %1095 = vmatpush1.msra.mxu0 0.0
    %1096 = vmatprep.subr.mxu0 0.0
    %1097 = vmatpush1.msra.mxu0 0.0
    %1098 = vmatprep.subr.mxu0 0.0
    %1099 = vmatpush1.msra.mxu0 0.0
    %1100 = vmatprep.subr.mxu0 0.0
    %1101 = vmatpush1.msra.mxu0 0.0
    %1102 = vmatprep.subr.mxu0 0.0
    %1103 = vmatpush1.msra.mxu0 0.0
    %1104 = vmatprep.subr.mxu0 0.0
    %1105 = vmatpush1.msra.mxu0 0.0
    %1106 = vmatprep.subr.mxu0 0.0
    %1107 = vmatpush1.msra.mxu0 0.0
    %1108 = vmatprep.subr.mxu0 0.0
    %1109 = vmatpush1.msra.mxu0 0.0
    %1110 = vmatprep.subr.mxu0 0.0
    %1111 = vmatpush1.msra.mxu0 0.0
    %1112 = vmatprep.mubr.f32.mxu0 0.0
    %1113 = vmatmul.mubr.f32.gmra.mrb[0].mxu0 %v140
    %v1114 = vpop.f32.mrb[0].mxu0
    %v1115 = vadd.f32 %v1044, %v1114
    %v1116 = vpop.f32.mrb[0].mxu0
    %v1117 = vadd.f32 %v1046, %v1116
    %1118 = vdwg.mxu0
    %1119 = vmatprep.subr.mxu0 %v368
    %1120 = vmatpush1.msra.mxu0 %v367
    %1121 = vmatprep.subr.mxu0 %v372
    %1122 = vmatpush1.msra.mxu0 %v371
    %1123 = vmatprep.subr.mxu0 %v376
    %1124 = vmatpush1.msra.mxu0 %v375
    %1125 = vmatprep.subr.mxu0 %v380
    %1126 = vmatpush1.msra.mxu0 %v379
    %1127 = vmatprep.subr.mxu0 %v384
    %1128 = vmatpush1.msra.mxu0 %v383
    %1129 = vmatprep.subr.mxu0 %v388
    %1130 = vmatpush1.msra.mxu0 %v387
    %1131 = vmatprep.subr.mxu0 %v392
    %1132 = vmatpush1.msra.mxu0 %v391
    %1133 = vmatprep.subr.mxu0 %v396
    %1134 = vmatpush1.msra.mxu0 %v395
    %1135 = vmatprep.subr.mxu0 %v400
    %1136 = vmatpush1.msra.mxu0 %v399
    %1137 = vmatprep.subr.mxu0 %v404
    %1138 = vmatpush1.msra.mxu0 %v403
    %1139 = vmatprep.subr.mxu0 %v408
    %1140 = vmatpush1.msra.mxu0 %v407
    %1141 = vmatprep.subr.mxu0 %v412
    %1142 = vmatpush1.msra.mxu0 %v411
    %1143 = vmatprep.subr.mxu0 %v416
    %1144 = vmatpush1.msra.mxu0 %v415
    %1145 = vmatprep.subr.mxu0 %v420
    %1146 = vmatpush1.msra.mxu0 %v419
    %1147 = vmatprep.subr.mxu0 %v424
    %1148 = vmatpush1.msra.mxu0 %v423
    %1149 = vmatprep.subr.mxu0 %v428
    %1150 = vmatpush1.msra.mxu0 %v427
    %1151 = vmatprep.subr.mxu0 %v432
    %1152 = vmatpush1.msra.mxu0 %v431
    %1153 = vmatprep.subr.mxu0 %v436
    %1154 = vmatpush1.msra.mxu0 %v435
    %1155 = vmatprep.subr.mxu0 %v440
    %1156 = vmatpush1.msra.mxu0 %v439
    %1157 = vmatprep.subr.mxu0 %v444
    %1158 = vmatpush1.msra.mxu0 %v443
    %1159 = vmatprep.subr.mxu0 %v448
    %1160 = vmatpush1.msra.mxu0 %v447
    %1161 = vmatprep.subr.mxu0 %v452
    %1162 = vmatpush1.msra.mxu0 %v451
    %1163 = vmatprep.subr.mxu0 %v456
    %1164 = vmatpush1.msra.mxu0 %v455
    %1165 = vmatprep.subr.mxu0 %v460
    %1166 = vmatpush1.msra.mxu0 %v459
    %1167 = vmatprep.subr.mxu0 %v464
    %1168 = vmatpush1.msra.mxu0 %v463
    %1169 = vmatprep.subr.mxu0 %v468
    %1170 = vmatpush1.msra.mxu0 %v467
    %1171 = vmatprep.subr.mxu0 %v472
    %1172 = vmatpush1.msra.mxu0 %v471
    %1173 = vmatprep.subr.mxu0 %v476
    %1174 = vmatpush1.msra.mxu0 %v475
    %1175 = vmatprep.subr.mxu0 %v480
    %1176 = vmatpush1.msra.mxu0 %v479
    %1177 = vmatprep.subr.mxu0 %v484
    %1178 = vmatpush1.msra.mxu0 %v483
    %1179 = vmatprep.subr.mxu0 %v488
    %1180 = vmatpush1.msra.mxu0 %v487
    %1181 = vmatprep.subr.mxu0 %v492
    %1182 = vmatpush1.msra.mxu0 %v491
    %1183 = vmatprep.mubr.f32.mxu0 %v135
    %1184 = vmatmul.mubr.f32.gmra.mrb[0].mxu0 %v134
    %v1185 = vpop.f32.mrb[0].mxu0
    %v1186 = vadd.f32 %v826, %v1185
    %v1187 = vpop.f32.mrb[0].mxu0
    %v1188 = vadd.f32 %v830, %v1187
    %1189 = vdwg.mxu0
    %1190 = vmatprep.subr.mxu0 %v496
    %1191 = vmatpush1.msra.mxu0 %v495
    %1192 = vmatprep.subr.mxu0 %v500
    %1193 = vmatpush1.msra.mxu0 %v499
    %1194 = vmatprep.subr.mxu0 %v504
    %1195 = vmatpush1.msra.mxu0 %v503
    %1196 = vmatprep.subr.mxu0 %v508
    %1197 = vmatpush1.msra.mxu0 %v507
    %1198 = vmatprep.subr.mxu0 %v512
    %1199 = vmatpush1.msra.mxu0 %v511
    %1200 = vmatprep.subr.mxu0 %v516
    %1201 = vmatpush1.msra.mxu0 %v515
    %1202 = vmatprep.subr.mxu0 %v520
    %1203 = vmatpush1.msra.mxu0 %v519
    %1204 = vmatprep.subr.mxu0 %v524
    %1205 = vmatpush1.msra.mxu0 %v523
    %1206 = vmatprep.subr.mxu0 %v528
    %1207 = vmatpush1.msra.mxu0 %v527
    %1208 = vmatprep.subr.mxu0 %v532
    %1209 = vmatpush1.msra.mxu0 %v531
    %1210 = vmatprep.subr.mxu0 %v536
    %1211 = vmatpush1.msra.mxu0 %v535
    %1212 = vmatprep.subr.mxu0 %v540
    %1213 = vmatpush1.msra.mxu0 %v539
    %1214 = vmatprep.subr.mxu0 %v544
    %1215 = vmatpush1.msra.mxu0 %v543
    %1216 = vmatprep.subr.mxu0 %v548
    %1217 = vmatpush1.msra.mxu0 %v547
    %1218 = vmatprep.subr.mxu0 %v552
    %1219 = vmatpush1.msra.mxu0 %v551
    %1220 = vmatprep.subr.mxu0 %v556
    %1221 = vmatpush1.msra.mxu0 %v555
    %1222 = vmatprep.subr.mxu0 %v560
    %1223 = vmatpush1.msra.mxu0 %v559
    %1224 = vmatprep.subr.mxu0 %v564
    %1225 = vmatpush1.msra.mxu0 %v563
    %1226 = vmatprep.subr.mxu0 %v568
    %1227 = vmatpush1.msra.mxu0 %v567
    %1228 = vmatprep.subr.mxu0 %v572
    %1229 = vmatpush1.msra.mxu0 %v571
    %1230 = vmatprep.subr.mxu0 %v576
    %1231 = vmatpush1.msra.mxu0 %v575
    %1232 = vmatprep.subr.mxu0 %v580
    %1233 = vmatpush1.msra.mxu0 %v579
    %1234 = vmatprep.subr.mxu0 %v584
    %1235 = vmatpush1.msra.mxu0 %v583
    %1236 = vmatprep.subr.mxu0 %v588
    %1237 = vmatpush1.msra.mxu0 %v587
    %1238 = vmatprep.subr.mxu0 %v592
    %1239 = vmatpush1.msra.mxu0 %v591
    %1240 = vmatprep.subr.mxu0 %v596
    %1241 = vmatpush1.msra.mxu0 %v595
    %1242 = vmatprep.subr.mxu0 %v600
    %1243 = vmatpush1.msra.mxu0 %v599
    %1244 = vmatprep.subr.mxu0 %v604
    %1245 = vmatpush1.msra.mxu0 %v603
    %1246 = vmatprep.subr.mxu0 %v608
    %1247 = vmatpush1.msra.mxu0 %v607
    %1248 = vmatprep.subr.mxu0 %v612
    %1249 = vmatpush1.msra.mxu0 %v611
    %1250 = vmatprep.subr.mxu0 %v616
    %1251 = vmatpush1.msra.mxu0 %v615
    %1252 = vmatprep.subr.mxu0 %v620
    %1253 = vmatpush1.msra.mxu0 %v619
    %1254 = vmatprep.mubr.f32.mxu0 %v137
    %1255 = vmatmul.mubr.f32.gmra.mrb[0].mxu0 %v136
    %v1256 = vpop.f32.mrb[0].mxu0
    %v1257 = vadd.f32 %v1186, %v1256
    %v1258 = vpop.f32.mrb[0].mxu0
    %v1259 = vadd.f32 %v1188, %v1258
    %1260 = vdwg.mxu0
    %1261 = vmatprep.subr.mxu0 %v624
    %1262 = vmatpush1.msra.mxu0 %v623
    %1263 = vmatprep.subr.mxu0 %v628
    %1264 = vmatpush1.msra.mxu0 %v627
    %1265 = vmatprep.subr.mxu0 %v632
    %1266 = vmatpush1.msra.mxu0 %v631
    %1267 = vmatprep.subr.mxu0 %v636
    %1268 = vmatpush1.msra.mxu0 %v635
    %1269 = vmatprep.subr.mxu0 %v640
    %1270 = vmatpush1.msra.mxu0 %v639
    %1271 = vmatprep.subr.mxu0 %v644
    %1272 = vmatpush1.msra.mxu0 %v643
    %1273 = vmatprep.subr.mxu0 %v648
    %1274 = vmatpush1.msra.mxu0 %v647
    %1275 = vmatprep.subr.mxu0 %v652
    %1276 = vmatpush1.msra.mxu0 %v651
    %1277 = vmatprep.subr.mxu0 %v656
    %1278 = vmatpush1.msra.mxu0 %v655
    %1279 = vmatprep.subr.mxu0 %v660
    %1280 = vmatpush1.msra.mxu0 %v659
    %1281 = vmatprep.subr.mxu0 %v664
    %1282 = vmatpush1.msra.mxu0 %v663
    %1283 = vmatprep.subr.mxu0 %v668
    %1284 = vmatpush1.msra.mxu0 %v667
    %1285 = vmatprep.subr.mxu0 %v672
    %1286 = vmatpush1.msra.mxu0 %v671
    %1287 = vmatprep.subr.mxu0 %v676
    %1288 = vmatpush1.msra.mxu0 %v675
    %1289 = vmatprep.subr.mxu0 %v680
    %1290 = vmatpush1.msra.mxu0 %v679
    %1291 = vmatprep.subr.mxu0 %v684
    %1292 = vmatpush1.msra.mxu0 %v683
    %1293 = vmatprep.subr.mxu0 %v688
    %1294 = vmatpush1.msra.mxu0 %v687
    %1295 = vmatprep.subr.mxu0 %v692
    %1296 = vmatpush1.msra.mxu0 %v691
    %1297 = vmatprep.subr.mxu0 %v696
    %1298 = vmatpush1.msra.mxu0 %v695
    %1299 = vmatprep.subr.mxu0 %v700
    %1300 = vmatpush1.msra.mxu0 %v699
    %1301 = vmatprep.subr.mxu0 %v704
    %1302 = vmatpush1.msra.mxu0 %v703
    %1303 = vmatprep.subr.mxu0 %v708
    %1304 = vmatpush1.msra.mxu0 %v707
    %1305 = vmatprep.subr.mxu0 %v712
    %1306 = vmatpush1.msra.mxu0 %v711
    %1307 = vmatprep.subr.mxu0 %v716
    %1308 = vmatpush1.msra.mxu0 %v715
    %1309 = vmatprep.subr.mxu0 %v720
    %1310 = vmatpush1.msra.mxu0 %v719
    %1311 = vmatprep.subr.mxu0 %v724
    %1312 = vmatpush1.msra.mxu0 %v723
    %1313 = vmatprep.subr.mxu0 %v728
    %1314 = vmatpush1.msra.mxu0 %v727
    %1315 = vmatprep.subr.mxu0 %v732
    %1316 = vmatpush1.msra.mxu0 %v731
    %1317 = vmatprep.subr.mxu0 %v736
    %1318 = vmatpush1.msra.mxu0 %v735
    %1319 = vmatprep.subr.mxu0 %v740
    %1320 = vmatpush1.msra.mxu0 %v739
    %1321 = vmatprep.subr.mxu0 %v744
    %1322 = vmatpush1.msra.mxu0 %v743
    %1323 = vmatprep.subr.mxu0 %v748
    %1324 = vmatpush1.msra.mxu0 %v747
    %1325 = vmatprep.mubr.f32.mxu0 %v139
    %1326 = vmatmul.mubr.f32.gmra.mrb[0].mxu0 %v138
    %v1327 = vpop.f32.mrb[0].mxu0
    %v1328 = vadd.f32 %v1257, %v1327
    %v1329 = vpop.f32.mrb[0].mxu0
    %v1330 = vadd.f32 %v1259, %v1329
    %1331 = vdwg.mxu0
    %1332 = vmatprep.subr.mxu0 %v752
    %1333 = vmatpush1.msra.mxu0 %v751
    %1334 = vmatprep.subr.mxu0 %v756
    %1335 = vmatpush1.msra.mxu0 %v755
    %1336 = vmatprep.subr.mxu0 %v760
    %1337 = vmatpush1.msra.mxu0 %v759
    %1338 = vmatprep.subr.mxu0 %v764
    %1339 = vmatpush1.msra.mxu0 %v763
    %1340 = vmatprep.subr.mxu0 %v768
    %1341 = vmatpush1.msra.mxu0 %v767
    %1342 = vmatprep.subr.mxu0 %v772
    %1343 = vmatpush1.msra.mxu0 %v771
    %1344 = vmatprep.subr.mxu0 %v776
    %1345 = vmatpush1.msra.mxu0 %v775
    %1346 = vmatprep.subr.mxu0 %v780
    %1347 = vmatpush1.msra.mxu0 %v779
    %1348 = vmatprep.subr.mxu0 %v784
    %1349 = vmatpush1.msra.mxu0 %v783
    %1350 = vmatprep.subr.mxu0 %v788
    %1351 = vmatpush1.msra.mxu0 %v787
    %1352 = vmatprep.subr.mxu0 %v792
    %1353 = vmatpush1.msra.mxu0 %v791
    %1354 = vmatprep.subr.mxu0 %v796
    %1355 = vmatpush1.msra.mxu0 %v795
    %1356 = vmatprep.subr.mxu0 %v800
    %1357 = vmatpush1.msra.mxu0 %v799
    %1358 = vmatprep.subr.mxu0 %v804
    %1359 = vmatpush1.msra.mxu0 %v803
    %1360 = vmatprep.subr.mxu0 %v808
    %1361 = vmatpush1.msra.mxu0 %v807
    %1362 = vmatprep.subr.mxu0 %v812
    %1363 = vmatpush1.msra.mxu0 %v811
    %1364 = vmatprep.subr.mxu0 0.0
    %1365 = vmatpush1.msra.mxu0 0.0
    %1366 = vmatprep.subr.mxu0 0.0
    %1367 = vmatpush1.msra.mxu0 0.0
    %1368 = vmatprep.subr.mxu0 0.0
    %1369 = vmatpush1.msra.mxu0 0.0
    %1370 = vmatprep.subr.mxu0 0.0
    %1371 = vmatpush1.msra.mxu0 0.0
    %1372 = vmatprep.subr.mxu0 0.0
    %1373 = vmatpush1.msra.mxu0 0.0
    %1374 = vmatprep.subr.mxu0 0.0
    %1375 = vmatpush1.msra.mxu0 0.0
    %1376 = vmatprep.subr.mxu0 0.0
    %1377 = vmatpush1.msra.mxu0 0.0
    %1378 = vmatprep.subr.mxu0 0.0
    %1379 = vmatpush1.msra.mxu0 0.0
    %1380 = vmatprep.subr.mxu0 0.0
    %1381 = vmatpush1.msra.mxu0 0.0
    %1382 = vmatprep.subr.mxu0 0.0
    %1383 = vmatpush1.msra.mxu0 0.0
    %1384 = vmatprep.subr.mxu0 0.0
    %1385 = vmatpush1.msra.mxu0 0.0
    %1386 = vmatprep.subr.mxu0 0.0
    %1387 = vmatpush1.msra.mxu0 0.0
    %1388 = vmatprep.subr.mxu0 0.0
    %1389 = vmatpush1.msra.mxu0 0.0
    %1390 = vmatprep.subr.mxu0 0.0
    %1391 = vmatpush1.msra.mxu0 0.0
    %1392 = vmatprep.subr.mxu0 0.0
    %1393 = vmatpush1.msra.mxu0 0.0
    %1394 = vmatprep.subr.mxu0 0.0
    %1395 = vmatpush1.msra.mxu0 0.0
    %1396 = vmatprep.mubr.f32.mxu0 0.0
    %1397 = vmatmul.mubr.f32.gmra.mrb[0].mxu0 %v140
    %v1398 = vpop.f32.mrb[0].mxu0
    %v1399 = vadd.f32 %v1328, %v1398
    %v1400 = vpop.f32.mrb[0].mxu0
    %v1401 = vadd.f32 %v1330, %v1400
    %1402 = vdwg.mxu0
    %vm1403 = vcmp.gt.f32.partialorder %v1115, 0.0
    %vm1404 = vcmp.gt.f32.partialorder %v1117, 0.0
    %vm1405 = vcmp.gt.f32.partialorder %v1399, 0.0
    %vm1406 = vcmp.gt.f32.partialorder %v1401, 0.0
    %v1407 = vmul.f32 %v1115, 0.2
    %v1408 = vmul.f32 %v1117, 0.2
    %v1409 = vmul.f32 %v1399, 0.2
    %v1410 = vmul.f32 %v1401, 0.2
    %v1411 = vsel %vm1403, %v1115, %v1407
    %v1412 = vsel %vm1404, %v1117, %v1408
    %v1413 = vsel %vm1405, %v1399, %v1409
    %v1414 = vsel %vm1406, %v1401, %v1410
    %v1415 = vld [vmem:[#allocation5] sm:$0xff]
    %v1416 = vld [vmem:[#allocation5 + $0x8] sm:$0xff]
    %v1417 = vld [vmem:[#allocation5 + $0x10] sm:$0xff]
    %v1418 = vld [vmem:[#allocation5 + $0x18] sm:$0xff]
    %v1419 = vld [vmem:[#allocation5 + $0x20] sm:$0xff]
    %v1420 = vld [vmem:[#allocation5 + $0x28] sm:$0xff]
    %v1421 = vld [vmem:[#allocation5 + $0x30] sm:$0xff]
    %v1422 = vld [vmem:[#allocation5 + $0x38] sm:$0xff]
    %v1423 = vld [vmem:[#allocation5 + $0x40] sm:$0xff]
    %v1424 = vld [vmem:[#allocation5 + $0x48] sm:$0xff]
    %v1425 = vld [vmem:[#allocation5 + $0x50] sm:$0xff]
    %v1426 = vld [vmem:[#allocation5 + $0x58] sm:$0xff]
    %v1427 = vld [vmem:[#allocation5 + $0x60] sm:$0xff]
    %v1428 = vld [vmem:[#allocation5 + $0x68] sm:$0xff]
    %v1429 = vld [vmem:[#allocation5 + $0x70] sm:$0xff]
    %v1430 = vld [vmem:[#allocation5 + $0x78] sm:$0xff]
    %v1431 = vld [vmem:[#allocation5 + $0x80] sm:$0xff]
    %v1432 = vld [vmem:[#allocation5 + $0x88] sm:$0xff]
    %v1433 = vld [vmem:[#allocation5 + $0x90] sm:$0xff]
    %v1434 = vld [vmem:[#allocation5 + $0x98] sm:$0xff]
    %v1435 = vld [vmem:[#allocation5 + $0xa0] sm:$0xff]
    %v1436 = vld [vmem:[#allocation5 + $0xa8] sm:$0xff]
    %v1437 = vld [vmem:[#allocation5 + $0xb0] sm:$0xff]
    %v1438 = vld [vmem:[#allocation5 + $0xb8] sm:$0xff]
    %v1439 = vld [vmem:[#allocation5 + $0xc0] sm:$0xff]
    %v1440 = vld [vmem:[#allocation5 + $0xc8] sm:$0xff]
    %v1441 = vld [vmem:[#allocation5 + $0xd0] sm:$0xff]
    %v1442 = vld [vmem:[#allocation5 + $0xd8] sm:$0xff]
    %v1443 = vld [vmem:[#allocation5 + $0xe0] sm:$0xff]
    %v1444 = vld [vmem:[#allocation5 + $0xe8] sm:$0xff]
    %v1445 = vld [vmem:[#allocation5 + $0xf0] sm:$0xff]
    %v1446 = vld [vmem:[#allocation5 + $0xf8] sm:$0xff]
    %v1447 = vld [vmem:[#allocation5 + $0x100] sm:$0xff]
    %v1448 = vld [vmem:[#allocation5 + $0x108] sm:$0xff]
    %v1449 = vld [vmem:[#allocation5 + $0x110] sm:$0xff]
    %v1450 = vld [vmem:[#allocation5 + $0x118] sm:$0xff]
    %v1451 = vld [vmem:[#allocation5 + $0x120] sm:$0xff]
    %v1452 = vld [vmem:[#allocation5 + $0x128] sm:$0xff]
    %v1453 = vld [vmem:[#allocation5 + $0x130] sm:$0xff]
    %v1454 = vld [vmem:[#allocation5 + $0x138] sm:$0xff]
    %v1455 = vld [vmem:[#allocation5 + $0x140] sm:$0xff]
    %v1456 = vld [vmem:[#allocation5 + $0x148] sm:$0xff]
    %v1457 = vld [vmem:[#allocation5 + $0x150] sm:$0xff]
    %v1458 = vld [vmem:[#allocation5 + $0x158] sm:$0xff]
    %v1459 = vld [vmem:[#allocation5 + $0x160] sm:$0xff]
    %v1460 = vld [vmem:[#allocation5 + $0x168] sm:$0xff]
    %v1461 = vld [vmem:[#allocation5 + $0x170] sm:$0xff]
    %v1462 = vld [vmem:[#allocation5 + $0x178] sm:$0xff]
    %v1463 = vld [vmem:[#allocation5 + $0x180] sm:$0xff]
    %v1464 = vld [vmem:[#allocation5 + $0x188] sm:$0xff]
    %v1465 = vld [vmem:[#allocation5 + $0x190] sm:$0xff]
    %v1466 = vld [vmem:[#allocation5 + $0x198] sm:$0xff]
    %v1467 = vld [vmem:[#allocation5 + $0x1a0] sm:$0xff]
    %v1468 = vld [vmem:[#allocation5 + $0x1a8] sm:$0xff]
    %v1469 = vld [vmem:[#allocation5 + $0x1b0] sm:$0xff]
    %v1470 = vld [vmem:[#allocation5 + $0x1b8] sm:$0xff]
    %v1471 = vld [vmem:[#allocation5 + $0x1c0] sm:$0xff]
    %v1472 = vld [vmem:[#allocation5 + $0x1c8] sm:$0xff]
    %v1473 = vld [vmem:[#allocation5 + $0x1d0] sm:$0xff]
    %v1474 = vld [vmem:[#allocation5 + $0x1d8] sm:$0xff]
    %v1475 = vld [vmem:[#allocation5 + $0x1e0] sm:$0xff]
    %v1476 = vld [vmem:[#allocation5 + $0x1e8] sm:$0xff]
    %v1477 = vld [vmem:[#allocation5 + $0x1f0] sm:$0xff]
    %v1478 = vld [vmem:[#allocation5 + $0x1f8] sm:$0xff]
    %v1479 = vld [vmem:[#allocation5 + $0x200] sm:$0xff]
    %v1480 = vld [vmem:[#allocation5 + $0x208] sm:$0xff]
    %v1481 = vld [vmem:[#allocation5 + $0x210] sm:$0xff]
    %v1482 = vld [vmem:[#allocation5 + $0x218] sm:$0xff]
    %v1483 = vld [vmem:[#allocation5 + $0x220] sm:$0xff]
    %v1484 = vld [vmem:[#allocation5 + $0x228] sm:$0xff]
    %v1485 = vld [vmem:[#allocation5 + $0x230] sm:$0xff]
    %v1486 = vld [vmem:[#allocation5 + $0x238] sm:$0xff]
    %v1487 = vld [vmem:[#allocation5 + $0x240] sm:$0xff]
    %v1488 = vld [vmem:[#allocation5 + $0x248] sm:$0xff]
    %v1489 = vld [vmem:[#allocation5 + $0x250] sm:$0xff]
    %v1490 = vld [vmem:[#allocation5 + $0x258] sm:$0xff]
    %v1491 = vld [vmem:[#allocation5 + $0x260] sm:$0xff]
    %v1492 = vld [vmem:[#allocation5 + $0x268] sm:$0xff]
    %v1493 = vld [vmem:[#allocation5 + $0x270] sm:$0xff]
    %v1494 = vld [vmem:[#allocation5 + $0x278] sm:$0xff]
    %v1495 = vld [vmem:[#allocation5 + $0x280] sm:$0xff]
    %v1496 = vld [vmem:[#allocation5 + $0x288] sm:$0xff]
    %v1497 = vld [vmem:[#allocation5 + $0x290] sm:$0xff]
    %v1498 = vld [vmem:[#allocation5 + $0x298] sm:$0xff]
    %v1499 = vld [vmem:[#allocation5 + $0x2a0] sm:$0xff]
    %v1500 = vld [vmem:[#allocation5 + $0x2a8] sm:$0xff]
    %v1501 = vld [vmem:[#allocation5 + $0x2b0] sm:$0xff]
    %v1502 = vld [vmem:[#allocation5 + $0x2b8] sm:$0xff]
    %v1503 = vld [vmem:[#allocation5 + $0x2c0] sm:$0xff]
    %v1504 = vld [vmem:[#allocation5 + $0x2c8] sm:$0xff]
    %v1505 = vld [vmem:[#allocation5 + $0x2d0] sm:$0xff]
    %v1506 = vld [vmem:[#allocation5 + $0x2d8] sm:$0xff]
    %v1507 = vld [vmem:[#allocation5 + $0x2e0] sm:$0xff]
    %v1508 = vld [vmem:[#allocation5 + $0x2e8] sm:$0xff]
    %v1509 = vld [vmem:[#allocation5 + $0x2f0] sm:$0xff]
    %v1510 = vld [vmem:[#allocation5 + $0x2f8] sm:$0xff]
    %v1511 = vld [vmem:[#allocation5 + $0x300] sm:$0xff]
    %v1512 = vld [vmem:[#allocation5 + $0x308] sm:$0xff]
    %v1513 = vld [vmem:[#allocation5 + $0x310] sm:$0xff]
    %v1514 = vld [vmem:[#allocation5 + $0x318] sm:$0xff]
    %v1515 = vld [vmem:[#allocation5 + $0x320] sm:$0xff]
    %v1516 = vld [vmem:[#allocation5 + $0x328] sm:$0xff]
    %v1517 = vld [vmem:[#allocation5 + $0x330] sm:$0xff]
    %v1518 = vld [vmem:[#allocation5 + $0x338] sm:$0xff]
    %v1519 = vld [vmem:[#allocation5 + $0x340] sm:$0xff]
    %v1520 = vld [vmem:[#allocation5 + $0x348] sm:$0xff]
    %v1521 = vld [vmem:[#allocation5 + $0x350] sm:$0xff]
    %v1522 = vld [vmem:[#allocation5 + $0x358] sm:$0xff]
    %v1523 = vld [vmem:[#allocation5 + $0x360] sm:$0xff]
    %v1524 = vld [vmem:[#allocation5 + $0x368] sm:$0xff]
    %v1525 = vld [vmem:[#allocation5 + $0x370] sm:$0xff]
    %v1526 = vld [vmem:[#allocation5 + $0x378] sm:$0xff]
    %v1527 = vld [vmem:[#allocation5 + $0x380] sm:$0xff]
    %v1528 = vld [vmem:[#allocation5 + $0x388] sm:$0xff]
    %v1529 = vld [vmem:[#allocation5 + $0x390] sm:$0xff]
    %v1530 = vld [vmem:[#allocation5 + $0x398] sm:$0xff]
    %v1531 = vld [vmem:[#allocation5 + $0x3a0] sm:$0xff]
    %v1532 = vld [vmem:[#allocation5 + $0x3a8] sm:$0xff]
    %v1533 = vld [vmem:[#allocation5 + $0x3b0] sm:$0xff]
    %v1534 = vld [vmem:[#allocation5 + $0x3b8] sm:$0xff]
    %v1535 = vld [vmem:[#allocation5 + $0x3c0] sm:$0xff]
    %v1536 = vld [vmem:[#allocation5 + $0x3c8] sm:$0xff]
    %v1537 = vld [vmem:[#allocation5 + $0x3d0] sm:$0xff]
    %v1538 = vld [vmem:[#allocation5 + $0x3d8] sm:$0xff]
    %v1539 = vld [vmem:[#allocation5 + $0x3e0] sm:$0xff]
    %v1540 = vld [vmem:[#allocation5 + $0x3e8] sm:$0xff]
    %v1541 = vld [vmem:[#allocation5 + $0x3f0] sm:$0xff]
    %v1542 = vld [vmem:[#allocation5 + $0x3f8] sm:$0xff]
    %v1543 = vunpack.c.l.bf16 %v1415
    %v1544 = vunpack.c.h.bf16 %v1415
    %v1545 = vunpack.c.l.bf16 %v1416
    %v1546 = vunpack.c.h.bf16 %v1416
    %v1547 = vunpack.c.l.bf16 %v1417
    %v1548 = vunpack.c.h.bf16 %v1417
    %v1549 = vunpack.c.l.bf16 %v1418
    %v1550 = vunpack.c.h.bf16 %v1418
    %v1551 = vunpack.c.l.bf16 %v1419
    %v1552 = vunpack.c.h.bf16 %v1419
    %v1553 = vunpack.c.l.bf16 %v1420
    %v1554 = vunpack.c.h.bf16 %v1420
    %v1555 = vunpack.c.l.bf16 %v1421
    %v1556 = vunpack.c.h.bf16 %v1421
    %v1557 = vunpack.c.l.bf16 %v1422
    %v1558 = vunpack.c.h.bf16 %v1422
    %v1559 = vunpack.c.l.bf16 %v1423
    %v1560 = vunpack.c.h.bf16 %v1423
    %v1561 = vunpack.c.l.bf16 %v1424
    %v1562 = vunpack.c.h.bf16 %v1424
    %v1563 = vunpack.c.l.bf16 %v1425
    %v1564 = vunpack.c.h.bf16 %v1425
    %v1565 = vunpack.c.l.bf16 %v1426
    %v1566 = vunpack.c.h.bf16 %v1426
    %v1567 = vunpack.c.l.bf16 %v1427
    %v1568 = vunpack.c.h.bf16 %v1427
    %v1569 = vunpack.c.l.bf16 %v1428
    %v1570 = vunpack.c.h.bf16 %v1428
    %v1571 = vunpack.c.l.bf16 %v1429
    %v1572 = vunpack.c.h.bf16 %v1429
    %v1573 = vunpack.c.l.bf16 %v1430
    %v1574 = vunpack.c.h.bf16 %v1430
    %v1575 = vunpack.c.l.bf16 %v1431
    %v1576 = vunpack.c.h.bf16 %v1431
    %v1577 = vunpack.c.l.bf16 %v1432
    %v1578 = vunpack.c.h.bf16 %v1432
    %v1579 = vunpack.c.l.bf16 %v1433
    %v1580 = vunpack.c.h.bf16 %v1433
    %v1581 = vunpack.c.l.bf16 %v1434
    %v1582 = vunpack.c.h.bf16 %v1434
    %v1583 = vunpack.c.l.bf16 %v1435
    %v1584 = vunpack.c.h.bf16 %v1435
    %v1585 = vunpack.c.l.bf16 %v1436
    %v1586 = vunpack.c.h.bf16 %v1436
    %v1587 = vunpack.c.l.bf16 %v1437
    %v1588 = vunpack.c.h.bf16 %v1437
    %v1589 = vunpack.c.l.bf16 %v1438
    %v1590 = vunpack.c.h.bf16 %v1438
    %v1591 = vunpack.c.l.bf16 %v1439
    %v1592 = vunpack.c.h.bf16 %v1439
    %v1593 = vunpack.c.l.bf16 %v1440
    %v1594 = vunpack.c.h.bf16 %v1440
    %v1595 = vunpack.c.l.bf16 %v1441
    %v1596 = vunpack.c.h.bf16 %v1441
    %v1597 = vunpack.c.l.bf16 %v1442
    %v1598 = vunpack.c.h.bf16 %v1442
    %v1599 = vunpack.c.l.bf16 %v1443
    %v1600 = vunpack.c.h.bf16 %v1443
    %v1601 = vunpack.c.l.bf16 %v1444
    %v1602 = vunpack.c.h.bf16 %v1444
    %v1603 = vunpack.c.l.bf16 %v1445
    %v1604 = vunpack.c.h.bf16 %v1445
    %v1605 = vunpack.c.l.bf16 %v1446
    %v1606 = vunpack.c.h.bf16 %v1446
    %v1607 = vunpack.c.l.bf16 %v1447
    %v1608 = vunpack.c.h.bf16 %v1447
    %v1609 = vunpack.c.l.bf16 %v1448
    %v1610 = vunpack.c.h.bf16 %v1448
    %v1611 = vunpack.c.l.bf16 %v1449
    %v1612 = vunpack.c.h.bf16 %v1449
    %v1613 = vunpack.c.l.bf16 %v1450
    %v1614 = vunpack.c.h.bf16 %v1450
    %v1615 = vunpack.c.l.bf16 %v1451
    %v1616 = vunpack.c.h.bf16 %v1451
    %v1617 = vunpack.c.l.bf16 %v1452
    %v1618 = vunpack.c.h.bf16 %v1452
    %v1619 = vunpack.c.l.bf16 %v1453
    %v1620 = vunpack.c.h.bf16 %v1453
    %v1621 = vunpack.c.l.bf16 %v1454
    %v1622 = vunpack.c.h.bf16 %v1454
    %v1623 = vunpack.c.l.bf16 %v1455
    %v1624 = vunpack.c.h.bf16 %v1455
    %v1625 = vunpack.c.l.bf16 %v1456
    %v1626 = vunpack.c.h.bf16 %v1456
    %v1627 = vunpack.c.l.bf16 %v1457
    %v1628 = vunpack.c.h.bf16 %v1457
    %v1629 = vunpack.c.l.bf16 %v1458
    %v1630 = vunpack.c.h.bf16 %v1458
    %v1631 = vunpack.c.l.bf16 %v1459
    %v1632 = vunpack.c.h.bf16 %v1459
    %v1633 = vunpack.c.l.bf16 %v1460
    %v1634 = vunpack.c.h.bf16 %v1460
    %v1635 = vunpack.c.l.bf16 %v1461
    %v1636 = vunpack.c.h.bf16 %v1461
    %v1637 = vunpack.c.l.bf16 %v1462
    %v1638 = vunpack.c.h.bf16 %v1462
    %v1639 = vunpack.c.l.bf16 %v1463
    %v1640 = vunpack.c.h.bf16 %v1463
    %v1641 = vunpack.c.l.bf16 %v1464
    %v1642 = vunpack.c.h.bf16 %v1464
    %v1643 = vunpack.c.l.bf16 %v1465
    %v1644 = vunpack.c.h.bf16 %v1465
    %v1645 = vunpack.c.l.bf16 %v1466
    %v1646 = vunpack.c.h.bf16 %v1466
    %v1647 = vunpack.c.l.bf16 %v1467
    %v1648 = vunpack.c.h.bf16 %v1467
    %v1649 = vunpack.c.l.bf16 %v1468
    %v1650 = vunpack.c.h.bf16 %v1468
    %v1651 = vunpack.c.l.bf16 %v1469
    %v1652 = vunpack.c.h.bf16 %v1469
    %v1653 = vunpack.c.l.bf16 %v1470
    %v1654 = vunpack.c.h.bf16 %v1470
    %v1655 = vunpack.c.l.bf16 %v1471
    %v1656 = vunpack.c.h.bf16 %v1471
    %v1657 = vunpack.c.l.bf16 %v1472
    %v1658 = vunpack.c.h.bf16 %v1472
    %v1659 = vunpack.c.l.bf16 %v1473
    %v1660 = vunpack.c.h.bf16 %v1473
    %v1661 = vunpack.c.l.bf16 %v1474
    %v1662 = vunpack.c.h.bf16 %v1474
    %v1663 = vunpack.c.l.bf16 %v1475
    %v1664 = vunpack.c.h.bf16 %v1475
    %v1665 = vunpack.c.l.bf16 %v1476
    %v1666 = vunpack.c.h.bf16 %v1476
    %v1667 = vunpack.c.l.bf16 %v1477
    %v1668 = vunpack.c.h.bf16 %v1477
    %v1669 = vunpack.c.l.bf16 %v1478
    %v1670 = vunpack.c.h.bf16 %v1478
    %v1671 = vunpack.c.l.bf16 %v1479
    %v1672 = vunpack.c.h.bf16 %v1479
    %v1673 = vunpack.c.l.bf16 %v1480
    %v1674 = vunpack.c.h.bf16 %v1480
    %v1675 = vunpack.c.l.bf16 %v1481
    %v1676 = vunpack.c.h.bf16 %v1481
    %v1677 = vunpack.c.l.bf16 %v1482
    %v1678 = vunpack.c.h.bf16 %v1482
    %v1679 = vunpack.c.l.bf16 %v1483
    %v1680 = vunpack.c.h.bf16 %v1483
    %v1681 = vunpack.c.l.bf16 %v1484
    %v1682 = vunpack.c.h.bf16 %v1484
    %v1683 = vunpack.c.l.bf16 %v1485
    %v1684 = vunpack.c.h.bf16 %v1485
    %v1685 = vunpack.c.l.bf16 %v1486
    %v1686 = vunpack.c.h.bf16 %v1486
    %v1687 = vunpack.c.l.bf16 %v1487
    %v1688 = vunpack.c.h.bf16 %v1487
    %v1689 = vunpack.c.l.bf16 %v1488
    %v1690 = vunpack.c.h.bf16 %v1488
    %v1691 = vunpack.c.l.bf16 %v1489
    %v1692 = vunpack.c.h.bf16 %v1489
    %v1693 = vunpack.c.l.bf16 %v1490
    %v1694 = vunpack.c.h.bf16 %v1490
    %v1695 = vunpack.c.l.bf16 %v1491
    %v1696 = vunpack.c.h.bf16 %v1491
    %v1697 = vunpack.c.l.bf16 %v1492
    %v1698 = vunpack.c.h.bf16 %v1492
    %v1699 = vunpack.c.l.bf16 %v1493
    %v1700 = vunpack.c.h.bf16 %v1493
    %v1701 = vunpack.c.l.bf16 %v1494
    %v1702 = vunpack.c.h.bf16 %v1494
    %v1703 = vunpack.c.l.bf16 %v1495
    %v1704 = vunpack.c.h.bf16 %v1495
    %v1705 = vunpack.c.l.bf16 %v1496
    %v1706 = vunpack.c.h.bf16 %v1496
    %v1707 = vunpack.c.l.bf16 %v1497
    %v1708 = vunpack.c.h.bf16 %v1497
    %v1709 = vunpack.c.l.bf16 %v1498
    %v1710 = vunpack.c.h.bf16 %v1498
    %v1711 = vunpack.c.l.bf16 %v1499
    %v1712 = vunpack.c.h.bf16 %v1499
    %v1713 = vunpack.c.l.bf16 %v1500
    %v1714 = vunpack.c.h.bf16 %v1500
    %v1715 = vunpack.c.l.bf16 %v1501
    %v1716 = vunpack.c.h.bf16 %v1501
    %v1717 = vunpack.c.l.bf16 %v1502
    %v1718 = vunpack.c.h.bf16 %v1502
    %v1719 = vunpack.c.l.bf16 %v1503
    %v1720 = vunpack.c.h.bf16 %v1503
    %v1721 = vunpack.c.l.bf16 %v1504
    %v1722 = vunpack.c.h.bf16 %v1504
    %v1723 = vunpack.c.l.bf16 %v1505
    %v1724 = vunpack.c.h.bf16 %v1505
    %v1725 = vunpack.c.l.bf16 %v1506
    %v1726 = vunpack.c.h.bf16 %v1506
    %v1727 = vunpack.c.l.bf16 %v1507
    %v1728 = vunpack.c.h.bf16 %v1507
    %v1729 = vunpack.c.l.bf16 %v1508
    %v1730 = vunpack.c.h.bf16 %v1508
    %v1731 = vunpack.c.l.bf16 %v1509
    %v1732 = vunpack.c.h.bf16 %v1509
    %v1733 = vunpack.c.l.bf16 %v1510
    %v1734 = vunpack.c.h.bf16 %v1510
    %v1735 = vunpack.c.l.bf16 %v1511
    %v1736 = vunpack.c.h.bf16 %v1511
    %v1737 = vunpack.c.l.bf16 %v1512
    %v1738 = vunpack.c.h.bf16 %v1512
    %v1739 = vunpack.c.l.bf16 %v1513
    %v1740 = vunpack.c.h.bf16 %v1513
    %v1741 = vunpack.c.l.bf16 %v1514
    %v1742 = vunpack.c.h.bf16 %v1514
    %v1743 = vunpack.c.l.bf16 %v1515
    %v1744 = vunpack.c.h.bf16 %v1515
    %v1745 = vunpack.c.l.bf16 %v1516
    %v1746 = vunpack.c.h.bf16 %v1516
    %v1747 = vunpack.c.l.bf16 %v1517
    %v1748 = vunpack.c.h.bf16 %v1517
    %v1749 = vunpack.c.l.bf16 %v1518
    %v1750 = vunpack.c.h.bf16 %v1518
    %v1751 = vunpack.c.l.bf16 %v1519
    %v1752 = vunpack.c.h.bf16 %v1519
    %v1753 = vunpack.c.l.bf16 %v1520
    %v1754 = vunpack.c.h.bf16 %v1520
    %v1755 = vunpack.c.l.bf16 %v1521
    %v1756 = vunpack.c.h.bf16 %v1521
    %v1757 = vunpack.c.l.bf16 %v1522
    %v1758 = vunpack.c.h.bf16 %v1522
    %v1759 = vunpack.c.l.bf16 %v1523
    %v1760 = vunpack.c.h.bf16 %v1523
    %v1761 = vunpack.c.l.bf16 %v1524
    %v1762 = vunpack.c.h.bf16 %v1524
    %v1763 = vunpack.c.l.bf16 %v1525
    %v1764 = vunpack.c.h.bf16 %v1525
    %v1765 = vunpack.c.l.bf16 %v1526
    %v1766 = vunpack.c.h.bf16 %v1526
    %v1767 = vunpack.c.l.bf16 %v1527
    %v1768 = vunpack.c.h.bf16 %v1527
    %v1769 = vunpack.c.l.bf16 %v1528
    %v1770 = vunpack.c.h.bf16 %v1528
    %v1771 = vunpack.c.l.bf16 %v1529
    %v1772 = vunpack.c.h.bf16 %v1529
    %v1773 = vunpack.c.l.bf16 %v1530
    %v1774 = vunpack.c.h.bf16 %v1530
    %v1775 = vunpack.c.l.bf16 %v1531
    %v1776 = vunpack.c.h.bf16 %v1531
    %v1777 = vunpack.c.l.bf16 %v1532
    %v1778 = vunpack.c.h.bf16 %v1532
    %v1779 = vunpack.c.l.bf16 %v1533
    %v1780 = vunpack.c.h.bf16 %v1533
    %v1781 = vunpack.c.l.bf16 %v1534
    %v1782 = vunpack.c.h.bf16 %v1534
    %v1783 = vunpack.c.l.bf16 %v1535
    %v1784 = vunpack.c.h.bf16 %v1535
    %v1785 = vunpack.c.l.bf16 %v1536
    %v1786 = vunpack.c.h.bf16 %v1536
    %v1787 = vunpack.c.l.bf16 %v1537
    %v1788 = vunpack.c.h.bf16 %v1537
    %v1789 = vunpack.c.l.bf16 %v1538
    %v1790 = vunpack.c.h.bf16 %v1538
    %v1791 = vunpack.c.l.bf16 %v1539
    %v1792 = vunpack.c.h.bf16 %v1539
    %v1793 = vunpack.c.l.bf16 %v1540
    %v1794 = vunpack.c.h.bf16 %v1540
    %v1795 = vunpack.c.l.bf16 %v1541
    %v1796 = vunpack.c.h.bf16 %v1541
    %v1797 = vunpack.c.l.bf16 %v1542
    %v1798 = vunpack.c.h.bf16 %v1542
    %v1799 = vld [vmem:[%s5] sm:$0xf]
    %v1801 = vlaneseq
    %v1802 = vshrl.u32 %v1801, 7
    %v1803 = vsub.s32 0, %v1802
    %v1804 = vrot.slane %v1799, %v1803
    %v1805 = vlaneseq
    %v1806 = vshrl.u32 %v1805, 7
    %v1807 = vsub.s32 1, %v1806
    %v1808 = vrot.slane %v1799, %v1807
    %v1809 = vlaneseq
    %v1810 = vshrl.u32 %v1809, 7
    %v1811 = vsub.s32 2, %v1810
    %v1812 = vrot.slane %v1799, %v1811
    %v1813 = vlaneseq
    %v1814 = vshrl.u32 %v1813, 7
    %v1815 = vsub.s32 3, %v1814
    %v1816 = vrot.slane %v1799, %v1815
    %1821 = vmatprep.subr.mxu0 %v1544
    %1822 = vmatpush1.msra.mxu0 %v1543
    %1823 = vmatprep.subr.mxu0 %v1548
    %1824 = vmatpush1.msra.mxu0 %v1547
    %1825 = vmatprep.subr.mxu0 %v1552
    %1826 = vmatpush1.msra.mxu0 %v1551
    %1827 = vmatprep.subr.mxu0 %v1556
    %1828 = vmatpush1.msra.mxu0 %v1555
    %1829 = vmatprep.subr.mxu0 %v1560
    %1830 = vmatpush1.msra.mxu0 %v1559
    %1831 = vmatprep.subr.mxu0 %v1564
    %1832 = vmatpush1.msra.mxu0 %v1563
    %1833 = vmatprep.subr.mxu0 %v1568
    %1834 = vmatpush1.msra.mxu0 %v1567
    %1835 = vmatprep.subr.mxu0 %v1572
    %1836 = vmatpush1.msra.mxu0 %v1571
    %1837 = vmatprep.subr.mxu0 %v1576
    %1838 = vmatpush1.msra.mxu0 %v1575
    %1839 = vmatprep.subr.mxu0 %v1580
    %1840 = vmatpush1.msra.mxu0 %v1579
    %1841 = vmatprep.subr.mxu0 %v1584
    %1842 = vmatpush1.msra.mxu0 %v1583
    %1843 = vmatprep.subr.mxu0 %v1588
    %1844 = vmatpush1.msra.mxu0 %v1587
    %1845 = vmatprep.subr.mxu0 %v1592
    %1846 = vmatpush1.msra.mxu0 %v1591
    %1847 = vmatprep.subr.mxu0 %v1596
    %1848 = vmatpush1.msra.mxu0 %v1595
    %1849 = vmatprep.subr.mxu0 %v1600
    %1850 = vmatpush1.msra.mxu0 %v1599
    %1851 = vmatprep.subr.mxu0 %v1604
    %1852 = vmatpush1.msra.mxu0 %v1603
    %1853 = vmatprep.subr.mxu0 %v1608
    %1854 = vmatpush1.msra.mxu0 %v1607
    %1855 = vmatprep.subr.mxu0 %v1612
    %1856 = vmatpush1.msra.mxu0 %v1611
    %1857 = vmatprep.subr.mxu0 %v1616
    %1858 = vmatpush1.msra.mxu0 %v1615
    %1859 = vmatprep.subr.mxu0 %v1620
    %1860 = vmatpush1.msra.mxu0 %v1619
    %1861 = vmatprep.subr.mxu0 %v1624
    %1862 = vmatpush1.msra.mxu0 %v1623
    %1863 = vmatprep.subr.mxu0 %v1628
    %1864 = vmatpush1.msra.mxu0 %v1627
    %1865 = vmatprep.subr.mxu0 %v1632
    %1866 = vmatpush1.msra.mxu0 %v1631
    %1867 = vmatprep.subr.mxu0 %v1636
    %1868 = vmatpush1.msra.mxu0 %v1635
    %1869 = vmatprep.subr.mxu0 %v1640
    %1870 = vmatpush1.msra.mxu0 %v1639
    %1871 = vmatprep.subr.mxu0 %v1644
    %1872 = vmatpush1.msra.mxu0 %v1643
    %1873 = vmatprep.subr.mxu0 %v1648
    %1874 = vmatpush1.msra.mxu0 %v1647
    %1875 = vmatprep.subr.mxu0 %v1652
    %1876 = vmatpush1.msra.mxu0 %v1651
    %1877 = vmatprep.subr.mxu0 %v1656
    %1878 = vmatpush1.msra.mxu0 %v1655
    %1879 = vmatprep.subr.mxu0 %v1660
    %1880 = vmatpush1.msra.mxu0 %v1659
    %1881 = vmatprep.subr.mxu0 %v1664
    %1882 = vmatpush1.msra.mxu0 %v1663
    %1883 = vmatprep.subr.mxu0 %v1668
    %1884 = vmatpush1.msra.mxu0 %v1667
    %1885 = vmatprep.mubr.f32.mxu0 %v1412
    %1886 = vmatmul.mubr.f32.gmra.mrb[0].mxu0 %v1411
    %v1887 = vpop.f32.mrb[0].mxu0
    %v1888 = vadd.f32 %v1804, %v1887
    %v1889 = vpop.f32.mrb[0].mxu0
    %v1890 = vadd.f32 %v1808, %v1889
    %1891 = vdwg.mxu0
    %1892 = vmatprep.subr.mxu0 %v1672
    %1893 = vmatpush1.msra.mxu0 %v1671
    %1894 = vmatprep.subr.mxu0 %v1676
    %1895 = vmatpush1.msra.mxu0 %v1675
    %1896 = vmatprep.subr.mxu0 %v1680
    %1897 = vmatpush1.msra.mxu0 %v1679
    %1898 = vmatprep.subr.mxu0 %v1684
    %1899 = vmatpush1.msra.mxu0 %v1683
    %1900 = vmatprep.subr.mxu0 %v1688
    %1901 = vmatpush1.msra.mxu0 %v1687
    %1902 = vmatprep.subr.mxu0 %v1692
    %1903 = vmatpush1.msra.mxu0 %v1691
    %1904 = vmatprep.subr.mxu0 %v1696
    %1905 = vmatpush1.msra.mxu0 %v1695
    %1906 = vmatprep.subr.mxu0 %v1700
    %1907 = vmatpush1.msra.mxu0 %v1699
    %1908 = vmatprep.subr.mxu0 %v1704
    %1909 = vmatpush1.msra.mxu0 %v1703
    %1910 = vmatprep.subr.mxu0 %v1708
    %1911 = vmatpush1.msra.mxu0 %v1707
    %1912 = vmatprep.subr.mxu0 %v1712
    %1913 = vmatpush1.msra.mxu0 %v1711
    %1914 = vmatprep.subr.mxu0 %v1716
    %1915 = vmatpush1.msra.mxu0 %v1715
    %1916 = vmatprep.subr.mxu0 %v1720
    %1917 = vmatpush1.msra.mxu0 %v1719
    %1918 = vmatprep.subr.mxu0 %v1724
    %1919 = vmatpush1.msra.mxu0 %v1723
    %1920 = vmatprep.subr.mxu0 %v1728
    %1921 = vmatpush1.msra.mxu0 %v1727
    %1922 = vmatprep.subr.mxu0 %v1732
    %1923 = vmatpush1.msra.mxu0 %v1731
    %1924 = vmatprep.subr.mxu0 %v1736
    %1925 = vmatpush1.msra.mxu0 %v1735
    %1926 = vmatprep.subr.mxu0 %v1740
    %1927 = vmatpush1.msra.mxu0 %v1739
    %1928 = vmatprep.subr.mxu0 %v1744
    %1929 = vmatpush1.msra.mxu0 %v1743
    %1930 = vmatprep.subr.mxu0 %v1748
    %1931 = vmatpush1.msra.mxu0 %v1747
    %1932 = vmatprep.subr.mxu0 %v1752
    %1933 = vmatpush1.msra.mxu0 %v1751
    %1934 = vmatprep.subr.mxu0 %v1756
    %1935 = vmatpush1.msra.mxu0 %v1755
    %1936 = vmatprep.subr.mxu0 %v1760
    %1937 = vmatpush1.msra.mxu0 %v1759
    %1938 = vmatprep.subr.mxu0 %v1764
    %1939 = vmatpush1.msra.mxu0 %v1763
    %1940 = vmatprep.subr.mxu0 %v1768
    %1941 = vmatpush1.msra.mxu0 %v1767
    %1942 = vmatprep.subr.mxu0 %v1772
    %1943 = vmatpush1.msra.mxu0 %v1771
    %1944 = vmatprep.subr.mxu0 %v1776
    %1945 = vmatpush1.msra.mxu0 %v1775
    %1946 = vmatprep.subr.mxu0 %v1780
    %1947 = vmatpush1.msra.mxu0 %v1779
    %1948 = vmatprep.subr.mxu0 %v1784
    %1949 = vmatpush1.msra.mxu0 %v1783
    %1950 = vmatprep.subr.mxu0 %v1788
    %1951 = vmatpush1.msra.mxu0 %v1787
    %1952 = vmatprep.subr.mxu0 %v1792
    %1953 = vmatpush1.msra.mxu0 %v1791
    %1954 = vmatprep.subr.mxu0 %v1796
    %1955 = vmatpush1.msra.mxu0 %v1795
    %1956 = vmatprep.mubr.f32.mxu0 %v1414
    %1957 = vmatmul.mubr.f32.gmra.mrb[0].mxu0 %v1413
    %v1958 = vpop.f32.mrb[0].mxu0
    %v1959 = vadd.f32 %v1888, %v1958
    %v1960 = vpop.f32.mrb[0].mxu0
    %v1961 = vadd.f32 %v1890, %v1960
    %1962 = vdwg.mxu0
    %1963 = vmatprep.subr.mxu0 %v1546
    %1964 = vmatpush1.msra.mxu0 %v1545
    %1965 = vmatprep.subr.mxu0 %v1550
    %1966 = vmatpush1.msra.mxu0 %v1549
    %1967 = vmatprep.subr.mxu0 %v1554
    %1968 = vmatpush1.msra.mxu0 %v1553
    %1969 = vmatprep.subr.mxu0 %v1558
    %1970 = vmatpush1.msra.mxu0 %v1557
    %1971 = vmatprep.subr.mxu0 %v1562
    %1972 = vmatpush1.msra.mxu0 %v1561
    %1973 = vmatprep.subr.mxu0 %v1566
    %1974 = vmatpush1.msra.mxu0 %v1565
    %1975 = vmatprep.subr.mxu0 %v1570
    %1976 = vmatpush1.msra.mxu0 %v1569
    %1977 = vmatprep.subr.mxu0 %v1574
    %1978 = vmatpush1.msra.mxu0 %v1573
    %1979 = vmatprep.subr.mxu0 %v1578
    %1980 = vmatpush1.msra.mxu0 %v1577
    %1981 = vmatprep.subr.mxu0 %v1582
    %1982 = vmatpush1.msra.mxu0 %v1581
    %1983 = vmatprep.subr.mxu0 %v1586
    %1984 = vmatpush1.msra.mxu0 %v1585
    %1985 = vmatprep.subr.mxu0 %v1590
    %1986 = vmatpush1.msra.mxu0 %v1589
    %1987 = vmatprep.subr.mxu0 %v1594
    %1988 = vmatpush1.msra.mxu0 %v1593
    %1989 = vmatprep.subr.mxu0 %v1598
    %1990 = vmatpush1.msra.mxu0 %v1597
    %1991 = vmatprep.subr.mxu0 %v1602
    %1992 = vmatpush1.msra.mxu0 %v1601
    %1993 = vmatprep.subr.mxu0 %v1606
    %1994 = vmatpush1.msra.mxu0 %v1605
    %1995 = vmatprep.subr.mxu0 %v1610
    %1996 = vmatpush1.msra.mxu0 %v1609
    %1997 = vmatprep.subr.mxu0 %v1614
    %1998 = vmatpush1.msra.mxu0 %v1613
    %1999 = vmatprep.subr.mxu0 %v1618
    %2000 = vmatpush1.msra.mxu0 %v1617
    %2001 = vmatprep.subr.mxu0 %v1622
    %2002 = vmatpush1.msra.mxu0 %v1621
    %2003 = vmatprep.subr.mxu0 %v1626
    %2004 = vmatpush1.msra.mxu0 %v1625
    %2005 = vmatprep.subr.mxu0 %v1630
    %2006 = vmatpush1.msra.mxu0 %v1629
    %2007 = vmatprep.subr.mxu0 %v1634
    %2008 = vmatpush1.msra.mxu0 %v1633
    %2009 = vmatprep.subr.mxu0 %v1638
    %2010 = vmatpush1.msra.mxu0 %v1637
    %2011 = vmatprep.subr.mxu0 %v1642
    %2012 = vmatpush1.msra.mxu0 %v1641
    %2013 = vmatprep.subr.mxu0 %v1646
    %2014 = vmatpush1.msra.mxu0 %v1645
    %2015 = vmatprep.subr.mxu0 %v1650
    %2016 = vmatpush1.msra.mxu0 %v1649
    %2017 = vmatprep.subr.mxu0 %v1654
    %2018 = vmatpush1.msra.mxu0 %v1653
    %2019 = vmatprep.subr.mxu0 %v1658
    %2020 = vmatpush1.msra.mxu0 %v1657
    %2021 = vmatprep.subr.mxu0 %v1662
    %2022 = vmatpush1.msra.mxu0 %v1661
    %2023 = vmatprep.subr.mxu0 %v1666
    %2024 = vmatpush1.msra.mxu0 %v1665
    %2025 = vmatprep.subr.mxu0 %v1670
    %2026 = vmatpush1.msra.mxu0 %v1669
    %2027 = vmatprep.mubr.f32.mxu0 %v1412
    %2028 = vmatmul.mubr.f32.gmra.mrb[0].mxu0 %v1411
    %v2029 = vpop.f32.mrb[0].mxu0
    %v2030 = vadd.f32 %v1812, %v2029
    %v2031 = vpop.f32.mrb[0].mxu0
    %v2032 = vadd.f32 %v1816, %v2031
    %2033 = vdwg.mxu0
    %2034 = vmatprep.subr.mxu0 %v1674
    %2035 = vmatpush1.msra.mxu0 %v1673
    %2036 = vmatprep.subr.mxu0 %v1678
    %2037 = vmatpush1.msra.mxu0 %v1677
    %2038 = vmatprep.subr.mxu0 %v1682
    %2039 = vmatpush1.msra.mxu0 %v1681
    %2040 = vmatprep.subr.mxu0 %v1686
    %2041 = vmatpush1.msra.mxu0 %v1685
    %2042 = vmatprep.subr.mxu0 %v1690
    %2043 = vmatpush1.msra.mxu0 %v1689
    %2044 = vmatprep.subr.mxu0 %v1694
    %2045 = vmatpush1.msra.mxu0 %v1693
    %2046 = vmatprep.subr.mxu0 %v1698
    %2047 = vmatpush1.msra.mxu0 %v1697
    %2048 = vmatprep.subr.mxu0 %v1702
    %2049 = vmatpush1.msra.mxu0 %v1701
    %2050 = vmatprep.subr.mxu0 %v1706
    %2051 = vmatpush1.msra.mxu0 %v1705
    %2052 = vmatprep.subr.mxu0 %v1710
    %2053 = vmatpush1.msra.mxu0 %v1709
    %2054 = vmatprep.subr.mxu0 %v1714
    %2055 = vmatpush1.msra.mxu0 %v1713
    %2056 = vmatprep.subr.mxu0 %v1718
    %2057 = vmatpush1.msra.mxu0 %v1717
    %2058 = vmatprep.subr.mxu0 %v1722
    %2059 = vmatpush1.msra.mxu0 %v1721
    %2060 = vmatprep.subr.mxu0 %v1726
    %2061 = vmatpush1.msra.mxu0 %v1725
    %2062 = vmatprep.subr.mxu0 %v1730
    %2063 = vmatpush1.msra.mxu0 %v1729
    %2064 = vmatprep.subr.mxu0 %v1734
    %2065 = vmatpush1.msra.mxu0 %v1733
    %2066 = vmatprep.subr.mxu0 %v1738
    %2067 = vmatpush1.msra.mxu0 %v1737
    %2068 = vmatprep.subr.mxu0 %v1742
    %2069 = vmatpush1.msra.mxu0 %v1741
    %2070 = vmatprep.subr.mxu0 %v1746
    %2071 = vmatpush1.msra.mxu0 %v1745
    %2072 = vmatprep.subr.mxu0 %v1750
    %2073 = vmatpush1.msra.mxu0 %v1749
    %2074 = vmatprep.subr.mxu0 %v1754
    %2075 = vmatpush1.msra.mxu0 %v1753
    %2076 = vmatprep.subr.mxu0 %v1758
    %2077 = vmatpush1.msra.mxu0 %v1757
    %2078 = vmatprep.subr.mxu0 %v1762
    %2079 = vmatpush1.msra.mxu0 %v1761
    %2080 = vmatprep.subr.mxu0 %v1766
    %2081 = vmatpush1.msra.mxu0 %v1765
    %2082 = vmatprep.subr.mxu0 %v1770
    %2083 = vmatpush1.msra.mxu0 %v1769
    %2084 = vmatprep.subr.mxu0 %v1774
    %2085 = vmatpush1.msra.mxu0 %v1773
    %2086 = vmatprep.subr.mxu0 %v1778
    %2087 = vmatpush1.msra.mxu0 %v1777
    %2088 = vmatprep.subr.mxu0 %v1782
    %2089 = vmatpush1.msra.mxu0 %v1781
    %2090 = vmatprep.subr.mxu0 %v1786
    %2091 = vmatpush1.msra.mxu0 %v1785
    %2092 = vmatprep.subr.mxu0 %v1790
    %2093 = vmatpush1.msra.mxu0 %v1789
    %2094 = vmatprep.subr.mxu0 %v1794
    %2095 = vmatpush1.msra.mxu0 %v1793
    %2096 = vmatprep.subr.mxu0 %v1798
    %2097 = vmatpush1.msra.mxu0 %v1797
    %2098 = vmatprep.mubr.f32.mxu0 %v1414
    %2099 = vmatmul.mubr.f32.gmra.mrb[0].mxu0 %v1413
    %v2100 = vpop.f32.mrb[0].mxu0
    %v2101 = vadd.f32 %v2030, %v2100
    %v2102 = vpop.f32.mrb[0].mxu0
    %v2103 = vadd.f32 %v2032, %v2102
    %2104 = vdwg.mxu0
    %vm2105 = vcmp.gt.f32.partialorder %v1959, 0.0
    %vm2106 = vcmp.gt.f32.partialorder %v1961, 0.0
    %vm2107 = vcmp.gt.f32.partialorder %v2101, 0.0
    %vm2108 = vcmp.gt.f32.partialorder %v2103, 0.0
    %v2109 = vmul.f32 %v1959, 0.2
    %v2110 = vmul.f32 %v1961, 0.2
    %v2111 = vmul.f32 %v2101, 0.2
    %v2112 = vmul.f32 %v2103, 0.2
    %v2113 = vsel %vm2105, %v1959, %v2109
    %v2114 = vsel %vm2106, %v1961, %v2110
    %v2115 = vsel %vm2107, %v2101, %v2111
    %v2116 = vsel %vm2108, %v2103, %v2112
    %v2117 = vld [vmem:[#allocation7] sm:$0xff]
    %v2118 = vld [vmem:[#allocation7 + $0x8] sm:$0xff]
    %v2119 = vld [vmem:[#allocation7 + $0x10] sm:$0xff]
    %v2120 = vld [vmem:[#allocation7 + $0x18] sm:$0xff]
    %v2121 = vld [vmem:[#allocation7 + $0x20] sm:$0xff]
    %v2122 = vld [vmem:[#allocation7 + $0x28] sm:$0xff]
    %v2123 = vld [vmem:[#allocation7 + $0x30] sm:$0xff]
    %v2124 = vld [vmem:[#allocation7 + $0x38] sm:$0xff]
    %v2125 = vld [vmem:[#allocation7 + $0x40] sm:$0xff]
    %v2126 = vld [vmem:[#allocation7 + $0x48] sm:$0xff]
    %v2127 = vld [vmem:[#allocation7 + $0x50] sm:$0xff]
    %v2128 = vld [vmem:[#allocation7 + $0x58] sm:$0xff]
    %v2129 = vld [vmem:[#allocation7 + $0x60] sm:$0xff]
    %v2130 = vld [vmem:[#allocation7 + $0x68] sm:$0xff]
    %v2131 = vld [vmem:[#allocation7 + $0x70] sm:$0xff]
    %v2132 = vld [vmem:[#allocation7 + $0x78] sm:$0xff]
    %v2133 = vld [vmem:[#allocation7 + $0x80] sm:$0xff]
    %v2134 = vld [vmem:[#allocation7 + $0x88] sm:$0xff]
    %v2135 = vld [vmem:[#allocation7 + $0x90] sm:$0xff]
    %v2136 = vld [vmem:[#allocation7 + $0x98] sm:$0xff]
    %v2137 = vld [vmem:[#allocation7 + $0xa0] sm:$0xff]
    %v2138 = vld [vmem:[#allocation7 + $0xa8] sm:$0xff]
    %v2139 = vld [vmem:[#allocation7 + $0xb0] sm:$0xff]
    %v2140 = vld [vmem:[#allocation7 + $0xb8] sm:$0xff]
    %v2141 = vld [vmem:[#allocation7 + $0xc0] sm:$0xff]
    %v2142 = vld [vmem:[#allocation7 + $0xc8] sm:$0xff]
    %v2143 = vld [vmem:[#allocation7 + $0xd0] sm:$0xff]
    %v2144 = vld [vmem:[#allocation7 + $0xd8] sm:$0xff]
    %v2145 = vld [vmem:[#allocation7 + $0xe0] sm:$0xff]
    %v2146 = vld [vmem:[#allocation7 + $0xe8] sm:$0xff]
    %v2147 = vld [vmem:[#allocation7 + $0xf0] sm:$0xff]
    %v2148 = vld [vmem:[#allocation7 + $0xf8] sm:$0xff]
    %v2149 = vld [vmem:[#allocation7 + $0x100] sm:$0xff]
    %v2150 = vld [vmem:[#allocation7 + $0x108] sm:$0xff]
    %v2151 = vld [vmem:[#allocation7 + $0x110] sm:$0xff]
    %v2152 = vld [vmem:[#allocation7 + $0x118] sm:$0xff]
    %v2153 = vld [vmem:[#allocation7 + $0x120] sm:$0xff]
    %v2154 = vld [vmem:[#allocation7 + $0x128] sm:$0xff]
    %v2155 = vld [vmem:[#allocation7 + $0x130] sm:$0xff]
    %v2156 = vld [vmem:[#allocation7 + $0x138] sm:$0xff]
    %v2157 = vld [vmem:[#allocation7 + $0x140] sm:$0xff]
    %v2158 = vld [vmem:[#allocation7 + $0x148] sm:$0xff]
    %v2159 = vld [vmem:[#allocation7 + $0x150] sm:$0xff]
    %v2160 = vld [vmem:[#allocation7 + $0x158] sm:$0xff]
    %v2161 = vld [vmem:[#allocation7 + $0x160] sm:$0xff]
    %v2162 = vld [vmem:[#allocation7 + $0x168] sm:$0xff]
    %v2163 = vld [vmem:[#allocation7 + $0x170] sm:$0xff]
    %v2164 = vld [vmem:[#allocation7 + $0x178] sm:$0xff]
    %v2165 = vld [vmem:[#allocation7 + $0x180] sm:$0xff]
    %v2166 = vld [vmem:[#allocation7 + $0x188] sm:$0xff]
    %v2167 = vld [vmem:[#allocation7 + $0x190] sm:$0xff]
    %v2168 = vld [vmem:[#allocation7 + $0x198] sm:$0xff]
    %v2169 = vld [vmem:[#allocation7 + $0x1a0] sm:$0xff]
    %v2170 = vld [vmem:[#allocation7 + $0x1a8] sm:$0xff]
    %v2171 = vld [vmem:[#allocation7 + $0x1b0] sm:$0xff]
    %v2172 = vld [vmem:[#allocation7 + $0x1b8] sm:$0xff]
    %v2173 = vld [vmem:[#allocation7 + $0x1c0] sm:$0xff]
    %v2174 = vld [vmem:[#allocation7 + $0x1c8] sm:$0xff]
    %v2175 = vld [vmem:[#allocation7 + $0x1d0] sm:$0xff]
    %v2176 = vld [vmem:[#allocation7 + $0x1d8] sm:$0xff]
    %v2177 = vld [vmem:[#allocation7 + $0x1e0] sm:$0xff]
    %v2178 = vld [vmem:[#allocation7 + $0x1e8] sm:$0xff]
    %v2179 = vld [vmem:[#allocation7 + $0x1f0] sm:$0xff]
    %v2180 = vld [vmem:[#allocation7 + $0x1f8] sm:$0xff]
    %v2181 = vld [vmem:[#allocation7 + $0x200] sm:$0xff]
    %v2182 = vld [vmem:[#allocation7 + $0x208] sm:$0xff]
    %v2183 = vld [vmem:[#allocation7 + $0x210] sm:$0xff]
    %v2184 = vld [vmem:[#allocation7 + $0x218] sm:$0xff]
    %v2185 = vld [vmem:[#allocation7 + $0x220] sm:$0xff]
    %v2186 = vld [vmem:[#allocation7 + $0x228] sm:$0xff]
    %v2187 = vld [vmem:[#allocation7 + $0x230] sm:$0xff]
    %v2188 = vld [vmem:[#allocation7 + $0x238] sm:$0xff]
    %v2189 = vld [vmem:[#allocation7 + $0x240] sm:$0xff]
    %v2190 = vld [vmem:[#allocation7 + $0x248] sm:$0xff]
    %v2191 = vld [vmem:[#allocation7 + $0x250] sm:$0xff]
    %v2192 = vld [vmem:[#allocation7 + $0x258] sm:$0xff]
    %v2193 = vld [vmem:[#allocation7 + $0x260] sm:$0xff]
    %v2194 = vld [vmem:[#allocation7 + $0x268] sm:$0xff]
    %v2195 = vld [vmem:[#allocation7 + $0x270] sm:$0xff]
    %v2196 = vld [vmem:[#allocation7 + $0x278] sm:$0xff]
    %v2197 = vld [vmem:[#allocation7 + $0x280] sm:$0xff]
    %v2198 = vld [vmem:[#allocation7 + $0x288] sm:$0xff]
    %v2199 = vld [vmem:[#allocation7 + $0x290] sm:$0xff]
    %v2200 = vld [vmem:[#allocation7 + $0x298] sm:$0xff]
    %v2201 = vld [vmem:[#allocation7 + $0x2a0] sm:$0xff]
    %v2202 = vld [vmem:[#allocation7 + $0x2a8] sm:$0xff]
    %v2203 = vld [vmem:[#allocation7 + $0x2b0] sm:$0xff]
    %v2204 = vld [vmem:[#allocation7 + $0x2b8] sm:$0xff]
    %v2205 = vld [vmem:[#allocation7 + $0x2c0] sm:$0xff]
    %v2206 = vld [vmem:[#allocation7 + $0x2c8] sm:$0xff]
    %v2207 = vld [vmem:[#allocation7 + $0x2d0] sm:$0xff]
    %v2208 = vld [vmem:[#allocation7 + $0x2d8] sm:$0xff]
    %v2209 = vld [vmem:[#allocation7 + $0x2e0] sm:$0xff]
    %v2210 = vld [vmem:[#allocation7 + $0x2e8] sm:$0xff]
    %v2211 = vld [vmem:[#allocation7 + $0x2f0] sm:$0xff]
    %v2212 = vld [vmem:[#allocation7 + $0x2f8] sm:$0xff]
    %v2213 = vld [vmem:[#allocation7 + $0x300] sm:$0xff]
    %v2214 = vld [vmem:[#allocation7 + $0x308] sm:$0xff]
    %v2215 = vld [vmem:[#allocation7 + $0x310] sm:$0xff]
    %v2216 = vld [vmem:[#allocation7 + $0x318] sm:$0xff]
    %v2217 = vld [vmem:[#allocation7 + $0x320] sm:$0xff]
    %v2218 = vld [vmem:[#allocation7 + $0x328] sm:$0xff]
    %v2219 = vld [vmem:[#allocation7 + $0x330] sm:$0xff]
    %v2220 = vld [vmem:[#allocation7 + $0x338] sm:$0xff]
    %v2221 = vld [vmem:[#allocation7 + $0x340] sm:$0xff]
    %v2222 = vld [vmem:[#allocation7 + $0x348] sm:$0xff]
    %v2223 = vld [vmem:[#allocation7 + $0x350] sm:$0xff]
    %v2224 = vld [vmem:[#allocation7 + $0x358] sm:$0xff]
    %v2225 = vld [vmem:[#allocation7 + $0x360] sm:$0xff]
    %v2226 = vld [vmem:[#allocation7 + $0x368] sm:$0xff]
    %v2227 = vld [vmem:[#allocation7 + $0x370] sm:$0xff]
    %v2228 = vld [vmem:[#allocation7 + $0x378] sm:$0xff]
    %v2229 = vld [vmem:[#allocation7 + $0x380] sm:$0xff]
    %v2230 = vld [vmem:[#allocation7 + $0x388] sm:$0xff]
    %v2231 = vld [vmem:[#allocation7 + $0x390] sm:$0xff]
    %v2232 = vld [vmem:[#allocation7 + $0x398] sm:$0xff]
    %v2233 = vld [vmem:[#allocation7 + $0x3a0] sm:$0xff]
    %v2234 = vld [vmem:[#allocation7 + $0x3a8] sm:$0xff]
    %v2235 = vld [vmem:[#allocation7 + $0x3b0] sm:$0xff]
    %v2236 = vld [vmem:[#allocation7 + $0x3b8] sm:$0xff]
    %v2237 = vld [vmem:[#allocation7 + $0x3c0] sm:$0xff]
    %v2238 = vld [vmem:[#allocation7 + $0x3c8] sm:$0xff]
    %v2239 = vld [vmem:[#allocation7 + $0x3d0] sm:$0xff]
    %v2240 = vld [vmem:[#allocation7 + $0x3d8] sm:$0xff]
    %v2241 = vld [vmem:[#allocation7 + $0x3e0] sm:$0xff]
    %v2242 = vld [vmem:[#allocation7 + $0x3e8] sm:$0xff]
    %v2243 = vld [vmem:[#allocation7 + $0x3f0] sm:$0xff]
    %v2244 = vld [vmem:[#allocation7 + $0x3f8] sm:$0xff]
    %v2245 = vunpack.c.l.bf16 %v2117
    %v2246 = vunpack.c.h.bf16 %v2117
    %v2247 = vunpack.c.l.bf16 %v2118
    %v2248 = vunpack.c.h.bf16 %v2118
    %v2249 = vunpack.c.l.bf16 %v2119
    %v2250 = vunpack.c.h.bf16 %v2119
    %v2251 = vunpack.c.l.bf16 %v2120
    %v2252 = vunpack.c.h.bf16 %v2120
    %v2253 = vunpack.c.l.bf16 %v2121
    %v2254 = vunpack.c.h.bf16 %v2121
    %v2255 = vunpack.c.l.bf16 %v2122
    %v2256 = vunpack.c.h.bf16 %v2122
    %v2257 = vunpack.c.l.bf16 %v2123
    %v2258 = vunpack.c.h.bf16 %v2123
    %v2259 = vunpack.c.l.bf16 %v2124
    %v2260 = vunpack.c.h.bf16 %v2124
    %v2261 = vunpack.c.l.bf16 %v2125
    %v2262 = vunpack.c.h.bf16 %v2125
    %v2263 = vunpack.c.l.bf16 %v2126
    %v2264 = vunpack.c.h.bf16 %v2126
    %v2265 = vunpack.c.l.bf16 %v2127
    %v2266 = vunpack.c.h.bf16 %v2127
    %v2267 = vunpack.c.l.bf16 %v2128
    %v2268 = vunpack.c.h.bf16 %v2128
    %v2269 = vunpack.c.l.bf16 %v2129
    %v2270 = vunpack.c.h.bf16 %v2129
    %v2271 = vunpack.c.l.bf16 %v2130
    %v2272 = vunpack.c.h.bf16 %v2130
    %v2273 = vunpack.c.l.bf16 %v2131
    %v2274 = vunpack.c.h.bf16 %v2131
    %v2275 = vunpack.c.l.bf16 %v2132
    %v2276 = vunpack.c.h.bf16 %v2132
    %v2277 = vunpack.c.l.bf16 %v2133
    %v2278 = vunpack.c.h.bf16 %v2133
    %v2279 = vunpack.c.l.bf16 %v2134
    %v2280 = vunpack.c.h.bf16 %v2134
    %v2281 = vunpack.c.l.bf16 %v2135
    %v2282 = vunpack.c.h.bf16 %v2135
    %v2283 = vunpack.c.l.bf16 %v2136
    %v2284 = vunpack.c.h.bf16 %v2136
    %v2285 = vunpack.c.l.bf16 %v2137
    %v2286 = vunpack.c.h.bf16 %v2137
    %v2287 = vunpack.c.l.bf16 %v2138
    %v2288 = vunpack.c.h.bf16 %v2138
    %v2289 = vunpack.c.l.bf16 %v2139
    %v2290 = vunpack.c.h.bf16 %v2139
    %v2291 = vunpack.c.l.bf16 %v2140
    %v2292 = vunpack.c.h.bf16 %v2140
    %v2293 = vunpack.c.l.bf16 %v2141
    %v2294 = vunpack.c.h.bf16 %v2141
    %v2295 = vunpack.c.l.bf16 %v2142
    %v2296 = vunpack.c.h.bf16 %v2142
    %v2297 = vunpack.c.l.bf16 %v2143
    %v2298 = vunpack.c.h.bf16 %v2143
    %v2299 = vunpack.c.l.bf16 %v2144
    %v2300 = vunpack.c.h.bf16 %v2144
    %v2301 = vunpack.c.l.bf16 %v2145
    %v2302 = vunpack.c.h.bf16 %v2145
    %v2303 = vunpack.c.l.bf16 %v2146
    %v2304 = vunpack.c.h.bf16 %v2146
    %v2305 = vunpack.c.l.bf16 %v2147
    %v2306 = vunpack.c.h.bf16 %v2147
    %v2307 = vunpack.c.l.bf16 %v2148
    %v2308 = vunpack.c.h.bf16 %v2148
    %v2309 = vunpack.c.l.bf16 %v2149
    %v2310 = vunpack.c.h.bf16 %v2149
    %v2311 = vunpack.c.l.bf16 %v2150
    %v2312 = vunpack.c.h.bf16 %v2150
    %v2313 = vunpack.c.l.bf16 %v2151
    %v2314 = vunpack.c.h.bf16 %v2151
    %v2315 = vunpack.c.l.bf16 %v2152
    %v2316 = vunpack.c.h.bf16 %v2152
    %v2317 = vunpack.c.l.bf16 %v2153
    %v2318 = vunpack.c.h.bf16 %v2153
    %v2319 = vunpack.c.l.bf16 %v2154
    %v2320 = vunpack.c.h.bf16 %v2154
    %v2321 = vunpack.c.l.bf16 %v2155
    %v2322 = vunpack.c.h.bf16 %v2155
    %v2323 = vunpack.c.l.bf16 %v2156
    %v2324 = vunpack.c.h.bf16 %v2156
    %v2325 = vunpack.c.l.bf16 %v2157
    %v2326 = vunpack.c.h.bf16 %v2157
    %v2327 = vunpack.c.l.bf16 %v2158
    %v2328 = vunpack.c.h.bf16 %v2158
    %v2329 = vunpack.c.l.bf16 %v2159
    %v2330 = vunpack.c.h.bf16 %v2159
    %v2331 = vunpack.c.l.bf16 %v2160
    %v2332 = vunpack.c.h.bf16 %v2160
    %v2333 = vunpack.c.l.bf16 %v2161
    %v2334 = vunpack.c.h.bf16 %v2161
    %v2335 = vunpack.c.l.bf16 %v2162
    %v2336 = vunpack.c.h.bf16 %v2162
    %v2337 = vunpack.c.l.bf16 %v2163
    %v2338 = vunpack.c.h.bf16 %v2163
    %v2339 = vunpack.c.l.bf16 %v2164
    %v2340 = vunpack.c.h.bf16 %v2164
    %v2341 = vunpack.c.l.bf16 %v2165
    %v2342 = vunpack.c.h.bf16 %v2165
    %v2343 = vunpack.c.l.bf16 %v2166
    %v2344 = vunpack.c.h.bf16 %v2166
    %v2345 = vunpack.c.l.bf16 %v2167
    %v2346 = vunpack.c.h.bf16 %v2167
    %v2347 = vunpack.c.l.bf16 %v2168
    %v2348 = vunpack.c.h.bf16 %v2168
    %v2349 = vunpack.c.l.bf16 %v2169
    %v2350 = vunpack.c.h.bf16 %v2169
    %v2351 = vunpack.c.l.bf16 %v2170
    %v2352 = vunpack.c.h.bf16 %v2170
    %v2353 = vunpack.c.l.bf16 %v2171
    %v2354 = vunpack.c.h.bf16 %v2171
    %v2355 = vunpack.c.l.bf16 %v2172
    %v2356 = vunpack.c.h.bf16 %v2172
    %v2357 = vunpack.c.l.bf16 %v2173
    %v2358 = vunpack.c.h.bf16 %v2173
    %v2359 = vunpack.c.l.bf16 %v2174
    %v2360 = vunpack.c.h.bf16 %v2174
    %v2361 = vunpack.c.l.bf16 %v2175
    %v2362 = vunpack.c.h.bf16 %v2175
    %v2363 = vunpack.c.l.bf16 %v2176
    %v2364 = vunpack.c.h.bf16 %v2176
    %v2365 = vunpack.c.l.bf16 %v2177
    %v2366 = vunpack.c.h.bf16 %v2177
    %v2367 = vunpack.c.l.bf16 %v2178
    %v2368 = vunpack.c.h.bf16 %v2178
    %v2369 = vunpack.c.l.bf16 %v2179
    %v2370 = vunpack.c.h.bf16 %v2179
    %v2371 = vunpack.c.l.bf16 %v2180
    %v2372 = vunpack.c.h.bf16 %v2180
    %v2373 = vunpack.c.l.bf16 %v2181
    %v2374 = vunpack.c.h.bf16 %v2181
    %v2375 = vunpack.c.l.bf16 %v2182
    %v2376 = vunpack.c.h.bf16 %v2182
    %v2377 = vunpack.c.l.bf16 %v2183
    %v2378 = vunpack.c.h.bf16 %v2183
    %v2379 = vunpack.c.l.bf16 %v2184
    %v2380 = vunpack.c.h.bf16 %v2184
    %v2381 = vunpack.c.l.bf16 %v2185
    %v2382 = vunpack.c.h.bf16 %v2185
    %v2383 = vunpack.c.l.bf16 %v2186
    %v2384 = vunpack.c.h.bf16 %v2186
    %v2385 = vunpack.c.l.bf16 %v2187
    %v2386 = vunpack.c.h.bf16 %v2187
    %v2387 = vunpack.c.l.bf16 %v2188
    %v2388 = vunpack.c.h.bf16 %v2188
    %v2389 = vunpack.c.l.bf16 %v2189
    %v2390 = vunpack.c.h.bf16 %v2189
    %v2391 = vunpack.c.l.bf16 %v2190
    %v2392 = vunpack.c.h.bf16 %v2190
    %v2393 = vunpack.c.l.bf16 %v2191
    %v2394 = vunpack.c.h.bf16 %v2191
    %v2395 = vunpack.c.l.bf16 %v2192
    %v2396 = vunpack.c.h.bf16 %v2192
    %v2397 = vunpack.c.l.bf16 %v2193
    %v2398 = vunpack.c.h.bf16 %v2193
    %v2399 = vunpack.c.l.bf16 %v2194
    %v2400 = vunpack.c.h.bf16 %v2194
    %v2401 = vunpack.c.l.bf16 %v2195
    %v2402 = vunpack.c.h.bf16 %v2195
    %v2403 = vunpack.c.l.bf16 %v2196
    %v2404 = vunpack.c.h.bf16 %v2196
    %v2405 = vunpack.c.l.bf16 %v2197
    %v2406 = vunpack.c.h.bf16 %v2197
    %v2407 = vunpack.c.l.bf16 %v2198
    %v2408 = vunpack.c.h.bf16 %v2198
    %v2409 = vunpack.c.l.bf16 %v2199
    %v2410 = vunpack.c.h.bf16 %v2199
    %v2411 = vunpack.c.l.bf16 %v2200
    %v2412 = vunpack.c.h.bf16 %v2200
    %v2413 = vunpack.c.l.bf16 %v2201
    %v2414 = vunpack.c.h.bf16 %v2201
    %v2415 = vunpack.c.l.bf16 %v2202
    %v2416 = vunpack.c.h.bf16 %v2202
    %v2417 = vunpack.c.l.bf16 %v2203
    %v2418 = vunpack.c.h.bf16 %v2203
    %v2419 = vunpack.c.l.bf16 %v2204
    %v2420 = vunpack.c.h.bf16 %v2204
    %v2421 = vunpack.c.l.bf16 %v2205
    %v2422 = vunpack.c.h.bf16 %v2205
    %v2423 = vunpack.c.l.bf16 %v2206
    %v2424 = vunpack.c.h.bf16 %v2206
    %v2425 = vunpack.c.l.bf16 %v2207
    %v2426 = vunpack.c.h.bf16 %v2207
    %v2427 = vunpack.c.l.bf16 %v2208
    %v2428 = vunpack.c.h.bf16 %v2208
    %v2429 = vunpack.c.l.bf16 %v2209
    %v2430 = vunpack.c.h.bf16 %v2209
    %v2431 = vunpack.c.l.bf16 %v2210
    %v2432 = vunpack.c.h.bf16 %v2210
    %v2433 = vunpack.c.l.bf16 %v2211
    %v2434 = vunpack.c.h.bf16 %v2211
    %v2435 = vunpack.c.l.bf16 %v2212
    %v2436 = vunpack.c.h.bf16 %v2212
    %v2437 = vunpack.c.l.bf16 %v2213
    %v2438 = vunpack.c.h.bf16 %v2213
    %v2439 = vunpack.c.l.bf16 %v2214
    %v2440 = vunpack.c.h.bf16 %v2214
    %v2441 = vunpack.c.l.bf16 %v2215
    %v2442 = vunpack.c.h.bf16 %v2215
    %v2443 = vunpack.c.l.bf16 %v2216
    %v2444 = vunpack.c.h.bf16 %v2216
    %v2445 = vunpack.c.l.bf16 %v2217
    %v2446 = vunpack.c.h.bf16 %v2217
    %v2447 = vunpack.c.l.bf16 %v2218
    %v2448 = vunpack.c.h.bf16 %v2218
    %v2449 = vunpack.c.l.bf16 %v2219
    %v2450 = vunpack.c.h.bf16 %v2219
    %v2451 = vunpack.c.l.bf16 %v2220
    %v2452 = vunpack.c.h.bf16 %v2220
    %v2453 = vunpack.c.l.bf16 %v2221
    %v2454 = vunpack.c.h.bf16 %v2221
    %v2455 = vunpack.c.l.bf16 %v2222
    %v2456 = vunpack.c.h.bf16 %v2222
    %v2457 = vunpack.c.l.bf16 %v2223
    %v2458 = vunpack.c.h.bf16 %v2223
    %v2459 = vunpack.c.l.bf16 %v2224
    %v2460 = vunpack.c.h.bf16 %v2224
    %v2461 = vunpack.c.l.bf16 %v2225
    %v2462 = vunpack.c.h.bf16 %v2225
    %v2463 = vunpack.c.l.bf16 %v2226
    %v2464 = vunpack.c.h.bf16 %v2226
    %v2465 = vunpack.c.l.bf16 %v2227
    %v2466 = vunpack.c.h.bf16 %v2227
    %v2467 = vunpack.c.l.bf16 %v2228
    %v2468 = vunpack.c.h.bf16 %v2228
    %v2469 = vunpack.c.l.bf16 %v2229
    %v2470 = vunpack.c.h.bf16 %v2229
    %v2471 = vunpack.c.l.bf16 %v2230
    %v2472 = vunpack.c.h.bf16 %v2230
    %v2473 = vunpack.c.l.bf16 %v2231
    %v2474 = vunpack.c.h.bf16 %v2231
    %v2475 = vunpack.c.l.bf16 %v2232
    %v2476 = vunpack.c.h.bf16 %v2232
    %v2477 = vunpack.c.l.bf16 %v2233
    %v2478 = vunpack.c.h.bf16 %v2233
    %v2479 = vunpack.c.l.bf16 %v2234
    %v2480 = vunpack.c.h.bf16 %v2234
    %v2481 = vunpack.c.l.bf16 %v2235
    %v2482 = vunpack.c.h.bf16 %v2235
    %v2483 = vunpack.c.l.bf16 %v2236
    %v2484 = vunpack.c.h.bf16 %v2236
    %v2485 = vunpack.c.l.bf16 %v2237
    %v2486 = vunpack.c.h.bf16 %v2237
    %v2487 = vunpack.c.l.bf16 %v2238
    %v2488 = vunpack.c.h.bf16 %v2238
    %v2489 = vunpack.c.l.bf16 %v2239
    %v2490 = vunpack.c.h.bf16 %v2239
    %v2491 = vunpack.c.l.bf16 %v2240
    %v2492 = vunpack.c.h.bf16 %v2240
    %v2493 = vunpack.c.l.bf16 %v2241
    %v2494 = vunpack.c.h.bf16 %v2241
    %v2495 = vunpack.c.l.bf16 %v2242
    %v2496 = vunpack.c.h.bf16 %v2242
    %v2497 = vunpack.c.l.bf16 %v2243
    %v2498 = vunpack.c.h.bf16 %v2243
    %v2499 = vunpack.c.l.bf16 %v2244
    %v2500 = vunpack.c.h.bf16 %v2244
    %v2501 = vld [vmem:[%s7] sm:$0xf]
    %v2503 = vlaneseq
    %v2504 = vshrl.u32 %v2503, 7
    %v2505 = vsub.s32 0, %v2504
    %v2506 = vrot.slane %v2501, %v2505
    %v2507 = vlaneseq
    %v2508 = vshrl.u32 %v2507, 7
    %v2509 = vsub.s32 1, %v2508
    %v2510 = vrot.slane %v2501, %v2509
    %v2511 = vlaneseq
    %v2512 = vshrl.u32 %v2511, 7
    %v2513 = vsub.s32 2, %v2512
    %v2514 = vrot.slane %v2501, %v2513
    %v2515 = vlaneseq
    %v2516 = vshrl.u32 %v2515, 7
    %v2517 = vsub.s32 3, %v2516
    %v2518 = vrot.slane %v2501, %v2517
    %2523 = vmatprep.subr.mxu0 %v2246
    %2524 = vmatpush1.msra.mxu0 %v2245
    %2525 = vmatprep.subr.mxu0 %v2250
    %2526 = vmatpush1.msra.mxu0 %v2249
    %2527 = vmatprep.subr.mxu0 %v2254
    %2528 = vmatpush1.msra.mxu0 %v2253
    %2529 = vmatprep.subr.mxu0 %v2258
    %2530 = vmatpush1.msra.mxu0 %v2257
    %2531 = vmatprep.subr.mxu0 %v2262
    %2532 = vmatpush1.msra.mxu0 %v2261
    %2533 = vmatprep.subr.mxu0 %v2266
    %2534 = vmatpush1.msra.mxu0 %v2265
    %2535 = vmatprep.subr.mxu0 %v2270
    %2536 = vmatpush1.msra.mxu0 %v2269
    %2537 = vmatprep.subr.mxu0 %v2274
    %2538 = vmatpush1.msra.mxu0 %v2273
    %2539 = vmatprep.subr.mxu0 %v2278
    %2540 = vmatpush1.msra.mxu0 %v2277
    %2541 = vmatprep.subr.mxu0 %v2282
    %2542 = vmatpush1.msra.mxu0 %v2281
    %2543 = vmatprep.subr.mxu0 %v2286
    %2544 = vmatpush1.msra.mxu0 %v2285
    %2545 = vmatprep.subr.mxu0 %v2290
    %2546 = vmatpush1.msra.mxu0 %v2289
    %2547 = vmatprep.subr.mxu0 %v2294
    %2548 = vmatpush1.msra.mxu0 %v2293
    %2549 = vmatprep.subr.mxu0 %v2298
    %2550 = vmatpush1.msra.mxu0 %v2297
    %2551 = vmatprep.subr.mxu0 %v2302
    %2552 = vmatpush1.msra.mxu0 %v2301
    %2553 = vmatprep.subr.mxu0 %v2306
    %2554 = vmatpush1.msra.mxu0 %v2305
    %2555 = vmatprep.subr.mxu0 %v2310
    %2556 = vmatpush1.msra.mxu0 %v2309
    %2557 = vmatprep.subr.mxu0 %v2314
    %2558 = vmatpush1.msra.mxu0 %v2313
    %2559 = vmatprep.subr.mxu0 %v2318
    %2560 = vmatpush1.msra.mxu0 %v2317
    %2561 = vmatprep.subr.mxu0 %v2322
    %2562 = vmatpush1.msra.mxu0 %v2321
    %2563 = vmatprep.subr.mxu0 %v2326
    %2564 = vmatpush1.msra.mxu0 %v2325
    %2565 = vmatprep.subr.mxu0 %v2330
    %2566 = vmatpush1.msra.mxu0 %v2329
    %2567 = vmatprep.subr.mxu0 %v2334
    %2568 = vmatpush1.msra.mxu0 %v2333
    %2569 = vmatprep.subr.mxu0 %v2338
    %2570 = vmatpush1.msra.mxu0 %v2337
    %2571 = vmatprep.subr.mxu0 %v2342
    %2572 = vmatpush1.msra.mxu0 %v2341
    %2573 = vmatprep.subr.mxu0 %v2346
    %2574 = vmatpush1.msra.mxu0 %v2345
    %2575 = vmatprep.subr.mxu0 %v2350
    %2576 = vmatpush1.msra.mxu0 %v2349
    %2577 = vmatprep.subr.mxu0 %v2354
    %2578 = vmatpush1.msra.mxu0 %v2353
    %2579 = vmatprep.subr.mxu0 %v2358
    %2580 = vmatpush1.msra.mxu0 %v2357
    %2581 = vmatprep.subr.mxu0 %v2362
    %2582 = vmatpush1.msra.mxu0 %v2361
    %2583 = vmatprep.subr.mxu0 %v2366
    %2584 = vmatpush1.msra.mxu0 %v2365
    %2585 = vmatprep.subr.mxu0 %v2370
    %2586 = vmatpush1.msra.mxu0 %v2369
    %2587 = vmatprep.mubr.f32.mxu0 %v2114
    %2588 = vmatmul.mubr.f32.gmra.mrb[0].mxu0 %v2113
    %v2589 = vpop.f32.mrb[0].mxu0
    %v2590 = vadd.f32 %v2506, %v2589
    %v2591 = vpop.f32.mrb[0].mxu0
    %v2592 = vadd.f32 %v2510, %v2591
    %2593 = vdwg.mxu0
    %2594 = vmatprep.subr.mxu0 %v2374
    %2595 = vmatpush1.msra.mxu0 %v2373
    %2596 = vmatprep.subr.mxu0 %v2378
    %2597 = vmatpush1.msra.mxu0 %v2377
    %2598 = vmatprep.subr.mxu0 %v2382
    %2599 = vmatpush1.msra.mxu0 %v2381
    %2600 = vmatprep.subr.mxu0 %v2386
    %2601 = vmatpush1.msra.mxu0 %v2385
    %2602 = vmatprep.subr.mxu0 %v2390
    %2603 = vmatpush1.msra.mxu0 %v2389
    %2604 = vmatprep.subr.mxu0 %v2394
    %2605 = vmatpush1.msra.mxu0 %v2393
    %2606 = vmatprep.subr.mxu0 %v2398
    %2607 = vmatpush1.msra.mxu0 %v2397
    %2608 = vmatprep.subr.mxu0 %v2402
    %2609 = vmatpush1.msra.mxu0 %v2401
    %2610 = vmatprep.subr.mxu0 %v2406
    %2611 = vmatpush1.msra.mxu0 %v2405
    %2612 = vmatprep.subr.mxu0 %v2410
    %2613 = vmatpush1.msra.mxu0 %v2409
    %2614 = vmatprep.subr.mxu0 %v2414
    %2615 = vmatpush1.msra.mxu0 %v2413
    %2616 = vmatprep.subr.mxu0 %v2418
    %2617 = vmatpush1.msra.mxu0 %v2417
    %2618 = vmatprep.subr.mxu0 %v2422
    %2619 = vmatpush1.msra.mxu0 %v2421
    %2620 = vmatprep.subr.mxu0 %v2426
    %2621 = vmatpush1.msra.mxu0 %v2425
    %2622 = vmatprep.subr.mxu0 %v2430
    %2623 = vmatpush1.msra.mxu0 %v2429
    %2624 = vmatprep.subr.mxu0 %v2434
    %2625 = vmatpush1.msra.mxu0 %v2433
    %2626 = vmatprep.subr.mxu0 %v2438
    %2627 = vmatpush1.msra.mxu0 %v2437
    %2628 = vmatprep.subr.mxu0 %v2442
    %2629 = vmatpush1.msra.mxu0 %v2441
    %2630 = vmatprep.subr.mxu0 %v2446
    %2631 = vmatpush1.msra.mxu0 %v2445
    %2632 = vmatprep.subr.mxu0 %v2450
    %2633 = vmatpush1.msra.mxu0 %v2449
    %2634 = vmatprep.subr.mxu0 %v2454
    %2635 = vmatpush1.msra.mxu0 %v2453
    %2636 = vmatprep.subr.mxu0 %v2458
    %2637 = vmatpush1.msra.mxu0 %v2457
    %2638 = vmatprep.subr.mxu0 %v2462
    %2639 = vmatpush1.msra.mxu0 %v2461
    %2640 = vmatprep.subr.mxu0 %v2466
    %2641 = vmatpush1.msra.mxu0 %v2465
    %2642 = vmatprep.subr.mxu0 %v2470
    %2643 = vmatpush1.msra.mxu0 %v2469
    %2644 = vmatprep.subr.mxu0 %v2474
    %2645 = vmatpush1.msra.mxu0 %v2473
    %2646 = vmatprep.subr.mxu0 %v2478
    %2647 = vmatpush1.msra.mxu0 %v2477
    %2648 = vmatprep.subr.mxu0 %v2482
    %2649 = vmatpush1.msra.mxu0 %v2481
    %2650 = vmatprep.subr.mxu0 %v2486
    %2651 = vmatpush1.msra.mxu0 %v2485
    %2652 = vmatprep.subr.mxu0 %v2490
    %2653 = vmatpush1.msra.mxu0 %v2489
    %2654 = vmatprep.subr.mxu0 %v2494
    %2655 = vmatpush1.msra.mxu0 %v2493
    %2656 = vmatprep.subr.mxu0 %v2498
    %2657 = vmatpush1.msra.mxu0 %v2497
    %2658 = vmatprep.mubr.f32.mxu0 %v2116
    %2659 = vmatmul.mubr.f32.gmra.mrb[0].mxu0 %v2115
    %v2660 = vpop.f32.mrb[0].mxu0
    %v2661 = vadd.f32 %v2590, %v2660
    %v2662 = vpop.f32.mrb[0].mxu0
    %v2663 = vadd.f32 %v2592, %v2662
    %2664 = vdwg.mxu0
    %2665 = vmatprep.subr.mxu0 %v2248
    %2666 = vmatpush1.msra.mxu0 %v2247
    %2667 = vmatprep.subr.mxu0 %v2252
    %2668 = vmatpush1.msra.mxu0 %v2251
    %2669 = vmatprep.subr.mxu0 %v2256
    %2670 = vmatpush1.msra.mxu0 %v2255
    %2671 = vmatprep.subr.mxu0 %v2260
    %2672 = vmatpush1.msra.mxu0 %v2259
    %2673 = vmatprep.subr.mxu0 %v2264
    %2674 = vmatpush1.msra.mxu0 %v2263
    %2675 = vmatprep.subr.mxu0 %v2268
    %2676 = vmatpush1.msra.mxu0 %v2267
    %2677 = vmatprep.subr.mxu0 %v2272
    %2678 = vmatpush1.msra.mxu0 %v2271
    %2679 = vmatprep.subr.mxu0 %v2276
    %2680 = vmatpush1.msra.mxu0 %v2275
    %2681 = vmatprep.subr.mxu0 %v2280
    %2682 = vmatpush1.msra.mxu0 %v2279
    %2683 = vmatprep.subr.mxu0 %v2284
    %2684 = vmatpush1.msra.mxu0 %v2283
    %2685 = vmatprep.subr.mxu0 %v2288
    %2686 = vmatpush1.msra.mxu0 %v2287
    %2687 = vmatprep.subr.mxu0 %v2292
    %2688 = vmatpush1.msra.mxu0 %v2291
    %2689 = vmatprep.subr.mxu0 %v2296
    %2690 = vmatpush1.msra.mxu0 %v2295
    %2691 = vmatprep.subr.mxu0 %v2300
    %2692 = vmatpush1.msra.mxu0 %v2299
    %2693 = vmatprep.subr.mxu0 %v2304
    %2694 = vmatpush1.msra.mxu0 %v2303
    %2695 = vmatprep.subr.mxu0 %v2308
    %2696 = vmatpush1.msra.mxu0 %v2307
    %2697 = vmatprep.subr.mxu0 %v2312
    %2698 = vmatpush1.msra.mxu0 %v2311
    %2699 = vmatprep.subr.mxu0 %v2316
    %2700 = vmatpush1.msra.mxu0 %v2315
    %2701 = vmatprep.subr.mxu0 %v2320
    %2702 = vmatpush1.msra.mxu0 %v2319
    %2703 = vmatprep.subr.mxu0 %v2324
    %2704 = vmatpush1.msra.mxu0 %v2323
    %2705 = vmatprep.subr.mxu0 %v2328
    %2706 = vmatpush1.msra.mxu0 %v2327
    %2707 = vmatprep.subr.mxu0 %v2332
    %2708 = vmatpush1.msra.mxu0 %v2331
    %2709 = vmatprep.subr.mxu0 %v2336
    %2710 = vmatpush1.msra.mxu0 %v2335
    %2711 = vmatprep.subr.mxu0 %v2340
    %2712 = vmatpush1.msra.mxu0 %v2339
    %2713 = vmatprep.subr.mxu0 %v2344
    %2714 = vmatpush1.msra.mxu0 %v2343
    %2715 = vmatprep.subr.mxu0 %v2348
    %2716 = vmatpush1.msra.mxu0 %v2347
    %2717 = vmatprep.subr.mxu0 %v2352
    %2718 = vmatpush1.msra.mxu0 %v2351
    %2719 = vmatprep.subr.mxu0 %v2356
    %2720 = vmatpush1.msra.mxu0 %v2355
    %2721 = vmatprep.subr.mxu0 %v2360
    %2722 = vmatpush1.msra.mxu0 %v2359
    %2723 = vmatprep.subr.mxu0 %v2364
    %2724 = vmatpush1.msra.mxu0 %v2363
    %2725 = vmatprep.subr.mxu0 %v2368
    %2726 = vmatpush1.msra.mxu0 %v2367
    %2727 = vmatprep.subr.mxu0 %v2372
    %2728 = vmatpush1.msra.mxu0 %v2371
    %2729 = vmatprep.mubr.f32.mxu0 %v2114
    %2730 = vmatmul.mubr.f32.gmra.mrb[0].mxu0 %v2113
    %v2731 = vpop.f32.mrb[0].mxu0
    %v2732 = vadd.f32 %v2514, %v2731
    %v2733 = vpop.f32.mrb[0].mxu0
    %v2734 = vadd.f32 %v2518, %v2733
    %2735 = vdwg.mxu0
    %2736 = vmatprep.subr.mxu0 %v2376
    %2737 = vmatpush1.msra.mxu0 %v2375
    %2738 = vmatprep.subr.mxu0 %v2380
    %2739 = vmatpush1.msra.mxu0 %v2379
    %2740 = vmatprep.subr.mxu0 %v2384
    %2741 = vmatpush1.msra.mxu0 %v2383
    %2742 = vmatprep.subr.mxu0 %v2388
    %2743 = vmatpush1.msra.mxu0 %v2387
    %2744 = vmatprep.subr.mxu0 %v2392
    %2745 = vmatpush1.msra.mxu0 %v2391
    %2746 = vmatprep.subr.mxu0 %v2396
    %2747 = vmatpush1.msra.mxu0 %v2395
    %2748 = vmatprep.subr.mxu0 %v2400
    %2749 = vmatpush1.msra.mxu0 %v2399
    %2750 = vmatprep.subr.mxu0 %v2404
    %2751 = vmatpush1.msra.mxu0 %v2403
    %2752 = vmatprep.subr.mxu0 %v2408
    %2753 = vmatpush1.msra.mxu0 %v2407
    %2754 = vmatprep.subr.mxu0 %v2412
    %2755 = vmatpush1.msra.mxu0 %v2411
    %2756 = vmatprep.subr.mxu0 %v2416
    %2757 = vmatpush1.msra.mxu0 %v2415
    %2758 = vmatprep.subr.mxu0 %v2420
    %2759 = vmatpush1.msra.mxu0 %v2419
    %2760 = vmatprep.subr.mxu0 %v2424
    %2761 = vmatpush1.msra.mxu0 %v2423
    %2762 = vmatprep.subr.mxu0 %v2428
    %2763 = vmatpush1.msra.mxu0 %v2427
    %2764 = vmatprep.subr.mxu0 %v2432
    %2765 = vmatpush1.msra.mxu0 %v2431
    %2766 = vmatprep.subr.mxu0 %v2436
    %2767 = vmatpush1.msra.mxu0 %v2435
    %2768 = vmatprep.subr.mxu0 %v2440
    %2769 = vmatpush1.msra.mxu0 %v2439
    %2770 = vmatprep.subr.mxu0 %v2444
    %2771 = vmatpush1.msra.mxu0 %v2443
    %2772 = vmatprep.subr.mxu0 %v2448
    %2773 = vmatpush1.msra.mxu0 %v2447
    %2774 = vmatprep.subr.mxu0 %v2452
    %2775 = vmatpush1.msra.mxu0 %v2451
    %2776 = vmatprep.subr.mxu0 %v2456
    %2777 = vmatpush1.msra.mxu0 %v2455
    %2778 = vmatprep.subr.mxu0 %v2460
    %2779 = vmatpush1.msra.mxu0 %v2459
    %2780 = vmatprep.subr.mxu0 %v2464
    %2781 = vmatpush1.msra.mxu0 %v2463
    %2782 = vmatprep.subr.mxu0 %v2468
    %2783 = vmatpush1.msra.mxu0 %v2467
    %2784 = vmatprep.subr.mxu0 %v2472
    %2785 = vmatpush1.msra.mxu0 %v2471
    %2786 = vmatprep.subr.mxu0 %v2476
    %2787 = vmatpush1.msra.mxu0 %v2475
    %2788 = vmatprep.subr.mxu0 %v2480
    %2789 = vmatpush1.msra.mxu0 %v2479
    %2790 = vmatprep.subr.mxu0 %v2484
    %2791 = vmatpush1.msra.mxu0 %v2483
    %2792 = vmatprep.subr.mxu0 %v2488
    %2793 = vmatpush1.msra.mxu0 %v2487
    %2794 = vmatprep.subr.mxu0 %v2492
    %2795 = vmatpush1.msra.mxu0 %v2491
    %2796 = vmatprep.subr.mxu0 %v2496
    %2797 = vmatpush1.msra.mxu0 %v2495
    %2798 = vmatprep.subr.mxu0 %v2500
    %2799 = vmatpush1.msra.mxu0 %v2499
    %2800 = vmatprep.mubr.f32.mxu0 %v2116
    %2801 = vmatmul.mubr.f32.gmra.mrb[0].mxu0 %v2115
    %v2802 = vpop.f32.mrb[0].mxu0
    %v2803 = vadd.f32 %v2732, %v2802
    %v2804 = vpop.f32.mrb[0].mxu0
    %v2805 = vadd.f32 %v2734, %v2804
    %2806 = vdwg.mxu0
    %v2807 = vld [vmem:[%s1] sm:$0xff]
    %v2808 = vld [vmem:[%s1 + $0x8] sm:$0xff]
    %v2809 = vmul.f32 %v2803, %v2807
    %v2810 = vmul.f32 %v2805, %v2808
    %v2811 = vadd.f32 %v2661, %v2809
    %v2812 = vadd.f32 %v2663, %v2810
    %v2813 = vld [vmem:[#allocation8] sm:$0xff]
    %v2814 = vld [vmem:[#allocation8 + $0x8] sm:$0xff]
    %v2815 = vld [vmem:[#allocation8 + $0x10] sm:$0xff]
    %v2816 = vld [vmem:[#allocation8 + $0x18] sm:$0xff]
    %v2817 = vld [vmem:[#allocation8 + $0x20] sm:$0xff]
    %v2818 = vld [vmem:[#allocation8 + $0x28] sm:$0xff]
    %v2819 = vld [vmem:[#allocation8 + $0x30] sm:$0xff]
    %v2820 = vld [vmem:[#allocation8 + $0x38] sm:$0xff]
    %v2821 = vld [vmem:[#allocation8 + $0x40] sm:$0xff]
    %v2822 = vld [vmem:[#allocation8 + $0x48] sm:$0xff]
    %v2823 = vld [vmem:[#allocation8 + $0x50] sm:$0xff]
    %v2824 = vld [vmem:[#allocation8 + $0x58] sm:$0xff]
    %v2825 = vld [vmem:[#allocation8 + $0x60] sm:$0xff]
    %v2826 = vld [vmem:[#allocation8 + $0x68] sm:$0xff]
    %v2827 = vld [vmem:[#allocation8 + $0x70] sm:$0xff]
    %v2828 = vld [vmem:[#allocation8 + $0x78] sm:$0xff]
    %v2829 = vld [vmem:[#allocation8 + $0x80] sm:$0xff]
    %v2830 = vld [vmem:[#allocation8 + $0x88] sm:$0xff]
    %v2831 = vld [vmem:[#allocation8 + $0x90] sm:$0xff]
    %v2832 = vld [vmem:[#allocation8 + $0x98] sm:$0xff]
    %v2833 = vld [vmem:[#allocation8 + $0xa0] sm:$0xff]
    %v2834 = vld [vmem:[#allocation8 + $0xa8] sm:$0xff]
    %v2835 = vld [vmem:[#allocation8 + $0xb0] sm:$0xff]
    %v2836 = vld [vmem:[#allocation8 + $0xb8] sm:$0xff]
    %v2837 = vld [vmem:[#allocation8 + $0xc0] sm:$0xff]
    %v2838 = vld [vmem:[#allocation8 + $0xc8] sm:$0xff]
    %v2839 = vld [vmem:[#allocation8 + $0xd0] sm:$0xff]
    %v2840 = vld [vmem:[#allocation8 + $0xd8] sm:$0xff]
    %v2841 = vld [vmem:[#allocation8 + $0xe0] sm:$0xff]
    %v2842 = vld [vmem:[#allocation8 + $0xe8] sm:$0xff]
    %v2843 = vld [vmem:[#allocation8 + $0xf0] sm:$0xff]
    %v2844 = vld [vmem:[#allocation8 + $0xf8] sm:$0xff]
    %v2845 = vld [vmem:[#allocation8 + $0x100] sm:$0xff]
    %v2846 = vld [vmem:[#allocation8 + $0x108] sm:$0xff]
    %v2847 = vld [vmem:[#allocation8 + $0x110] sm:$0xff]
    %v2848 = vld [vmem:[#allocation8 + $0x118] sm:$0xff]
    %v2849 = vld [vmem:[#allocation8 + $0x120] sm:$0xff]
    %v2850 = vld [vmem:[#allocation8 + $0x128] sm:$0xff]
    %v2851 = vld [vmem:[#allocation8 + $0x130] sm:$0xff]
    %v2852 = vld [vmem:[#allocation8 + $0x138] sm:$0xff]
    %v2853 = vld [vmem:[#allocation8 + $0x140] sm:$0xff]
    %v2854 = vld [vmem:[#allocation8 + $0x148] sm:$0xff]
    %v2855 = vld [vmem:[#allocation8 + $0x150] sm:$0xff]
    %v2856 = vld [vmem:[#allocation8 + $0x158] sm:$0xff]
    %v2857 = vld [vmem:[#allocation8 + $0x160] sm:$0xff]
    %v2858 = vld [vmem:[#allocation8 + $0x168] sm:$0xff]
    %v2859 = vld [vmem:[#allocation8 + $0x170] sm:$0xff]
    %v2860 = vld [vmem:[#allocation8 + $0x178] sm:$0xff]
    %v2861 = vld [vmem:[#allocation8 + $0x180] sm:$0xff]
    %v2862 = vld [vmem:[#allocation8 + $0x188] sm:$0xff]
    %v2863 = vld [vmem:[#allocation8 + $0x190] sm:$0xff]
    %v2864 = vld [vmem:[#allocation8 + $0x198] sm:$0xff]
    %v2865 = vld [vmem:[#allocation8 + $0x1a0] sm:$0xff]
    %v2866 = vld [vmem:[#allocation8 + $0x1a8] sm:$0xff]
    %v2867 = vld [vmem:[#allocation8 + $0x1b0] sm:$0xff]
    %v2868 = vld [vmem:[#allocation8 + $0x1b8] sm:$0xff]
    %v2869 = vld [vmem:[#allocation8 + $0x1c0] sm:$0xff]
    %v2870 = vld [vmem:[#allocation8 + $0x1c8] sm:$0xff]
    %v2871 = vld [vmem:[#allocation8 + $0x1d0] sm:$0xff]
    %v2872 = vld [vmem:[#allocation8 + $0x1d8] sm:$0xff]
    %v2873 = vld [vmem:[#allocation8 + $0x1e0] sm:$0xff]
    %v2874 = vld [vmem:[#allocation8 + $0x1e8] sm:$0xff]
    %v2875 = vld [vmem:[#allocation8 + $0x1f0] sm:$0xff]
    %v2876 = vld [vmem:[#allocation8 + $0x1f8] sm:$0xff]
    %v2877 = vunpack.c.l.bf16 %v2813
    %v2878 = vunpack.c.h.bf16 %v2813
    %v2879 = vunpack.c.l.bf16 %v2814
    %v2880 = vunpack.c.h.bf16 %v2814
    %v2881 = vunpack.c.l.bf16 %v2815
    %v2882 = vunpack.c.h.bf16 %v2815
    %v2883 = vunpack.c.l.bf16 %v2816
    %v2884 = vunpack.c.h.bf16 %v2816
    %v2885 = vunpack.c.l.bf16 %v2817
    %v2886 = vunpack.c.h.bf16 %v2817
    %v2887 = vunpack.c.l.bf16 %v2818
    %v2888 = vunpack.c.h.bf16 %v2818
    %v2889 = vunpack.c.l.bf16 %v2819
    %v2890 = vunpack.c.h.bf16 %v2819
    %v2891 = vunpack.c.l.bf16 %v2820
    %v2892 = vunpack.c.h.bf16 %v2820
    %v2893 = vunpack.c.l.bf16 %v2821
    %v2894 = vunpack.c.h.bf16 %v2821
    %v2895 = vunpack.c.l.bf16 %v2822
    %v2896 = vunpack.c.h.bf16 %v2822
    %v2897 = vunpack.c.l.bf16 %v2823
    %v2898 = vunpack.c.h.bf16 %v2823
    %v2899 = vunpack.c.l.bf16 %v2824
    %v2900 = vunpack.c.h.bf16 %v2824
    %v2901 = vunpack.c.l.bf16 %v2825
    %v2902 = vunpack.c.h.bf16 %v2825
    %v2903 = vunpack.c.l.bf16 %v2826
    %v2904 = vunpack.c.h.bf16 %v2826
    %v2905 = vunpack.c.l.bf16 %v2827
    %v2906 = vunpack.c.h.bf16 %v2827
    %v2907 = vunpack.c.l.bf16 %v2828
    %v2908 = vunpack.c.h.bf16 %v2828
    %v2909 = vunpack.c.l.bf16 %v2829
    %v2910 = vunpack.c.h.bf16 %v2829
    %v2911 = vunpack.c.l.bf16 %v2830
    %v2912 = vunpack.c.h.bf16 %v2830
    %v2913 = vunpack.c.l.bf16 %v2831
    %v2914 = vunpack.c.h.bf16 %v2831
    %v2915 = vunpack.c.l.bf16 %v2832
    %v2916 = vunpack.c.h.bf16 %v2832
    %v2917 = vunpack.c.l.bf16 %v2833
    %v2918 = vunpack.c.h.bf16 %v2833
    %v2919 = vunpack.c.l.bf16 %v2834
    %v2920 = vunpack.c.h.bf16 %v2834
    %v2921 = vunpack.c.l.bf16 %v2835
    %v2922 = vunpack.c.h.bf16 %v2835
    %v2923 = vunpack.c.l.bf16 %v2836
    %v2924 = vunpack.c.h.bf16 %v2836
    %v2925 = vunpack.c.l.bf16 %v2837
    %v2926 = vunpack.c.h.bf16 %v2837
    %v2927 = vunpack.c.l.bf16 %v2838
    %v2928 = vunpack.c.h.bf16 %v2838
    %v2929 = vunpack.c.l.bf16 %v2839
    %v2930 = vunpack.c.h.bf16 %v2839
    %v2931 = vunpack.c.l.bf16 %v2840
    %v2932 = vunpack.c.h.bf16 %v2840
    %v2933 = vunpack.c.l.bf16 %v2841
    %v2934 = vunpack.c.h.bf16 %v2841
    %v2935 = vunpack.c.l.bf16 %v2842
    %v2936 = vunpack.c.h.bf16 %v2842
    %v2937 = vunpack.c.l.bf16 %v2843
    %v2938 = vunpack.c.h.bf16 %v2843
    %v2939 = vunpack.c.l.bf16 %v2844
    %v2940 = vunpack.c.h.bf16 %v2844
    %v2941 = vunpack.c.l.bf16 %v2845
    %v2942 = vunpack.c.h.bf16 %v2845
    %v2943 = vunpack.c.l.bf16 %v2846
    %v2944 = vunpack.c.h.bf16 %v2846
    %v2945 = vunpack.c.l.bf16 %v2847
    %v2946 = vunpack.c.h.bf16 %v2847
    %v2947 = vunpack.c.l.bf16 %v2848
    %v2948 = vunpack.c.h.bf16 %v2848
    %v2949 = vunpack.c.l.bf16 %v2849
    %v2950 = vunpack.c.h.bf16 %v2849
    %v2951 = vunpack.c.l.bf16 %v2850
    %v2952 = vunpack.c.h.bf16 %v2850
    %v2953 = vunpack.c.l.bf16 %v2851
    %v2954 = vunpack.c.h.bf16 %v2851
    %v2955 = vunpack.c.l.bf16 %v2852
    %v2956 = vunpack.c.h.bf16 %v2852
    %v2957 = vunpack.c.l.bf16 %v2853
    %v2958 = vunpack.c.h.bf16 %v2853
    %v2959 = vunpack.c.l.bf16 %v2854
    %v2960 = vunpack.c.h.bf16 %v2854
    %v2961 = vunpack.c.l.bf16 %v2855
    %v2962 = vunpack.c.h.bf16 %v2855
    %v2963 = vunpack.c.l.bf16 %v2856
    %v2964 = vunpack.c.h.bf16 %v2856
    %v2965 = vunpack.c.l.bf16 %v2857
    %v2966 = vunpack.c.h.bf16 %v2857
    %v2967 = vunpack.c.l.bf16 %v2858
    %v2968 = vunpack.c.h.bf16 %v2858
    %v2969 = vunpack.c.l.bf16 %v2859
    %v2970 = vunpack.c.h.bf16 %v2859
    %v2971 = vunpack.c.l.bf16 %v2860
    %v2972 = vunpack.c.h.bf16 %v2860
    %v2973 = vunpack.c.l.bf16 %v2861
    %v2974 = vunpack.c.h.bf16 %v2861
    %v2975 = vunpack.c.l.bf16 %v2862
    %v2976 = vunpack.c.h.bf16 %v2862
    %v2977 = vunpack.c.l.bf16 %v2863
    %v2978 = vunpack.c.h.bf16 %v2863
    %v2979 = vunpack.c.l.bf16 %v2864
    %v2980 = vunpack.c.h.bf16 %v2864
    %v2981 = vunpack.c.l.bf16 %v2865
    %v2982 = vunpack.c.h.bf16 %v2865
    %v2983 = vunpack.c.l.bf16 %v2866
    %v2984 = vunpack.c.h.bf16 %v2866
    %v2985 = vunpack.c.l.bf16 %v2867
    %v2986 = vunpack.c.h.bf16 %v2867
    %v2987 = vunpack.c.l.bf16 %v2868
    %v2988 = vunpack.c.h.bf16 %v2868
    %v2989 = vunpack.c.l.bf16 %v2869
    %v2990 = vunpack.c.h.bf16 %v2869
    %v2991 = vunpack.c.l.bf16 %v2870
    %v2992 = vunpack.c.h.bf16 %v2870
    %v2993 = vunpack.c.l.bf16 %v2871
    %v2994 = vunpack.c.h.bf16 %v2871
    %v2995 = vunpack.c.l.bf16 %v2872
    %v2996 = vunpack.c.h.bf16 %v2872
    %v2997 = vunpack.c.l.bf16 %v2873
    %v2998 = vunpack.c.h.bf16 %v2873
    %v2999 = vunpack.c.l.bf16 %v2874
    %v3000 = vunpack.c.h.bf16 %v2874
    %v3001 = vunpack.c.l.bf16 %v2875
    %v3002 = vunpack.c.h.bf16 %v2875
    %v3003 = vunpack.c.l.bf16 %v2876
    %v3004 = vunpack.c.h.bf16 %v2876
    %v3005 = vld [vmem:[%s9] sm:$0xf]
    %v3007 = vlaneseq
    %v3008 = vshrl.u32 %v3007, 7
    %v3009 = vsub.s32 0, %v3008
    %v3010 = vrot.slane %v3005, %v3009
    %v3011 = vlaneseq
    %v3012 = vshrl.u32 %v3011, 7
    %v3013 = vsub.s32 1, %v3012
    %v3014 = vrot.slane %v3005, %v3013
    %v3015 = vlaneseq
    %v3016 = vshrl.u32 %v3015, 7
    %v3017 = vsub.s32 2, %v3016
    %v3018 = vrot.slane %v3005, %v3017
    %v3019 = vlaneseq
    %v3020 = vshrl.u32 %v3019, 7
    %v3021 = vsub.s32 3, %v3020
    %v3022 = vrot.slane %v3005, %v3021
    %3027 = vmatprep.subr.mxu0 %v2878
    %3028 = vmatpush1.msra.mxu0 %v2877
    %3029 = vmatprep.subr.mxu0 %v2882
    %3030 = vmatpush1.msra.mxu0 %v2881
    %3031 = vmatprep.subr.mxu0 %v2886
    %3032 = vmatpush1.msra.mxu0 %v2885
    %3033 = vmatprep.subr.mxu0 %v2890
    %3034 = vmatpush1.msra.mxu0 %v2889
    %3035 = vmatprep.subr.mxu0 %v2894
    %3036 = vmatpush1.msra.mxu0 %v2893
    %3037 = vmatprep.subr.mxu0 %v2898
    %3038 = vmatpush1.msra.mxu0 %v2897
    %3039 = vmatprep.subr.mxu0 %v2902
    %3040 = vmatpush1.msra.mxu0 %v2901
    %3041 = vmatprep.subr.mxu0 %v2906
    %3042 = vmatpush1.msra.mxu0 %v2905
    %3043 = vmatprep.subr.mxu0 %v2910
    %3044 = vmatpush1.msra.mxu0 %v2909
    %3045 = vmatprep.subr.mxu0 %v2914
    %3046 = vmatpush1.msra.mxu0 %v2913
    %3047 = vmatprep.subr.mxu0 %v2918
    %3048 = vmatpush1.msra.mxu0 %v2917
    %3049 = vmatprep.subr.mxu0 %v2922
    %3050 = vmatpush1.msra.mxu0 %v2921
    %3051 = vmatprep.subr.mxu0 %v2926
    %3052 = vmatpush1.msra.mxu0 %v2925
    %3053 = vmatprep.subr.mxu0 %v2930
    %3054 = vmatpush1.msra.mxu0 %v2929
    %3055 = vmatprep.subr.mxu0 %v2934
    %3056 = vmatpush1.msra.mxu0 %v2933
    %3057 = vmatprep.subr.mxu0 %v2938
    %3058 = vmatpush1.msra.mxu0 %v2937
    %3059 = vmatprep.subr.mxu0 %v2942
    %3060 = vmatpush1.msra.mxu0 %v2941
    %3061 = vmatprep.subr.mxu0 %v2946
    %3062 = vmatpush1.msra.mxu0 %v2945
    %3063 = vmatprep.subr.mxu0 %v2950
    %3064 = vmatpush1.msra.mxu0 %v2949
    %3065 = vmatprep.subr.mxu0 %v2954
    %3066 = vmatpush1.msra.mxu0 %v2953
    %3067 = vmatprep.subr.mxu0 %v2958
    %3068 = vmatpush1.msra.mxu0 %v2957
    %3069 = vmatprep.subr.mxu0 %v2962
    %3070 = vmatpush1.msra.mxu0 %v2961
    %3071 = vmatprep.subr.mxu0 %v2966
    %3072 = vmatpush1.msra.mxu0 %v2965
    %3073 = vmatprep.subr.mxu0 %v2970
    %3074 = vmatpush1.msra.mxu0 %v2969
    %3075 = vmatprep.subr.mxu0 %v2974
    %3076 = vmatpush1.msra.mxu0 %v2973
    %3077 = vmatprep.subr.mxu0 %v2978
    %3078 = vmatpush1.msra.mxu0 %v2977
    %3079 = vmatprep.subr.mxu0 %v2982
    %3080 = vmatpush1.msra.mxu0 %v2981
    %3081 = vmatprep.subr.mxu0 %v2986
    %3082 = vmatpush1.msra.mxu0 %v2985
    %3083 = vmatprep.subr.mxu0 %v2990
    %3084 = vmatpush1.msra.mxu0 %v2989
    %3085 = vmatprep.subr.mxu0 %v2994
    %3086 = vmatpush1.msra.mxu0 %v2993
    %3087 = vmatprep.subr.mxu0 %v2998
    %3088 = vmatpush1.msra.mxu0 %v2997
    %3089 = vmatprep.subr.mxu0 %v3002
    %3090 = vmatpush1.msra.mxu0 %v3001
    %3091 = vmatprep.mubr.f32.mxu0 %v2812
    %3092 = vmatmul.mubr.f32.gmra.mrb[0].mxu0 %v2811
    %v3093 = vpop.f32.mrb[0].mxu0
    %v3094 = vadd.f32 %v3010, %v3093
    %v3095 = vpop.f32.mrb[0].mxu0
    %v3096 = vadd.f32 %v3014, %v3095
    %3097 = vdwg.mxu0
    %3098 = vmatprep.subr.mxu0 %v2880
    %3099 = vmatpush1.msra.mxu0 %v2879
    %3100 = vmatprep.subr.mxu0 %v2884
    %3101 = vmatpush1.msra.mxu0 %v2883
    %3102 = vmatprep.subr.mxu0 %v2888
    %3103 = vmatpush1.msra.mxu0 %v2887
    %3104 = vmatprep.subr.mxu0 %v2892
    %3105 = vmatpush1.msra.mxu0 %v2891
    %3106 = vmatprep.subr.mxu0 %v2896
    %3107 = vmatpush1.msra.mxu0 %v2895
    %3108 = vmatprep.subr.mxu0 %v2900
    %3109 = vmatpush1.msra.mxu0 %v2899
    %3110 = vmatprep.subr.mxu0 %v2904
    %3111 = vmatpush1.msra.mxu0 %v2903
    %3112 = vmatprep.subr.mxu0 %v2908
    %3113 = vmatpush1.msra.mxu0 %v2907
    %3114 = vmatprep.subr.mxu0 %v2912
    %3115 = vmatpush1.msra.mxu0 %v2911
    %3116 = vmatprep.subr.mxu0 %v2916
    %3117 = vmatpush1.msra.mxu0 %v2915
    %3118 = vmatprep.subr.mxu0 %v2920
    %3119 = vmatpush1.msra.mxu0 %v2919
    %3120 = vmatprep.subr.mxu0 %v2924
    %3121 = vmatpush1.msra.mxu0 %v2923
    %3122 = vmatprep.subr.mxu0 %v2928
    %3123 = vmatpush1.msra.mxu0 %v2927
    %3124 = vmatprep.subr.mxu0 %v2932
    %3125 = vmatpush1.msra.mxu0 %v2931
    %3126 = vmatprep.subr.mxu0 %v2936
    %3127 = vmatpush1.msra.mxu0 %v2935
    %3128 = vmatprep.subr.mxu0 %v2940
    %3129 = vmatpush1.msra.mxu0 %v2939
    %3130 = vmatprep.subr.mxu0 %v2944
    %3131 = vmatpush1.msra.mxu0 %v2943
    %3132 = vmatprep.subr.mxu0 %v2948
    %3133 = vmatpush1.msra.mxu0 %v2947
    %3134 = vmatprep.subr.mxu0 %v2952
    %3135 = vmatpush1.msra.mxu0 %v2951
    %3136 = vmatprep.subr.mxu0 %v2956
    %3137 = vmatpush1.msra.mxu0 %v2955
    %3138 = vmatprep.subr.mxu0 %v2960
    %3139 = vmatpush1.msra.mxu0 %v2959
    %3140 = vmatprep.subr.mxu0 %v2964
    %3141 = vmatpush1.msra.mxu0 %v2963
    %3142 = vmatprep.subr.mxu0 %v2968
    %3143 = vmatpush1.msra.mxu0 %v2967
    %3144 = vmatprep.subr.mxu0 %v2972
    %3145 = vmatpush1.msra.mxu0 %v2971
    %3146 = vmatprep.subr.mxu0 %v2976
    %3147 = vmatpush1.msra.mxu0 %v2975
    %3148 = vmatprep.subr.mxu0 %v2980
    %3149 = vmatpush1.msra.mxu0 %v2979
    %3150 = vmatprep.subr.mxu0 %v2984
    %3151 = vmatpush1.msra.mxu0 %v2983
    %3152 = vmatprep.subr.mxu0 %v2988
    %3153 = vmatpush1.msra.mxu0 %v2987
    %3154 = vmatprep.subr.mxu0 %v2992
    %3155 = vmatpush1.msra.mxu0 %v2991
    %3156 = vmatprep.subr.mxu0 %v2996
    %3157 = vmatpush1.msra.mxu0 %v2995
    %3158 = vmatprep.subr.mxu0 %v3000
    %3159 = vmatpush1.msra.mxu0 %v2999
    %3160 = vmatprep.subr.mxu0 %v3004
    %3161 = vmatpush1.msra.mxu0 %v3003
    %3162 = vmatprep.mubr.f32.mxu0 %v2812
    %3163 = vmatmul.mubr.f32.gmra.mrb[0].mxu0 %v2811
    %v3164 = vpop.f32.mrb[0].mxu0
    %v3165 = vadd.f32 %v3018, %v3164
    %v3166 = vpop.f32.mrb[0].mxu0
    %v3167 = vadd.f32 %v3022, %v3166
    %3168 = vdwg.mxu0
    %vm3169 = vcmp.gt.f32.partialorder %v3094, 0.0
    %vm3170 = vcmp.gt.f32.partialorder %v3096, 0.0
    %vm3171 = vcmp.gt.f32.partialorder %v3165, 0.0
    %vm3172 = vcmp.gt.f32.partialorder %v3167, 0.0
    %v3173 = vmul.f32 %v3094, 0.2
    %v3174 = vmul.f32 %v3096, 0.2
    %v3175 = vmul.f32 %v3165, 0.2
    %v3176 = vmul.f32 %v3167, 0.2
    %v3177 = vsel %vm3169, %v3094, %v3173
    %v3178 = vsel %vm3170, %v3096, %v3174
    %v3179 = vsel %vm3171, %v3165, %v3175
    %v3180 = vsel %vm3172, %v3167, %v3176
    %v3181 = vld [vmem:[#allocation10] sm:$0xff]
    %v3182 = vld [vmem:[#allocation10 + $0x8] sm:$0xff]
    %v3183 = vld [vmem:[#allocation10 + $0x10] sm:$0xff]
    %v3184 = vld [vmem:[#allocation10 + $0x18] sm:$0xff]
    %v3185 = vld [vmem:[#allocation10 + $0x20] sm:$0xff]
    %v3186 = vld [vmem:[#allocation10 + $0x28] sm:$0xff]
    %v3187 = vld [vmem:[#allocation10 + $0x30] sm:$0xff]
    %v3188 = vld [vmem:[#allocation10 + $0x38] sm:$0xff]
    %v3189 = vld [vmem:[#allocation10 + $0x40] sm:$0xff]
    %v3190 = vld [vmem:[#allocation10 + $0x48] sm:$0xff]
    %v3191 = vld [vmem:[#allocation10 + $0x50] sm:$0xff]
    %v3192 = vld [vmem:[#allocation10 + $0x58] sm:$0xff]
    %v3193 = vld [vmem:[#allocation10 + $0x60] sm:$0xff]
    %v3194 = vld [vmem:[#allocation10 + $0x68] sm:$0xff]
    %v3195 = vld [vmem:[#allocation10 + $0x70] sm:$0xff]
    %v3196 = vld [vmem:[#allocation10 + $0x78] sm:$0xff]
    %v3197 = vld [vmem:[#allocation10 + $0x80] sm:$0xff]
    %v3198 = vld [vmem:[#allocation10 + $0x88] sm:$0xff]
    %v3199 = vld [vmem:[#allocation10 + $0x90] sm:$0xff]
    %v3200 = vld [vmem:[#allocation10 + $0x98] sm:$0xff]
    %v3201 = vld [vmem:[#allocation10 + $0xa0] sm:$0xff]
    %v3202 = vld [vmem:[#allocation10 + $0xa8] sm:$0xff]
    %v3203 = vld [vmem:[#allocation10 + $0xb0] sm:$0xff]
    %v3204 = vld [vmem:[#allocation10 + $0xb8] sm:$0xff]
    %v3205 = vld [vmem:[#allocation10 + $0xc0] sm:$0xff]
    %v3206 = vld [vmem:[#allocation10 + $0xc8] sm:$0xff]
    %v3207 = vld [vmem:[#allocation10 + $0xd0] sm:$0xff]
    %v3208 = vld [vmem:[#allocation10 + $0xd8] sm:$0xff]
    %v3209 = vld [vmem:[#allocation10 + $0xe0] sm:$0xff]
    %v3210 = vld [vmem:[#allocation10 + $0xe8] sm:$0xff]
    %v3211 = vld [vmem:[#allocation10 + $0xf0] sm:$0xff]
    %v3212 = vld [vmem:[#allocation10 + $0xf8] sm:$0xff]
    %v3213 = vld [vmem:[#allocation10 + $0x100] sm:$0xff]
    %v3214 = vld [vmem:[#allocation10 + $0x108] sm:$0xff]
    %v3215 = vld [vmem:[#allocation10 + $0x110] sm:$0xff]
    %v3216 = vld [vmem:[#allocation10 + $0x118] sm:$0xff]
    %v3217 = vld [vmem:[#allocation10 + $0x120] sm:$0xff]
    %v3218 = vld [vmem:[#allocation10 + $0x128] sm:$0xff]
    %v3219 = vld [vmem:[#allocation10 + $0x130] sm:$0xff]
    %v3220 = vld [vmem:[#allocation10 + $0x138] sm:$0xff]
    %v3221 = vld [vmem:[#allocation10 + $0x140] sm:$0xff]
    %v3222 = vld [vmem:[#allocation10 + $0x148] sm:$0xff]
    %v3223 = vld [vmem:[#allocation10 + $0x150] sm:$0xff]
    %v3224 = vld [vmem:[#allocation10 + $0x158] sm:$0xff]
    %v3225 = vld [vmem:[#allocation10 + $0x160] sm:$0xff]
    %v3226 = vld [vmem:[#allocation10 + $0x168] sm:$0xff]
    %v3227 = vld [vmem:[#allocation10 + $0x170] sm:$0xff]
    %v3228 = vld [vmem:[#allocation10 + $0x178] sm:$0xff]
    %v3229 = vld [vmem:[#allocation10 + $0x180] sm:$0xff]
    %v3230 = vld [vmem:[#allocation10 + $0x188] sm:$0xff]
    %v3231 = vld [vmem:[#allocation10 + $0x190] sm:$0xff]
    %v3232 = vld [vmem:[#allocation10 + $0x198] sm:$0xff]
    %v3233 = vld [vmem:[#allocation10 + $0x1a0] sm:$0xff]
    %v3234 = vld [vmem:[#allocation10 + $0x1a8] sm:$0xff]
    %v3235 = vld [vmem:[#allocation10 + $0x1b0] sm:$0xff]
    %v3236 = vld [vmem:[#allocation10 + $0x1b8] sm:$0xff]
    %v3237 = vld [vmem:[#allocation10 + $0x1c0] sm:$0xff]
    %v3238 = vld [vmem:[#allocation10 + $0x1c8] sm:$0xff]
    %v3239 = vld [vmem:[#allocation10 + $0x1d0] sm:$0xff]
    %v3240 = vld [vmem:[#allocation10 + $0x1d8] sm:$0xff]
    %v3241 = vld [vmem:[#allocation10 + $0x1e0] sm:$0xff]
    %v3242 = vld [vmem:[#allocation10 + $0x1e8] sm:$0xff]
    %v3243 = vld [vmem:[#allocation10 + $0x1f0] sm:$0xff]
    %v3244 = vld [vmem:[#allocation10 + $0x1f8] sm:$0xff]
    %v3245 = vld [vmem:[#allocation10 + $0x200] sm:$0xff]
    %v3246 = vld [vmem:[#allocation10 + $0x208] sm:$0xff]
    %v3247 = vld [vmem:[#allocation10 + $0x210] sm:$0xff]
    %v3248 = vld [vmem:[#allocation10 + $0x218] sm:$0xff]
    %v3249 = vld [vmem:[#allocation10 + $0x220] sm:$0xff]
    %v3250 = vld [vmem:[#allocation10 + $0x228] sm:$0xff]
    %v3251 = vld [vmem:[#allocation10 + $0x230] sm:$0xff]
    %v3252 = vld [vmem:[#allocation10 + $0x238] sm:$0xff]
    %v3253 = vld [vmem:[#allocation10 + $0x240] sm:$0xff]
    %v3254 = vld [vmem:[#allocation10 + $0x248] sm:$0xff]
    %v3255 = vld [vmem:[#allocation10 + $0x250] sm:$0xff]
    %v3256 = vld [vmem:[#allocation10 + $0x258] sm:$0xff]
    %v3257 = vld [vmem:[#allocation10 + $0x260] sm:$0xff]
    %v3258 = vld [vmem:[#allocation10 + $0x268] sm:$0xff]
    %v3259 = vld [vmem:[#allocation10 + $0x270] sm:$0xff]
    %v3260 = vld [vmem:[#allocation10 + $0x278] sm:$0xff]
    %v3261 = vld [vmem:[#allocation10 + $0x280] sm:$0xff]
    %v3262 = vld [vmem:[#allocation10 + $0x288] sm:$0xff]
    %v3263 = vld [vmem:[#allocation10 + $0x290] sm:$0xff]
    %v3264 = vld [vmem:[#allocation10 + $0x298] sm:$0xff]
    %v3265 = vld [vmem:[#allocation10 + $0x2a0] sm:$0xff]
    %v3266 = vld [vmem:[#allocation10 + $0x2a8] sm:$0xff]
    %v3267 = vld [vmem:[#allocation10 + $0x2b0] sm:$0xff]
    %v3268 = vld [vmem:[#allocation10 + $0x2b8] sm:$0xff]
    %v3269 = vld [vmem:[#allocation10 + $0x2c0] sm:$0xff]
    %v3270 = vld [vmem:[#allocation10 + $0x2c8] sm:$0xff]
    %v3271 = vld [vmem:[#allocation10 + $0x2d0] sm:$0xff]
    %v3272 = vld [vmem:[#allocation10 + $0x2d8] sm:$0xff]
    %v3273 = vld [vmem:[#allocation10 + $0x2e0] sm:$0xff]
    %v3274 = vld [vmem:[#allocation10 + $0x2e8] sm:$0xff]
    %v3275 = vld [vmem:[#allocation10 + $0x2f0] sm:$0xff]
    %v3276 = vld [vmem:[#allocation10 + $0x2f8] sm:$0xff]
    %v3277 = vld [vmem:[#allocation10 + $0x300] sm:$0xff]
    %v3278 = vld [vmem:[#allocation10 + $0x308] sm:$0xff]
    %v3279 = vld [vmem:[#allocation10 + $0x310] sm:$0xff]
    %v3280 = vld [vmem:[#allocation10 + $0x318] sm:$0xff]
    %v3281 = vld [vmem:[#allocation10 + $0x320] sm:$0xff]
    %v3282 = vld [vmem:[#allocation10 + $0x328] sm:$0xff]
    %v3283 = vld [vmem:[#allocation10 + $0x330] sm:$0xff]
    %v3284 = vld [vmem:[#allocation10 + $0x338] sm:$0xff]
    %v3285 = vld [vmem:[#allocation10 + $0x340] sm:$0xff]
    %v3286 = vld [vmem:[#allocation10 + $0x348] sm:$0xff]
    %v3287 = vld [vmem:[#allocation10 + $0x350] sm:$0xff]
    %v3288 = vld [vmem:[#allocation10 + $0x358] sm:$0xff]
    %v3289 = vld [vmem:[#allocation10 + $0x360] sm:$0xff]
    %v3290 = vld [vmem:[#allocation10 + $0x368] sm:$0xff]
    %v3291 = vld [vmem:[#allocation10 + $0x370] sm:$0xff]
    %v3292 = vld [vmem:[#allocation10 + $0x378] sm:$0xff]
    %v3293 = vld [vmem:[#allocation10 + $0x380] sm:$0xff]
    %v3294 = vld [vmem:[#allocation10 + $0x388] sm:$0xff]
    %v3295 = vld [vmem:[#allocation10 + $0x390] sm:$0xff]
    %v3296 = vld [vmem:[#allocation10 + $0x398] sm:$0xff]
    %v3297 = vld [vmem:[#allocation10 + $0x3a0] sm:$0xff]
    %v3298 = vld [vmem:[#allocation10 + $0x3a8] sm:$0xff]
    %v3299 = vld [vmem:[#allocation10 + $0x3b0] sm:$0xff]
    %v3300 = vld [vmem:[#allocation10 + $0x3b8] sm:$0xff]
    %v3301 = vld [vmem:[#allocation10 + $0x3c0] sm:$0xff]
    %v3302 = vld [vmem:[#allocation10 + $0x3c8] sm:$0xff]
    %v3303 = vld [vmem:[#allocation10 + $0x3d0] sm:$0xff]
    %v3304 = vld [vmem:[#allocation10 + $0x3d8] sm:$0xff]
    %v3305 = vld [vmem:[#allocation10 + $0x3e0] sm:$0xff]
    %v3306 = vld [vmem:[#allocation10 + $0x3e8] sm:$0xff]
    %v3307 = vld [vmem:[#allocation10 + $0x3f0] sm:$0xff]
    %v3308 = vld [vmem:[#allocation10 + $0x3f8] sm:$0xff]
    %v3309 = vunpack.c.l.bf16 %v3181
    %v3310 = vunpack.c.h.bf16 %v3181
    %v3311 = vunpack.c.l.bf16 %v3182
    %v3312 = vunpack.c.h.bf16 %v3182
    %v3313 = vunpack.c.l.bf16 %v3183
    %v3314 = vunpack.c.h.bf16 %v3183
    %v3315 = vunpack.c.l.bf16 %v3184
    %v3316 = vunpack.c.h.bf16 %v3184
    %v3317 = vunpack.c.l.bf16 %v3185
    %v3318 = vunpack.c.h.bf16 %v3185
    %v3319 = vunpack.c.l.bf16 %v3186
    %v3320 = vunpack.c.h.bf16 %v3186
    %v3321 = vunpack.c.l.bf16 %v3187
    %v3322 = vunpack.c.h.bf16 %v3187
    %v3323 = vunpack.c.l.bf16 %v3188
    %v3324 = vunpack.c.h.bf16 %v3188
    %v3325 = vunpack.c.l.bf16 %v3189
    %v3326 = vunpack.c.h.bf16 %v3189
    %v3327 = vunpack.c.l.bf16 %v3190
    %v3328 = vunpack.c.h.bf16 %v3190
    %v3329 = vunpack.c.l.bf16 %v3191
    %v3330 = vunpack.c.h.bf16 %v3191
    %v3331 = vunpack.c.l.bf16 %v3192
    %v3332 = vunpack.c.h.bf16 %v3192
    %v3333 = vunpack.c.l.bf16 %v3193
    %v3334 = vunpack.c.h.bf16 %v3193
    %v3335 = vunpack.c.l.bf16 %v3194
    %v3336 = vunpack.c.h.bf16 %v3194
    %v3337 = vunpack.c.l.bf16 %v3195
    %v3338 = vunpack.c.h.bf16 %v3195
    %v3339 = vunpack.c.l.bf16 %v3196
    %v3340 = vunpack.c.h.bf16 %v3196
    %v3341 = vunpack.c.l.bf16 %v3197
    %v3342 = vunpack.c.h.bf16 %v3197
    %v3343 = vunpack.c.l.bf16 %v3198
    %v3344 = vunpack.c.h.bf16 %v3198
    %v3345 = vunpack.c.l.bf16 %v3199
    %v3346 = vunpack.c.h.bf16 %v3199
    %v3347 = vunpack.c.l.bf16 %v3200
    %v3348 = vunpack.c.h.bf16 %v3200
    %v3349 = vunpack.c.l.bf16 %v3201
    %v3350 = vunpack.c.h.bf16 %v3201
    %v3351 = vunpack.c.l.bf16 %v3202
    %v3352 = vunpack.c.h.bf16 %v3202
    %v3353 = vunpack.c.l.bf16 %v3203
    %v3354 = vunpack.c.h.bf16 %v3203
    %v3355 = vunpack.c.l.bf16 %v3204
    %v3356 = vunpack.c.h.bf16 %v3204
    %v3357 = vunpack.c.l.bf16 %v3205
    %v3358 = vunpack.c.h.bf16 %v3205
    %v3359 = vunpack.c.l.bf16 %v3206
    %v3360 = vunpack.c.h.bf16 %v3206
    %v3361 = vunpack.c.l.bf16 %v3207
    %v3362 = vunpack.c.h.bf16 %v3207
    %v3363 = vunpack.c.l.bf16 %v3208
    %v3364 = vunpack.c.h.bf16 %v3208
    %v3365 = vunpack.c.l.bf16 %v3209
    %v3366 = vunpack.c.h.bf16 %v3209
    %v3367 = vunpack.c.l.bf16 %v3210
    %v3368 = vunpack.c.h.bf16 %v3210
    %v3369 = vunpack.c.l.bf16 %v3211
    %v3370 = vunpack.c.h.bf16 %v3211
    %v3371 = vunpack.c.l.bf16 %v3212
    %v3372 = vunpack.c.h.bf16 %v3212
    %v3373 = vunpack.c.l.bf16 %v3213
    %v3374 = vunpack.c.h.bf16 %v3213
    %v3375 = vunpack.c.l.bf16 %v3214
    %v3376 = vunpack.c.h.bf16 %v3214
    %v3377 = vunpack.c.l.bf16 %v3215
    %v3378 = vunpack.c.h.bf16 %v3215
    %v3379 = vunpack.c.l.bf16 %v3216
    %v3380 = vunpack.c.h.bf16 %v3216
    %v3381 = vunpack.c.l.bf16 %v3217
    %v3382 = vunpack.c.h.bf16 %v3217
    %v3383 = vunpack.c.l.bf16 %v3218
    %v3384 = vunpack.c.h.bf16 %v3218
    %v3385 = vunpack.c.l.bf16 %v3219
    %v3386 = vunpack.c.h.bf16 %v3219
    %v3387 = vunpack.c.l.bf16 %v3220
    %v3388 = vunpack.c.h.bf16 %v3220
    %v3389 = vunpack.c.l.bf16 %v3221
    %v3390 = vunpack.c.h.bf16 %v3221
    %v3391 = vunpack.c.l.bf16 %v3222
    %v3392 = vunpack.c.h.bf16 %v3222
    %v3393 = vunpack.c.l.bf16 %v3223
    %v3394 = vunpack.c.h.bf16 %v3223
    %v3395 = vunpack.c.l.bf16 %v3224
    %v3396 = vunpack.c.h.bf16 %v3224
    %v3397 = vunpack.c.l.bf16 %v3225
    %v3398 = vunpack.c.h.bf16 %v3225
    %v3399 = vunpack.c.l.bf16 %v3226
    %v3400 = vunpack.c.h.bf16 %v3226
    %v3401 = vunpack.c.l.bf16 %v3227
    %v3402 = vunpack.c.h.bf16 %v3227
    %v3403 = vunpack.c.l.bf16 %v3228
    %v3404 = vunpack.c.h.bf16 %v3228
    %v3405 = vunpack.c.l.bf16 %v3229
    %v3406 = vunpack.c.h.bf16 %v3229
    %v3407 = vunpack.c.l.bf16 %v3230
    %v3408 = vunpack.c.h.bf16 %v3230
    %v3409 = vunpack.c.l.bf16 %v3231
    %v3410 = vunpack.c.h.bf16 %v3231
    %v3411 = vunpack.c.l.bf16 %v3232
    %v3412 = vunpack.c.h.bf16 %v3232
    %v3413 = vunpack.c.l.bf16 %v3233
    %v3414 = vunpack.c.h.bf16 %v3233
    %v3415 = vunpack.c.l.bf16 %v3234
    %v3416 = vunpack.c.h.bf16 %v3234
    %v3417 = vunpack.c.l.bf16 %v3235
    %v3418 = vunpack.c.h.bf16 %v3235
    %v3419 = vunpack.c.l.bf16 %v3236
    %v3420 = vunpack.c.h.bf16 %v3236
    %v3421 = vunpack.c.l.bf16 %v3237
    %v3422 = vunpack.c.h.bf16 %v3237
    %v3423 = vunpack.c.l.bf16 %v3238
    %v3424 = vunpack.c.h.bf16 %v3238
    %v3425 = vunpack.c.l.bf16 %v3239
    %v3426 = vunpack.c.h.bf16 %v3239
    %v3427 = vunpack.c.l.bf16 %v3240
    %v3428 = vunpack.c.h.bf16 %v3240
    %v3429 = vunpack.c.l.bf16 %v3241
    %v3430 = vunpack.c.h.bf16 %v3241
    %v3431 = vunpack.c.l.bf16 %v3242
    %v3432 = vunpack.c.h.bf16 %v3242
    %v3433 = vunpack.c.l.bf16 %v3243
    %v3434 = vunpack.c.h.bf16 %v3243
    %v3435 = vunpack.c.l.bf16 %v3244
    %v3436 = vunpack.c.h.bf16 %v3244
    %v3437 = vunpack.c.l.bf16 %v3245
    %v3438 = vunpack.c.h.bf16 %v3245
    %v3439 = vunpack.c.l.bf16 %v3246
    %v3440 = vunpack.c.h.bf16 %v3246
    %v3441 = vunpack.c.l.bf16 %v3247
    %v3442 = vunpack.c.h.bf16 %v3247
    %v3443 = vunpack.c.l.bf16 %v3248
    %v3444 = vunpack.c.h.bf16 %v3248
    %v3445 = vunpack.c.l.bf16 %v3249
    %v3446 = vunpack.c.h.bf16 %v3249
    %v3447 = vunpack.c.l.bf16 %v3250
    %v3448 = vunpack.c.h.bf16 %v3250
    %v3449 = vunpack.c.l.bf16 %v3251
    %v3450 = vunpack.c.h.bf16 %v3251
    %v3451 = vunpack.c.l.bf16 %v3252
    %v3452 = vunpack.c.h.bf16 %v3252
    %v3453 = vunpack.c.l.bf16 %v3253
    %v3454 = vunpack.c.h.bf16 %v3253
    %v3455 = vunpack.c.l.bf16 %v3254
    %v3456 = vunpack.c.h.bf16 %v3254
    %v3457 = vunpack.c.l.bf16 %v3255
    %v3458 = vunpack.c.h.bf16 %v3255
    %v3459 = vunpack.c.l.bf16 %v3256
    %v3460 = vunpack.c.h.bf16 %v3256
    %v3461 = vunpack.c.l.bf16 %v3257
    %v3462 = vunpack.c.h.bf16 %v3257
    %v3463 = vunpack.c.l.bf16 %v3258
    %v3464 = vunpack.c.h.bf16 %v3258
    %v3465 = vunpack.c.l.bf16 %v3259
    %v3466 = vunpack.c.h.bf16 %v3259
    %v3467 = vunpack.c.l.bf16 %v3260
    %v3468 = vunpack.c.h.bf16 %v3260
    %v3469 = vunpack.c.l.bf16 %v3261
    %v3470 = vunpack.c.h.bf16 %v3261
    %v3471 = vunpack.c.l.bf16 %v3262
    %v3472 = vunpack.c.h.bf16 %v3262
    %v3473 = vunpack.c.l.bf16 %v3263
    %v3474 = vunpack.c.h.bf16 %v3263
    %v3475 = vunpack.c.l.bf16 %v3264
    %v3476 = vunpack.c.h.bf16 %v3264
    %v3477 = vunpack.c.l.bf16 %v3265
    %v3478 = vunpack.c.h.bf16 %v3265
    %v3479 = vunpack.c.l.bf16 %v3266
    %v3480 = vunpack.c.h.bf16 %v3266
    %v3481 = vunpack.c.l.bf16 %v3267
    %v3482 = vunpack.c.h.bf16 %v3267
    %v3483 = vunpack.c.l.bf16 %v3268
    %v3484 = vunpack.c.h.bf16 %v3268
    %v3485 = vunpack.c.l.bf16 %v3269
    %v3486 = vunpack.c.h.bf16 %v3269
    %v3487 = vunpack.c.l.bf16 %v3270
    %v3488 = vunpack.c.h.bf16 %v3270
    %v3489 = vunpack.c.l.bf16 %v3271
    %v3490 = vunpack.c.h.bf16 %v3271
    %v3491 = vunpack.c.l.bf16 %v3272
    %v3492 = vunpack.c.h.bf16 %v3272
    %v3493 = vunpack.c.l.bf16 %v3273
    %v3494 = vunpack.c.h.bf16 %v3273
    %v3495 = vunpack.c.l.bf16 %v3274
    %v3496 = vunpack.c.h.bf16 %v3274
    %v3497 = vunpack.c.l.bf16 %v3275
    %v3498 = vunpack.c.h.bf16 %v3275
    %v3499 = vunpack.c.l.bf16 %v3276
    %v3500 = vunpack.c.h.bf16 %v3276
    %v3501 = vunpack.c.l.bf16 %v3277
    %v3502 = vunpack.c.h.bf16 %v3277
    %v3503 = vunpack.c.l.bf16 %v3278
    %v3504 = vunpack.c.h.bf16 %v3278
    %v3505 = vunpack.c.l.bf16 %v3279
    %v3506 = vunpack.c.h.bf16 %v3279
    %v3507 = vunpack.c.l.bf16 %v3280
    %v3508 = vunpack.c.h.bf16 %v3280
    %v3509 = vunpack.c.l.bf16 %v3281
    %v3510 = vunpack.c.h.bf16 %v3281
    %v3511 = vunpack.c.l.bf16 %v3282
    %v3512 = vunpack.c.h.bf16 %v3282
    %v3513 = vunpack.c.l.bf16 %v3283
    %v3514 = vunpack.c.h.bf16 %v3283
    %v3515 = vunpack.c.l.bf16 %v3284
    %v3516 = vunpack.c.h.bf16 %v3284
    %v3517 = vunpack.c.l.bf16 %v3285
    %v3518 = vunpack.c.h.bf16 %v3285
    %v3519 = vunpack.c.l.bf16 %v3286
    %v3520 = vunpack.c.h.bf16 %v3286
    %v3521 = vunpack.c.l.bf16 %v3287
    %v3522 = vunpack.c.h.bf16 %v3287
    %v3523 = vunpack.c.l.bf16 %v3288
    %v3524 = vunpack.c.h.bf16 %v3288
    %v3525 = vunpack.c.l.bf16 %v3289
    %v3526 = vunpack.c.h.bf16 %v3289
    %v3527 = vunpack.c.l.bf16 %v3290
    %v3528 = vunpack.c.h.bf16 %v3290
    %v3529 = vunpack.c.l.bf16 %v3291
    %v3530 = vunpack.c.h.bf16 %v3291
    %v3531 = vunpack.c.l.bf16 %v3292
    %v3532 = vunpack.c.h.bf16 %v3292
    %v3533 = vunpack.c.l.bf16 %v3293
    %v3534 = vunpack.c.h.bf16 %v3293
    %v3535 = vunpack.c.l.bf16 %v3294
    %v3536 = vunpack.c.h.bf16 %v3294
    %v3537 = vunpack.c.l.bf16 %v3295
    %v3538 = vunpack.c.h.bf16 %v3295
    %v3539 = vunpack.c.l.bf16 %v3296
    %v3540 = vunpack.c.h.bf16 %v3296
    %v3541 = vunpack.c.l.bf16 %v3297
    %v3542 = vunpack.c.h.bf16 %v3297
    %v3543 = vunpack.c.l.bf16 %v3298
    %v3544 = vunpack.c.h.bf16 %v3298
    %v3545 = vunpack.c.l.bf16 %v3299
    %v3546 = vunpack.c.h.bf16 %v3299
    %v3547 = vunpack.c.l.bf16 %v3300
    %v3548 = vunpack.c.h.bf16 %v3300
    %v3549 = vunpack.c.l.bf16 %v3301
    %v3550 = vunpack.c.h.bf16 %v3301
    %v3551 = vunpack.c.l.bf16 %v3302
    %v3552 = vunpack.c.h.bf16 %v3302
    %v3553 = vunpack.c.l.bf16 %v3303
    %v3554 = vunpack.c.h.bf16 %v3303
    %v3555 = vunpack.c.l.bf16 %v3304
    %v3556 = vunpack.c.h.bf16 %v3304
    %v3557 = vunpack.c.l.bf16 %v3305
    %v3558 = vunpack.c.h.bf16 %v3305
    %v3559 = vunpack.c.l.bf16 %v3306
    %v3560 = vunpack.c.h.bf16 %v3306
    %v3561 = vunpack.c.l.bf16 %v3307
    %v3562 = vunpack.c.h.bf16 %v3307
    %v3563 = vunpack.c.l.bf16 %v3308
    %v3564 = vunpack.c.h.bf16 %v3308
    %v3565 = vld [vmem:[%s11] sm:$0xf]
    %v3567 = vlaneseq
    %v3568 = vshrl.u32 %v3567, 7
    %v3569 = vsub.s32 0, %v3568
    %v3570 = vrot.slane %v3565, %v3569
    %v3571 = vlaneseq
    %v3572 = vshrl.u32 %v3571, 7
    %v3573 = vsub.s32 1, %v3572
    %v3574 = vrot.slane %v3565, %v3573
    %v3575 = vlaneseq
    %v3576 = vshrl.u32 %v3575, 7
    %v3577 = vsub.s32 2, %v3576
    %v3578 = vrot.slane %v3565, %v3577
    %v3579 = vlaneseq
    %v3580 = vshrl.u32 %v3579, 7
    %v3581 = vsub.s32 3, %v3580
    %v3582 = vrot.slane %v3565, %v3581
    %3587 = vmatprep.subr.mxu0 %v3310
    %3588 = vmatpush1.msra.mxu0 %v3309
    %3589 = vmatprep.subr.mxu0 %v3314
    %3590 = vmatpush1.msra.mxu0 %v3313
    %3591 = vmatprep.subr.mxu0 %v3318
    %3592 = vmatpush1.msra.mxu0 %v3317
    %3593 = vmatprep.subr.mxu0 %v3322
    %3594 = vmatpush1.msra.mxu0 %v3321
    %3595 = vmatprep.subr.mxu0 %v3326
    %3596 = vmatpush1.msra.mxu0 %v3325
    %3597 = vmatprep.subr.mxu0 %v3330
    %3598 = vmatpush1.msra.mxu0 %v3329
    %3599 = vmatprep.subr.mxu0 %v3334
    %3600 = vmatpush1.msra.mxu0 %v3333
    %3601 = vmatprep.subr.mxu0 %v3338
    %3602 = vmatpush1.msra.mxu0 %v3337
    %3603 = vmatprep.subr.mxu0 %v3342
    %3604 = vmatpush1.msra.mxu0 %v3341
    %3605 = vmatprep.subr.mxu0 %v3346
    %3606 = vmatpush1.msra.mxu0 %v3345
    %3607 = vmatprep.subr.mxu0 %v3350
    %3608 = vmatpush1.msra.mxu0 %v3349
    %3609 = vmatprep.subr.mxu0 %v3354
    %3610 = vmatpush1.msra.mxu0 %v3353
    %3611 = vmatprep.subr.mxu0 %v3358
    %3612 = vmatpush1.msra.mxu0 %v3357
    %3613 = vmatprep.subr.mxu0 %v3362
    %3614 = vmatpush1.msra.mxu0 %v3361
    %3615 = vmatprep.subr.mxu0 %v3366
    %3616 = vmatpush1.msra.mxu0 %v3365
    %3617 = vmatprep.subr.mxu0 %v3370
    %3618 = vmatpush1.msra.mxu0 %v3369
    %3619 = vmatprep.subr.mxu0 %v3374
    %3620 = vmatpush1.msra.mxu0 %v3373
    %3621 = vmatprep.subr.mxu0 %v3378
    %3622 = vmatpush1.msra.mxu0 %v3377
    %3623 = vmatprep.subr.mxu0 %v3382
    %3624 = vmatpush1.msra.mxu0 %v3381
    %3625 = vmatprep.subr.mxu0 %v3386
    %3626 = vmatpush1.msra.mxu0 %v3385
    %3627 = vmatprep.subr.mxu0 %v3390
    %3628 = vmatpush1.msra.mxu0 %v3389
    %3629 = vmatprep.subr.mxu0 %v3394
    %3630 = vmatpush1.msra.mxu0 %v3393
    %3631 = vmatprep.subr.mxu0 %v3398
    %3632 = vmatpush1.msra.mxu0 %v3397
    %3633 = vmatprep.subr.mxu0 %v3402
    %3634 = vmatpush1.msra.mxu0 %v3401
    %3635 = vmatprep.subr.mxu0 %v3406
    %3636 = vmatpush1.msra.mxu0 %v3405
    %3637 = vmatprep.subr.mxu0 %v3410
    %3638 = vmatpush1.msra.mxu0 %v3409
    %3639 = vmatprep.subr.mxu0 %v3414
    %3640 = vmatpush1.msra.mxu0 %v3413
    %3641 = vmatprep.subr.mxu0 %v3418
    %3642 = vmatpush1.msra.mxu0 %v3417
    %3643 = vmatprep.subr.mxu0 %v3422
    %3644 = vmatpush1.msra.mxu0 %v3421
    %3645 = vmatprep.subr.mxu0 %v3426
    %3646 = vmatpush1.msra.mxu0 %v3425
    %3647 = vmatprep.subr.mxu0 %v3430
    %3648 = vmatpush1.msra.mxu0 %v3429
    %3649 = vmatprep.subr.mxu0 %v3434
    %3650 = vmatpush1.msra.mxu0 %v3433
    %3651 = vmatprep.mubr.f32.mxu0 %v3178
    %3652 = vmatmul.mubr.f32.gmra.mrb[0].mxu0 %v3177
    %v3653 = vpop.f32.mrb[0].mxu0
    %v3654 = vadd.f32 %v3570, %v3653
    %v3655 = vpop.f32.mrb[0].mxu0
    %v3656 = vadd.f32 %v3574, %v3655
    %3657 = vdwg.mxu0
    %3658 = vmatprep.subr.mxu0 %v3438
    %3659 = vmatpush1.msra.mxu0 %v3437
    %3660 = vmatprep.subr.mxu0 %v3442
    %3661 = vmatpush1.msra.mxu0 %v3441
    %3662 = vmatprep.subr.mxu0 %v3446
    %3663 = vmatpush1.msra.mxu0 %v3445
    %3664 = vmatprep.subr.mxu0 %v3450
    %3665 = vmatpush1.msra.mxu0 %v3449
    %3666 = vmatprep.subr.mxu0 %v3454
    %3667 = vmatpush1.msra.mxu0 %v3453
    %3668 = vmatprep.subr.mxu0 %v3458
    %3669 = vmatpush1.msra.mxu0 %v3457
    %3670 = vmatprep.subr.mxu0 %v3462
    %3671 = vmatpush1.msra.mxu0 %v3461
    %3672 = vmatprep.subr.mxu0 %v3466
    %3673 = vmatpush1.msra.mxu0 %v3465
    %3674 = vmatprep.subr.mxu0 %v3470
    %3675 = vmatpush1.msra.mxu0 %v3469
    %3676 = vmatprep.subr.mxu0 %v3474
    %3677 = vmatpush1.msra.mxu0 %v3473
    %3678 = vmatprep.subr.mxu0 %v3478
    %3679 = vmatpush1.msra.mxu0 %v3477
    %3680 = vmatprep.subr.mxu0 %v3482
    %3681 = vmatpush1.msra.mxu0 %v3481
    %3682 = vmatprep.subr.mxu0 %v3486
    %3683 = vmatpush1.msra.mxu0 %v3485
    %3684 = vmatprep.subr.mxu0 %v3490
    %3685 = vmatpush1.msra.mxu0 %v3489
    %3686 = vmatprep.subr.mxu0 %v3494
    %3687 = vmatpush1.msra.mxu0 %v3493
    %3688 = vmatprep.subr.mxu0 %v3498
    %3689 = vmatpush1.msra.mxu0 %v3497
    %3690 = vmatprep.subr.mxu0 %v3502
    %3691 = vmatpush1.msra.mxu0 %v3501
    %3692 = vmatprep.subr.mxu0 %v3506
    %3693 = vmatpush1.msra.mxu0 %v3505
    %3694 = vmatprep.subr.mxu0 %v3510
    %3695 = vmatpush1.msra.mxu0 %v3509
    %3696 = vmatprep.subr.mxu0 %v3514
    %3697 = vmatpush1.msra.mxu0 %v3513
    %3698 = vmatprep.subr.mxu0 %v3518
    %3699 = vmatpush1.msra.mxu0 %v3517
    %3700 = vmatprep.subr.mxu0 %v3522
    %3701 = vmatpush1.msra.mxu0 %v3521
    %3702 = vmatprep.subr.mxu0 %v3526
    %3703 = vmatpush1.msra.mxu0 %v3525
    %3704 = vmatprep.subr.mxu0 %v3530
    %3705 = vmatpush1.msra.mxu0 %v3529
    %3706 = vmatprep.subr.mxu0 %v3534
    %3707 = vmatpush1.msra.mxu0 %v3533
    %3708 = vmatprep.subr.mxu0 %v3538
    %3709 = vmatpush1.msra.mxu0 %v3537
    %3710 = vmatprep.subr.mxu0 %v3542
    %3711 = vmatpush1.msra.mxu0 %v3541
    %3712 = vmatprep.subr.mxu0 %v3546
    %3713 = vmatpush1.msra.mxu0 %v3545
    %3714 = vmatprep.subr.mxu0 %v3550
    %3715 = vmatpush1.msra.mxu0 %v3549
    %3716 = vmatprep.subr.mxu0 %v3554
    %3717 = vmatpush1.msra.mxu0 %v3553
    %3718 = vmatprep.subr.mxu0 %v3558
    %3719 = vmatpush1.msra.mxu0 %v3557
    %3720 = vmatprep.subr.mxu0 %v3562
    %3721 = vmatpush1.msra.mxu0 %v3561
    %3722 = vmatprep.mubr.f32.mxu0 %v3180
    %3723 = vmatmul.mubr.f32.gmra.mrb[0].mxu0 %v3179
    %v3724 = vpop.f32.mrb[0].mxu0
    %v3725 = vadd.f32 %v3654, %v3724
    %v3726 = vpop.f32.mrb[0].mxu0
    %v3727 = vadd.f32 %v3656, %v3726
    %3728 = vdwg.mxu0
    %3729 = vmatprep.subr.mxu0 %v3312
    %3730 = vmatpush1.msra.mxu0 %v3311
    %3731 = vmatprep.subr.mxu0 %v3316
    %3732 = vmatpush1.msra.mxu0 %v3315
    %3733 = vmatprep.subr.mxu0 %v3320
    %3734 = vmatpush1.msra.mxu0 %v3319
    %3735 = vmatprep.subr.mxu0 %v3324
    %3736 = vmatpush1.msra.mxu0 %v3323
    %3737 = vmatprep.subr.mxu0 %v3328
    %3738 = vmatpush1.msra.mxu0 %v3327
    %3739 = vmatprep.subr.mxu0 %v3332
    %3740 = vmatpush1.msra.mxu0 %v3331
    %3741 = vmatprep.subr.mxu0 %v3336
    %3742 = vmatpush1.msra.mxu0 %v3335
    %3743 = vmatprep.subr.mxu0 %v3340
    %3744 = vmatpush1.msra.mxu0 %v3339
    %3745 = vmatprep.subr.mxu0 %v3344
    %3746 = vmatpush1.msra.mxu0 %v3343
    %3747 = vmatprep.subr.mxu0 %v3348
    %3748 = vmatpush1.msra.mxu0 %v3347
    %3749 = vmatprep.subr.mxu0 %v3352
    %3750 = vmatpush1.msra.mxu0 %v3351
    %3751 = vmatprep.subr.mxu0 %v3356
    %3752 = vmatpush1.msra.mxu0 %v3355
    %3753 = vmatprep.subr.mxu0 %v3360
    %3754 = vmatpush1.msra.mxu0 %v3359
    %3755 = vmatprep.subr.mxu0 %v3364
    %3756 = vmatpush1.msra.mxu0 %v3363
    %3757 = vmatprep.subr.mxu0 %v3368
    %3758 = vmatpush1.msra.mxu0 %v3367
    %3759 = vmatprep.subr.mxu0 %v3372
    %3760 = vmatpush1.msra.mxu0 %v3371
    %3761 = vmatprep.subr.mxu0 %v3376
    %3762 = vmatpush1.msra.mxu0 %v3375
    %3763 = vmatprep.subr.mxu0 %v3380
    %3764 = vmatpush1.msra.mxu0 %v3379
    %3765 = vmatprep.subr.mxu0 %v3384
    %3766 = vmatpush1.msra.mxu0 %v3383
    %3767 = vmatprep.subr.mxu0 %v3388
    %3768 = vmatpush1.msra.mxu0 %v3387
    %3769 = vmatprep.subr.mxu0 %v3392
    %3770 = vmatpush1.msra.mxu0 %v3391
    %3771 = vmatprep.subr.mxu0 %v3396
    %3772 = vmatpush1.msra.mxu0 %v3395
    %3773 = vmatprep.subr.mxu0 %v3400
    %3774 = vmatpush1.msra.mxu0 %v3399
    %3775 = vmatprep.subr.mxu0 %v3404
    %3776 = vmatpush1.msra.mxu0 %v3403
    %3777 = vmatprep.subr.mxu0 %v3408
    %3778 = vmatpush1.msra.mxu0 %v3407
    %3779 = vmatprep.subr.mxu0 %v3412
    %3780 = vmatpush1.msra.mxu0 %v3411
    %3781 = vmatprep.subr.mxu0 %v3416
    %3782 = vmatpush1.msra.mxu0 %v3415
    %3783 = vmatprep.subr.mxu0 %v3420
    %3784 = vmatpush1.msra.mxu0 %v3419
    %3785 = vmatprep.subr.mxu0 %v3424
    %3786 = vmatpush1.msra.mxu0 %v3423
    %3787 = vmatprep.subr.mxu0 %v3428
    %3788 = vmatpush1.msra.mxu0 %v3427
    %3789 = vmatprep.subr.mxu0 %v3432
    %3790 = vmatpush1.msra.mxu0 %v3431
    %3791 = vmatprep.subr.mxu0 %v3436
    %3792 = vmatpush1.msra.mxu0 %v3435
    %3793 = vmatprep.mubr.f32.mxu0 %v3178
    %3794 = vmatmul.mubr.f32.gmra.mrb[0].mxu0 %v3177
    %v3795 = vpop.f32.mrb[0].mxu0
    %v3796 = vadd.f32 %v3578, %v3795
    %v3797 = vpop.f32.mrb[0].mxu0
    %v3798 = vadd.f32 %v3582, %v3797
    %3799 = vdwg.mxu0
    %3800 = vmatprep.subr.mxu0 %v3440
    %3801 = vmatpush1.msra.mxu0 %v3439
    %3802 = vmatprep.subr.mxu0 %v3444
    %3803 = vmatpush1.msra.mxu0 %v3443
    %3804 = vmatprep.subr.mxu0 %v3448
    %3805 = vmatpush1.msra.mxu0 %v3447
    %3806 = vmatprep.subr.mxu0 %v3452
    %3807 = vmatpush1.msra.mxu0 %v3451
    %3808 = vmatprep.subr.mxu0 %v3456
    %3809 = vmatpush1.msra.mxu0 %v3455
    %3810 = vmatprep.subr.mxu0 %v3460
    %3811 = vmatpush1.msra.mxu0 %v3459
    %3812 = vmatprep.subr.mxu0 %v3464
    %3813 = vmatpush1.msra.mxu0 %v3463
    %3814 = vmatprep.subr.mxu0 %v3468
    %3815 = vmatpush1.msra.mxu0 %v3467
    %3816 = vmatprep.subr.mxu0 %v3472
    %3817 = vmatpush1.msra.mxu0 %v3471
    %3818 = vmatprep.subr.mxu0 %v3476
    %3819 = vmatpush1.msra.mxu0 %v3475
    %3820 = vmatprep.subr.mxu0 %v3480
    %3821 = vmatpush1.msra.mxu0 %v3479
    %3822 = vmatprep.subr.mxu0 %v3484
    %3823 = vmatpush1.msra.mxu0 %v3483
    %3824 = vmatprep.subr.mxu0 %v3488
    %3825 = vmatpush1.msra.mxu0 %v3487
    %3826 = vmatprep.subr.mxu0 %v3492
    %3827 = vmatpush1.msra.mxu0 %v3491
    %3828 = vmatprep.subr.mxu0 %v3496
    %3829 = vmatpush1.msra.mxu0 %v3495
    %3830 = vmatprep.subr.mxu0 %v3500
    %3831 = vmatpush1.msra.mxu0 %v3499
    %3832 = vmatprep.subr.mxu0 %v3504
    %3833 = vmatpush1.msra.mxu0 %v3503
    %3834 = vmatprep.subr.mxu0 %v3508
    %3835 = vmatpush1.msra.mxu0 %v3507
    %3836 = vmatprep.subr.mxu0 %v3512
    %3837 = vmatpush1.msra.mxu0 %v3511
    %3838 = vmatprep.subr.mxu0 %v3516
    %3839 = vmatpush1.msra.mxu0 %v3515
    %3840 = vmatprep.subr.mxu0 %v3520
    %3841 = vmatpush1.msra.mxu0 %v3519
    %3842 = vmatprep.subr.mxu0 %v3524
    %3843 = vmatpush1.msra.mxu0 %v3523
    %3844 = vmatprep.subr.mxu0 %v3528
    %3845 = vmatpush1.msra.mxu0 %v3527
    %3846 = vmatprep.subr.mxu0 %v3532
    %3847 = vmatpush1.msra.mxu0 %v3531
    %3848 = vmatprep.subr.mxu0 %v3536
    %3849 = vmatpush1.msra.mxu0 %v3535
    %3850 = vmatprep.subr.mxu0 %v3540
    %3851 = vmatpush1.msra.mxu0 %v3539
    %3852 = vmatprep.subr.mxu0 %v3544
    %3853 = vmatpush1.msra.mxu0 %v3543
    %3854 = vmatprep.subr.mxu0 %v3548
    %3855 = vmatpush1.msra.mxu0 %v3547
    %3856 = vmatprep.subr.mxu0 %v3552
    %3857 = vmatpush1.msra.mxu0 %v3551
    %3858 = vmatprep.subr.mxu0 %v3556
    %3859 = vmatpush1.msra.mxu0 %v3555
    %3860 = vmatprep.subr.mxu0 %v3560
    %3861 = vmatpush1.msra.mxu0 %v3559
    %3862 = vmatprep.subr.mxu0 %v3564
    %3863 = vmatpush1.msra.mxu0 %v3563
    %3864 = vmatprep.mubr.f32.mxu0 %v3180
    %3865 = vmatmul.mubr.f32.gmra.mrb[0].mxu0 %v3179
    %v3866 = vpop.f32.mrb[0].mxu0
    %v3867 = vadd.f32 %v3796, %v3866
    %v3868 = vpop.f32.mrb[0].mxu0
    %v3869 = vadd.f32 %v3798, %v3868
    %3870 = vdwg.mxu0
    %vm3871 = vcmp.gt.f32.partialorder %v3725, 0.0
    %vm3872 = vcmp.gt.f32.partialorder %v3727, 0.0
    %vm3873 = vcmp.gt.f32.partialorder %v3867, 0.0
    %vm3874 = vcmp.gt.f32.partialorder %v3869, 0.0
    %v3875 = vmul.f32 %v3725, 0.2
    %v3876 = vmul.f32 %v3727, 0.2
    %v3877 = vmul.f32 %v3867, 0.2
    %v3878 = vmul.f32 %v3869, 0.2
    %v3879 = vsel %vm3871, %v3725, %v3875
    %v3880 = vsel %vm3872, %v3727, %v3876
    %v3881 = vsel %vm3873, %v3867, %v3877
    %v3882 = vsel %vm3874, %v3869, %v3878
    %v3883 = vld [vmem:[#allocation11] sm:$0xff]
    %v3884 = vld [vmem:[#allocation11 + $0x8] sm:$0xff]
    %v3885 = vld [vmem:[#allocation11 + $0x10] sm:$0xff]
    %v3886 = vld [vmem:[#allocation11 + $0x18] sm:$0xf]
    %v3887 = vld [vmem:[#allocation11 + $0x1c] sm:$0xff]
    %v3888 = vld [vmem:[#allocation11 + $0x24] sm:$0xff]
    %v3889 = vld [vmem:[#allocation11 + $0x2c] sm:$0xff]
    %v3890 = vld [vmem:[#allocation11 + $0x34] sm:$0xf]
    %v3891 = vld [vmem:[#allocation11 + $0x38] sm:$0xff]
    %v3892 = vld [vmem:[#allocation11 + $0x40] sm:$0xff]
    %v3893 = vld [vmem:[#allocation11 + $0x48] sm:$0xff]
    %v3894 = vld [vmem:[#allocation11 + $0x50] sm:$0xf]
    %v3895 = vld [vmem:[#allocation11 + $0x54] sm:$0xff]
    %v3896 = vld [vmem:[#allocation11 + $0x5c] sm:$0xff]
    %v3897 = vld [vmem:[#allocation11 + $0x64] sm:$0xff]
    %v3898 = vld [vmem:[#allocation11 + $0x6c] sm:$0xf]
    %v3899 = vld [vmem:[#allocation11 + $0x70] sm:$0xff]
    %v3900 = vld [vmem:[#allocation11 + $0x78] sm:$0xff]
    %v3901 = vld [vmem:[#allocation11 + $0x80] sm:$0xff]
    %v3902 = vld [vmem:[#allocation11 + $0x88] sm:$0xf]
    %v3903 = vld [vmem:[#allocation11 + $0x8c] sm:$0xff]
    %v3904 = vld [vmem:[#allocation11 + $0x94] sm:$0xff]
    %v3905 = vld [vmem:[#allocation11 + $0x9c] sm:$0xff]
    %v3906 = vld [vmem:[#allocation11 + $0xa4] sm:$0xf]
    %v3907 = vld [vmem:[#allocation11 + $0xa8] sm:$0xff]
    %v3908 = vld [vmem:[#allocation11 + $0xb0] sm:$0xff]
    %v3909 = vld [vmem:[#allocation11 + $0xb8] sm:$0xff]
    %v3910 = vld [vmem:[#allocation11 + $0xc0] sm:$0xf]
    %v3911 = vld [vmem:[#allocation11 + $0xc4] sm:$0xff]
    %v3912 = vld [vmem:[#allocation11 + $0xcc] sm:$0xff]
    %v3913 = vld [vmem:[#allocation11 + $0xd4] sm:$0xff]
    %v3914 = vld [vmem:[#allocation11 + $0xdc] sm:$0xf]
    %v3915 = vld [vmem:[#allocation11 + $0xe0] sm:$0xff]
    %v3916 = vld [vmem:[#allocation11 + $0xe8] sm:$0xff]
    %v3917 = vld [vmem:[#allocation11 + $0xf0] sm:$0xff]
    %v3918 = vld [vmem:[#allocation11 + $0xf8] sm:$0xf]
    %v3919 = vld [vmem:[#allocation11 + $0xfc] sm:$0xff]
    %v3920 = vld [vmem:[#allocation11 + $0x104] sm:$0xff]
    %v3921 = vld [vmem:[#allocation11 + $0x10c] sm:$0xff]
    %v3922 = vld [vmem:[#allocation11 + $0x114] sm:$0xf]
    %v3923 = vld [vmem:[#allocation11 + $0x118] sm:$0xff]
    %v3924 = vld [vmem:[#allocation11 + $0x120] sm:$0xff]
    %v3925 = vld [vmem:[#allocation11 + $0x128] sm:$0xff]
    %v3926 = vld [vmem:[#allocation11 + $0x130] sm:$0xf]
    %v3927 = vld [vmem:[#allocation11 + $0x134] sm:$0xff]
    %v3928 = vld [vmem:[#allocation11 + $0x13c] sm:$0xff]
    %v3929 = vld [vmem:[#allocation11 + $0x144] sm:$0xff]
    %v3930 = vld [vmem:[#allocation11 + $0x14c] sm:$0xf]
    %v3931 = vld [vmem:[#allocation11 + $0x150] sm:$0xff]
    %v3932 = vld [vmem:[#allocation11 + $0x158] sm:$0xff]
    %v3933 = vld [vmem:[#allocation11 + $0x160] sm:$0xff]
    %v3934 = vld [vmem:[#allocation11 + $0x168] sm:$0xf]
    %v3935 = vld [vmem:[#allocation11 + $0x16c] sm:$0xff]
    %v3936 = vld [vmem:[#allocation11 + $0x174] sm:$0xff]
    %v3937 = vld [vmem:[#allocation11 + $0x17c] sm:$0xff]
    %v3938 = vld [vmem:[#allocation11 + $0x184] sm:$0xf]
    %v3939 = vld [vmem:[#allocation11 + $0x188] sm:$0xff]
    %v3940 = vld [vmem:[#allocation11 + $0x190] sm:$0xff]
    %v3941 = vld [vmem:[#allocation11 + $0x198] sm:$0xff]
    %v3942 = vld [vmem:[#allocation11 + $0x1a0] sm:$0xf]
    %v3943 = vld [vmem:[#allocation11 + $0x1a4] sm:$0xff]
    %v3944 = vld [vmem:[#allocation11 + $0x1ac] sm:$0xff]
    %v3945 = vld [vmem:[#allocation11 + $0x1b4] sm:$0xff]
    %v3946 = vld [vmem:[#allocation11 + $0x1bc] sm:$0xf]
    %v3947 = vld [vmem:[#allocation11 + $0x1c0] sm:$0xff]
    %v3948 = vld [vmem:[#allocation11 + $0x1c8] sm:$0xff]
    %v3949 = vld [vmem:[#allocation11 + $0x1d0] sm:$0xff]
    %v3950 = vld [vmem:[#allocation11 + $0x1d8] sm:$0xf]
    %v3951 = vld [vmem:[#allocation11 + $0x1dc] sm:$0xff]
    %v3952 = vld [vmem:[#allocation11 + $0x1e4] sm:$0xff]
    %v3953 = vld [vmem:[#allocation11 + $0x1ec] sm:$0xff]
    %v3954 = vld [vmem:[#allocation11 + $0x1f4] sm:$0xf]
    %v3955 = vld [vmem:[#allocation11 + $0x1f8] sm:$0xff]
    %v3956 = vld [vmem:[#allocation11 + $0x200] sm:$0xff]
    %v3957 = vld [vmem:[#allocation11 + $0x208] sm:$0xff]
    %v3958 = vld [vmem:[#allocation11 + $0x210] sm:$0xf]
    %v3959 = vld [vmem:[#allocation11 + $0x214] sm:$0xff]
    %v3960 = vld [vmem:[#allocation11 + $0x21c] sm:$0xff]
    %v3961 = vld [vmem:[#allocation11 + $0x224] sm:$0xff]
    %v3962 = vld [vmem:[#allocation11 + $0x22c] sm:$0xf]
    %v3963 = vld [vmem:[#allocation11 + $0x230] sm:$0xff]
    %v3964 = vld [vmem:[#allocation11 + $0x238] sm:$0xff]
    %v3965 = vld [vmem:[#allocation11 + $0x240] sm:$0xff]
    %v3966 = vld [vmem:[#allocation11 + $0x248] sm:$0xf]
    %v3967 = vld [vmem:[#allocation11 + $0x24c] sm:$0xff]
    %v3968 = vld [vmem:[#allocation11 + $0x254] sm:$0xff]
    %v3969 = vld [vmem:[#allocation11 + $0x25c] sm:$0xff]
    %v3970 = vld [vmem:[#allocation11 + $0x264] sm:$0xf]
    %v3971 = vld [vmem:[#allocation11 + $0x268] sm:$0xff]
    %v3972 = vld [vmem:[#allocation11 + $0x270] sm:$0xff]
    %v3973 = vld [vmem:[#allocation11 + $0x278] sm:$0xff]
    %v3974 = vld [vmem:[#allocation11 + $0x280] sm:$0xf]
    %v3975 = vld [vmem:[#allocation11 + $0x284] sm:$0xff]
    %v3976 = vld [vmem:[#allocation11 + $0x28c] sm:$0xff]
    %v3977 = vld [vmem:[#allocation11 + $0x294] sm:$0xff]
    %v3978 = vld [vmem:[#allocation11 + $0x29c] sm:$0xf]
    %v3979 = vld [vmem:[#allocation11 + $0x2a0] sm:$0xff]
    %v3980 = vld [vmem:[#allocation11 + $0x2a8] sm:$0xff]
    %v3981 = vld [vmem:[#allocation11 + $0x2b0] sm:$0xff]
    %v3982 = vld [vmem:[#allocation11 + $0x2b8] sm:$0xf]
    %v3983 = vld [vmem:[#allocation11 + $0x2bc] sm:$0xff]
    %v3984 = vld [vmem:[#allocation11 + $0x2c4] sm:$0xff]
    %v3985 = vld [vmem:[#allocation11 + $0x2cc] sm:$0xff]
    %v3986 = vld [vmem:[#allocation11 + $0x2d4] sm:$0xf]
    %v3987 = vld [vmem:[#allocation11 + $0x2d8] sm:$0xff]
    %v3988 = vld [vmem:[#allocation11 + $0x2e0] sm:$0xff]
    %v3989 = vld [vmem:[#allocation11 + $0x2e8] sm:$0xff]
    %v3990 = vld [vmem:[#allocation11 + $0x2f0] sm:$0xf]
    %v3991 = vld [vmem:[#allocation11 + $0x2f4] sm:$0xff]
    %v3992 = vld [vmem:[#allocation11 + $0x2fc] sm:$0xff]
    %v3993 = vld [vmem:[#allocation11 + $0x304] sm:$0xff]
    %v3994 = vld [vmem:[#allocation11 + $0x30c] sm:$0xf]
    %v3995 = vld [vmem:[#allocation11 + $0x310] sm:$0xff]
    %v3996 = vld [vmem:[#allocation11 + $0x318] sm:$0xff]
    %v3997 = vld [vmem:[#allocation11 + $0x320] sm:$0xff]
    %v3998 = vld [vmem:[#allocation11 + $0x328] sm:$0xf]
    %v3999 = vld [vmem:[#allocation11 + $0x32c] sm:$0xff]
    %v4000 = vld [vmem:[#allocation11 + $0x334] sm:$0xff]
    %v4001 = vld [vmem:[#allocation11 + $0x33c] sm:$0xff]
    %v4002 = vld [vmem:[#allocation11 + $0x344] sm:$0xf]
    %v4003 = vld [vmem:[#allocation11 + $0x348] sm:$0xff]
    %v4004 = vld [vmem:[#allocation11 + $0x350] sm:$0xff]
    %v4005 = vld [vmem:[#allocation11 + $0x358] sm:$0xff]
    %v4006 = vld [vmem:[#allocation11 + $0x360] sm:$0xf]
    %v4007 = vld [vmem:[#allocation11 + $0x364] sm:$0xff]
    %v4008 = vld [vmem:[#allocation11 + $0x36c] sm:$0xff]
    %v4009 = vld [vmem:[#allocation11 + $0x374] sm:$0xff]
    %v4010 = vld [vmem:[#allocation11 + $0x37c] sm:$0xf]
    %v4011 = vld [vmem:[#allocation11 + $0x380] sm:$0xff]
    %v4012 = vld [vmem:[#allocation11 + $0x388] sm:$0xff]
    %v4013 = vld [vmem:[#allocation11 + $0x390] sm:$0xff]
    %v4014 = vld [vmem:[#allocation11 + $0x398] sm:$0xf]
    %v4015 = vld [vmem:[#allocation11 + $0x39c] sm:$0xff]
    %v4016 = vld [vmem:[#allocation11 + $0x3a4] sm:$0xff]
    %v4017 = vld [vmem:[#allocation11 + $0x3ac] sm:$0xff]
    %v4018 = vld [vmem:[#allocation11 + $0x3b4] sm:$0xf]
    %v4019 = vld [vmem:[#allocation11 + $0x3b8] sm:$0xff]
    %v4020 = vld [vmem:[#allocation11 + $0x3c0] sm:$0xff]
    %v4021 = vld [vmem:[#allocation11 + $0x3c8] sm:$0xff]
    %v4022 = vld [vmem:[#allocation11 + $0x3d0] sm:$0xf]
    %v4023 = vld [vmem:[#allocation11 + $0x3d4] sm:$0xff]
    %v4024 = vld [vmem:[#allocation11 + $0x3dc] sm:$0xff]
    %v4025 = vld [vmem:[#allocation11 + $0x3e4] sm:$0xff]
    %v4026 = vld [vmem:[#allocation11 + $0x3ec] sm:$0xf]
    %v4027 = vld [vmem:[#allocation11 + $0x3f0] sm:$0xff]
    %v4028 = vld [vmem:[#allocation11 + $0x3f8] sm:$0xff]
    %v4029 = vld [vmem:[#allocation11 + $0x400] sm:$0xff]
    %v4030 = vld [vmem:[#allocation11 + $0x408] sm:$0xf]
    %v4031 = vld [vmem:[#allocation11 + $0x40c] sm:$0xff]
    %v4032 = vld [vmem:[#allocation11 + $0x414] sm:$0xff]
    %v4033 = vld [vmem:[#allocation11 + $0x41c] sm:$0xff]
    %v4034 = vld [vmem:[#allocation11 + $0x424] sm:$0xf]
    %v4035 = vld [vmem:[#allocation11 + $0x428] sm:$0xff]
    %v4036 = vld [vmem:[#allocation11 + $0x430] sm:$0xff]
    %v4037 = vld [vmem:[#allocation11 + $0x438] sm:$0xff]
    %v4038 = vld [vmem:[#allocation11 + $0x440] sm:$0xf]
    %v4039 = vld [vmem:[#allocation11 + $0x444] sm:$0xff]
    %v4040 = vld [vmem:[#allocation11 + $0x44c] sm:$0xff]
    %v4041 = vld [vmem:[#allocation11 + $0x454] sm:$0xff]
    %v4042 = vld [vmem:[#allocation11 + $0x45c] sm:$0xf]
    %v4043 = vld [vmem:[#allocation11 + $0x460] sm:$0xff]
    %v4044 = vld [vmem:[#allocation11 + $0x468] sm:$0xff]
    %v4045 = vld [vmem:[#allocation11 + $0x470] sm:$0xff]
    %v4046 = vld [vmem:[#allocation11 + $0x478] sm:$0xf]
    %v4047 = vld [vmem:[#allocation11 + $0x47c] sm:$0xff]
    %v4048 = vld [vmem:[#allocation11 + $0x484] sm:$0xff]
    %v4049 = vld [vmem:[#allocation11 + $0x48c] sm:$0xff]
    %v4050 = vld [vmem:[#allocation11 + $0x494] sm:$0xf]
    %v4051 = vld [vmem:[#allocation11 + $0x498] sm:$0xff]
    %v4052 = vld [vmem:[#allocation11 + $0x4a0] sm:$0xff]
    %v4053 = vld [vmem:[#allocation11 + $0x4a8] sm:$0xff]
    %v4054 = vld [vmem:[#allocation11 + $0x4b0] sm:$0xf]
    %v4055 = vld [vmem:[#allocation11 + $0x4b4] sm:$0xff]
    %v4056 = vld [vmem:[#allocation11 + $0x4bc] sm:$0xff]
    %v4057 = vld [vmem:[#allocation11 + $0x4c4] sm:$0xff]
    %v4058 = vld [vmem:[#allocation11 + $0x4cc] sm:$0xf]
    %v4059 = vld [vmem:[#allocation11 + $0x4d0] sm:$0xff]
    %v4060 = vld [vmem:[#allocation11 + $0x4d8] sm:$0xff]
    %v4061 = vld [vmem:[#allocation11 + $0x4e0] sm:$0xff]
    %v4062 = vld [vmem:[#allocation11 + $0x4e8] sm:$0xf]
    %v4063 = vld [vmem:[#allocation11 + $0x4ec] sm:$0xff]
    %v4064 = vld [vmem:[#allocation11 + $0x4f4] sm:$0xff]
    %v4065 = vld [vmem:[#allocation11 + $0x4fc] sm:$0xff]
    %v4066 = vld [vmem:[#allocation11 + $0x504] sm:$0xf]
    %v4067 = vld [vmem:[#allocation11 + $0x508] sm:$0xff]
    %v4068 = vld [vmem:[#allocation11 + $0x510] sm:$0xff]
    %v4069 = vld [vmem:[#allocation11 + $0x518] sm:$0xff]
    %v4070 = vld [vmem:[#allocation11 + $0x520] sm:$0xf]
    %v4071 = vld [vmem:[#allocation11 + $0x524] sm:$0xff]
    %v4072 = vld [vmem:[#allocation11 + $0x52c] sm:$0xff]
    %v4073 = vld [vmem:[#allocation11 + $0x534] sm:$0xff]
    %v4074 = vld [vmem:[#allocation11 + $0x53c] sm:$0xf]
    %v4075 = vld [vmem:[#allocation11 + $0x540] sm:$0xff]
    %v4076 = vld [vmem:[#allocation11 + $0x548] sm:$0xff]
    %v4077 = vld [vmem:[#allocation11 + $0x550] sm:$0xff]
    %v4078 = vld [vmem:[#allocation11 + $0x558] sm:$0xf]
    %v4079 = vld [vmem:[#allocation11 + $0x55c] sm:$0xff]
    %v4080 = vld [vmem:[#allocation11 + $0x564] sm:$0xff]
    %v4081 = vld [vmem:[#allocation11 + $0x56c] sm:$0xff]
    %v4082 = vld [vmem:[#allocation11 + $0x574] sm:$0xf]
    %v4083 = vld [vmem:[#allocation11 + $0x578] sm:$0xff]
    %v4084 = vld [vmem:[#allocation11 + $0x580] sm:$0xff]
    %v4085 = vld [vmem:[#allocation11 + $0x588] sm:$0xff]
    %v4086 = vld [vmem:[#allocation11 + $0x590] sm:$0xf]
    %v4087 = vld [vmem:[#allocation11 + $0x594] sm:$0xff]
    %v4088 = vld [vmem:[#allocation11 + $0x59c] sm:$0xff]
    %v4089 = vld [vmem:[#allocation11 + $0x5a4] sm:$0xff]
    %v4090 = vld [vmem:[#allocation11 + $0x5ac] sm:$0xf]
    %v4091 = vld [vmem:[#allocation11 + $0x5b0] sm:$0xff]
    %v4092 = vld [vmem:[#allocation11 + $0x5b8] sm:$0xff]
    %v4093 = vld [vmem:[#allocation11 + $0x5c0] sm:$0xff]
    %v4094 = vld [vmem:[#allocation11 + $0x5c8] sm:$0xf]
    %v4095 = vld [vmem:[#allocation11 + $0x5cc] sm:$0xff]
    %v4096 = vld [vmem:[#allocation11 + $0x5d4] sm:$0xff]
    %v4097 = vld [vmem:[#allocation11 + $0x5dc] sm:$0xff]
    %v4098 = vld [vmem:[#allocation11 + $0x5e4] sm:$0xf]
    %v4099 = vld [vmem:[#allocation11 + $0x5e8] sm:$0xff]
    %v4100 = vld [vmem:[#allocation11 + $0x5f0] sm:$0xff]
    %v4101 = vld [vmem:[#allocation11 + $0x5f8] sm:$0xff]
    %v4102 = vld [vmem:[#allocation11 + $0x600] sm:$0xf]
    %v4103 = vld [vmem:[#allocation11 + $0x604] sm:$0xff]
    %v4104 = vld [vmem:[#allocation11 + $0x60c] sm:$0xff]
    %v4105 = vld [vmem:[#allocation11 + $0x614] sm:$0xff]
    %v4106 = vld [vmem:[#allocation11 + $0x61c] sm:$0xf]
    %v4107 = vld [vmem:[#allocation11 + $0x620] sm:$0xff]
    %v4108 = vld [vmem:[#allocation11 + $0x628] sm:$0xff]
    %v4109 = vld [vmem:[#allocation11 + $0x630] sm:$0xff]
    %v4110 = vld [vmem:[#allocation11 + $0x638] sm:$0xf]
    %v4111 = vld [vmem:[#allocation11 + $0x63c] sm:$0xff]
    %v4112 = vld [vmem:[#allocation11 + $0x644] sm:$0xff]
    %v4113 = vld [vmem:[#allocation11 + $0x64c] sm:$0xff]
    %v4114 = vld [vmem:[#allocation11 + $0x654] sm:$0xf]
    %v4115 = vld [vmem:[#allocation11 + $0x658] sm:$0xff]
    %v4116 = vld [vmem:[#allocation11 + $0x660] sm:$0xff]
    %v4117 = vld [vmem:[#allocation11 + $0x668] sm:$0xff]
    %v4118 = vld [vmem:[#allocation11 + $0x670] sm:$0xf]
    %v4119 = vld [vmem:[#allocation11 + $0x674] sm:$0xff]
    %v4120 = vld [vmem:[#allocation11 + $0x67c] sm:$0xff]
    %v4121 = vld [vmem:[#allocation11 + $0x684] sm:$0xff]
    %v4122 = vld [vmem:[#allocation11 + $0x68c] sm:$0xf]
    %v4123 = vld [vmem:[#allocation11 + $0x690] sm:$0xff]
    %v4124 = vld [vmem:[#allocation11 + $0x698] sm:$0xff]
    %v4125 = vld [vmem:[#allocation11 + $0x6a0] sm:$0xff]
    %v4126 = vld [vmem:[#allocation11 + $0x6a8] sm:$0xf]
    %v4127 = vld [vmem:[#allocation11 + $0x6ac] sm:$0xff]
    %v4128 = vld [vmem:[#allocation11 + $0x6b4] sm:$0xff]
    %v4129 = vld [vmem:[#allocation11 + $0x6bc] sm:$0xff]
    %v4130 = vld [vmem:[#allocation11 + $0x6c4] sm:$0xf]
    %v4131 = vld [vmem:[#allocation11 + $0x6c8] sm:$0xff]
    %v4132 = vld [vmem:[#allocation11 + $0x6d0] sm:$0xff]
    %v4133 = vld [vmem:[#allocation11 + $0x6d8] sm:$0xff]
    %v4134 = vld [vmem:[#allocation11 + $0x6e0] sm:$0xf]
    %v4135 = vld [vmem:[#allocation11 + $0x6e4] sm:$0xff]
    %v4136 = vld [vmem:[#allocation11 + $0x6ec] sm:$0xff]
    %v4137 = vld [vmem:[#allocation11 + $0x6f4] sm:$0xff]
    %v4138 = vld [vmem:[#allocation11 + $0x6fc] sm:$0xf]
    %v4139 = vunpack.c.l.bf16 %v3883
    %v4140 = vunpack.c.h.bf16 %v3883
    %v4141 = vunpack.c.l.bf16 %v3884
    %v4142 = vunpack.c.h.bf16 %v3884
    %v4143 = vunpack.c.l.bf16 %v3885
    %v4144 = vunpack.c.h.bf16 %v3885
    %v4145 = vunpack.c.l.bf16 %v3886
    %v4146 = vunpack.c.l.bf16 %v3887
    %v4147 = vunpack.c.h.bf16 %v3887
    %v4148 = vunpack.c.l.bf16 %v3888
    %v4149 = vunpack.c.h.bf16 %v3888
    %v4150 = vunpack.c.l.bf16 %v3889
    %v4151 = vunpack.c.h.bf16 %v3889
    %v4152 = vunpack.c.l.bf16 %v3890
    %v4153 = vunpack.c.l.bf16 %v3891
    %v4154 = vunpack.c.h.bf16 %v3891
    %v4155 = vunpack.c.l.bf16 %v3892
    %v4156 = vunpack.c.h.bf16 %v3892
    %v4157 = vunpack.c.l.bf16 %v3893
    %v4158 = vunpack.c.h.bf16 %v3893
    %v4159 = vunpack.c.l.bf16 %v3894
    %v4160 = vunpack.c.l.bf16 %v3895
    %v4161 = vunpack.c.h.bf16 %v3895
    %v4162 = vunpack.c.l.bf16 %v3896
    %v4163 = vunpack.c.h.bf16 %v3896
    %v4164 = vunpack.c.l.bf16 %v3897
    %v4165 = vunpack.c.h.bf16 %v3897
    %v4166 = vunpack.c.l.bf16 %v3898
    %v4167 = vunpack.c.l.bf16 %v3899
    %v4168 = vunpack.c.h.bf16 %v3899
    %v4169 = vunpack.c.l.bf16 %v3900
    %v4170 = vunpack.c.h.bf16 %v3900
    %v4171 = vunpack.c.l.bf16 %v3901
    %v4172 = vunpack.c.h.bf16 %v3901
    %v4173 = vunpack.c.l.bf16 %v3902
    %v4174 = vunpack.c.l.bf16 %v3903
    %v4175 = vunpack.c.h.bf16 %v3903
    %v4176 = vunpack.c.l.bf16 %v3904
    %v4177 = vunpack.c.h.bf16 %v3904
    %v4178 = vunpack.c.l.bf16 %v3905
    %v4179 = vunpack.c.h.bf16 %v3905
    %v4180 = vunpack.c.l.bf16 %v3906
    %v4181 = vunpack.c.l.bf16 %v3907
    %v4182 = vunpack.c.h.bf16 %v3907
    %v4183 = vunpack.c.l.bf16 %v3908
    %v4184 = vunpack.c.h.bf16 %v3908
    %v4185 = vunpack.c.l.bf16 %v3909
    %v4186 = vunpack.c.h.bf16 %v3909
    %v4187 = vunpack.c.l.bf16 %v3910
    %v4188 = vunpack.c.l.bf16 %v3911
    %v4189 = vunpack.c.h.bf16 %v3911
    %v4190 = vunpack.c.l.bf16 %v3912
    %v4191 = vunpack.c.h.bf16 %v3912
    %v4192 = vunpack.c.l.bf16 %v3913
    %v4193 = vunpack.c.h.bf16 %v3913
    %v4194 = vunpack.c.l.bf16 %v3914
    %v4195 = vunpack.c.l.bf16 %v3915
    %v4196 = vunpack.c.h.bf16 %v3915
    %v4197 = vunpack.c.l.bf16 %v3916
    %v4198 = vunpack.c.h.bf16 %v3916
    %v4199 = vunpack.c.l.bf16 %v3917
    %v4200 = vunpack.c.h.bf16 %v3917
    %v4201 = vunpack.c.l.bf16 %v3918
    %v4202 = vunpack.c.l.bf16 %v3919
    %v4203 = vunpack.c.h.bf16 %v3919
    %v4204 = vunpack.c.l.bf16 %v3920
    %v4205 = vunpack.c.h.bf16 %v3920
    %v4206 = vunpack.c.l.bf16 %v3921
    %v4207 = vunpack.c.h.bf16 %v3921
    %v4208 = vunpack.c.l.bf16 %v3922
    %v4209 = vunpack.c.l.bf16 %v3923
    %v4210 = vunpack.c.h.bf16 %v3923
    %v4211 = vunpack.c.l.bf16 %v3924
    %v4212 = vunpack.c.h.bf16 %v3924
    %v4213 = vunpack.c.l.bf16 %v3925
    %v4214 = vunpack.c.h.bf16 %v3925
    %v4215 = vunpack.c.l.bf16 %v3926
    %v4216 = vunpack.c.l.bf16 %v3927
    %v4217 = vunpack.c.h.bf16 %v3927
    %v4218 = vunpack.c.l.bf16 %v3928
    %v4219 = vunpack.c.h.bf16 %v3928
    %v4220 = vunpack.c.l.bf16 %v3929
    %v4221 = vunpack.c.h.bf16 %v3929
    %v4222 = vunpack.c.l.bf16 %v3930
    %v4223 = vunpack.c.l.bf16 %v3931
    %v4224 = vunpack.c.h.bf16 %v3931
    %v4225 = vunpack.c.l.bf16 %v3932
    %v4226 = vunpack.c.h.bf16 %v3932
    %v4227 = vunpack.c.l.bf16 %v3933
    %v4228 = vunpack.c.h.bf16 %v3933
    %v4229 = vunpack.c.l.bf16 %v3934
    %v4230 = vunpack.c.l.bf16 %v3935
    %v4231 = vunpack.c.h.bf16 %v3935
    %v4232 = vunpack.c.l.bf16 %v3936
    %v4233 = vunpack.c.h.bf16 %v3936
    %v4234 = vunpack.c.l.bf16 %v3937
    %v4235 = vunpack.c.h.bf16 %v3937
    %v4236 = vunpack.c.l.bf16 %v3938
    %v4237 = vunpack.c.l.bf16 %v3939
    %v4238 = vunpack.c.h.bf16 %v3939
    %v4239 = vunpack.c.l.bf16 %v3940
    %v4240 = vunpack.c.h.bf16 %v3940
    %v4241 = vunpack.c.l.bf16 %v3941
    %v4242 = vunpack.c.h.bf16 %v3941
    %v4243 = vunpack.c.l.bf16 %v3942
    %v4244 = vunpack.c.l.bf16 %v3943
    %v4245 = vunpack.c.h.bf16 %v3943
    %v4246 = vunpack.c.l.bf16 %v3944
    %v4247 = vunpack.c.h.bf16 %v3944
    %v4248 = vunpack.c.l.bf16 %v3945
    %v4249 = vunpack.c.h.bf16 %v3945
    %v4250 = vunpack.c.l.bf16 %v3946
    %v4251 = vunpack.c.l.bf16 %v3947
    %v4252 = vunpack.c.h.bf16 %v3947
    %v4253 = vunpack.c.l.bf16 %v3948
    %v4254 = vunpack.c.h.bf16 %v3948
    %v4255 = vunpack.c.l.bf16 %v3949
    %v4256 = vunpack.c.h.bf16 %v3949
    %v4257 = vunpack.c.l.bf16 %v3950
    %v4258 = vunpack.c.l.bf16 %v3951
    %v4259 = vunpack.c.h.bf16 %v3951
    %v4260 = vunpack.c.l.bf16 %v3952
    %v4261 = vunpack.c.h.bf16 %v3952
    %v4262 = vunpack.c.l.bf16 %v3953
    %v4263 = vunpack.c.h.bf16 %v3953
    %v4264 = vunpack.c.l.bf16 %v3954
    %v4265 = vunpack.c.l.bf16 %v3955
    %v4266 = vunpack.c.h.bf16 %v3955
    %v4267 = vunpack.c.l.bf16 %v3956
    %v4268 = vunpack.c.h.bf16 %v3956
    %v4269 = vunpack.c.l.bf16 %v3957
    %v4270 = vunpack.c.h.bf16 %v3957
    %v4271 = vunpack.c.l.bf16 %v3958
    %v4272 = vunpack.c.l.bf16 %v3959
    %v4273 = vunpack.c.h.bf16 %v3959
    %v4274 = vunpack.c.l.bf16 %v3960
    %v4275 = vunpack.c.h.bf16 %v3960
    %v4276 = vunpack.c.l.bf16 %v3961
    %v4277 = vunpack.c.h.bf16 %v3961
    %v4278 = vunpack.c.l.bf16 %v3962
    %v4279 = vunpack.c.l.bf16 %v3963
    %v4280 = vunpack.c.h.bf16 %v3963
    %v4281 = vunpack.c.l.bf16 %v3964
    %v4282 = vunpack.c.h.bf16 %v3964
    %v4283 = vunpack.c.l.bf16 %v3965
    %v4284 = vunpack.c.h.bf16 %v3965
    %v4285 = vunpack.c.l.bf16 %v3966
    %v4286 = vunpack.c.l.bf16 %v3967
    %v4287 = vunpack.c.h.bf16 %v3967
    %v4288 = vunpack.c.l.bf16 %v3968
    %v4289 = vunpack.c.h.bf16 %v3968
    %v4290 = vunpack.c.l.bf16 %v3969
    %v4291 = vunpack.c.h.bf16 %v3969
    %v4292 = vunpack.c.l.bf16 %v3970
    %v4293 = vunpack.c.l.bf16 %v3971
    %v4294 = vunpack.c.h.bf16 %v3971
    %v4295 = vunpack.c.l.bf16 %v3972
    %v4296 = vunpack.c.h.bf16 %v3972
    %v4297 = vunpack.c.l.bf16 %v3973
    %v4298 = vunpack.c.h.bf16 %v3973
    %v4299 = vunpack.c.l.bf16 %v3974
    %v4300 = vunpack.c.l.bf16 %v3975
    %v4301 = vunpack.c.h.bf16 %v3975
    %v4302 = vunpack.c.l.bf16 %v3976
    %v4303 = vunpack.c.h.bf16 %v3976
    %v4304 = vunpack.c.l.bf16 %v3977
    %v4305 = vunpack.c.h.bf16 %v3977
    %v4306 = vunpack.c.l.bf16 %v3978
    %v4307 = vunpack.c.l.bf16 %v3979
    %v4308 = vunpack.c.h.bf16 %v3979
    %v4309 = vunpack.c.l.bf16 %v3980
    %v4310 = vunpack.c.h.bf16 %v3980
    %v4311 = vunpack.c.l.bf16 %v3981
    %v4312 = vunpack.c.h.bf16 %v3981
    %v4313 = vunpack.c.l.bf16 %v3982
    %v4314 = vunpack.c.l.bf16 %v3983
    %v4315 = vunpack.c.h.bf16 %v3983
    %v4316 = vunpack.c.l.bf16 %v3984
    %v4317 = vunpack.c.h.bf16 %v3984
    %v4318 = vunpack.c.l.bf16 %v3985
    %v4319 = vunpack.c.h.bf16 %v3985
    %v4320 = vunpack.c.l.bf16 %v3986
    %v4321 = vunpack.c.l.bf16 %v3987
    %v4322 = vunpack.c.h.bf16 %v3987
    %v4323 = vunpack.c.l.bf16 %v3988
    %v4324 = vunpack.c.h.bf16 %v3988
    %v4325 = vunpack.c.l.bf16 %v3989
    %v4326 = vunpack.c.h.bf16 %v3989
    %v4327 = vunpack.c.l.bf16 %v3990
    %v4328 = vunpack.c.l.bf16 %v3991
    %v4329 = vunpack.c.h.bf16 %v3991
    %v4330 = vunpack.c.l.bf16 %v3992
    %v4331 = vunpack.c.h.bf16 %v3992
    %v4332 = vunpack.c.l.bf16 %v3993
    %v4333 = vunpack.c.h.bf16 %v3993
    %v4334 = vunpack.c.l.bf16 %v3994
    %v4335 = vunpack.c.l.bf16 %v3995
    %v4336 = vunpack.c.h.bf16 %v3995
    %v4337 = vunpack.c.l.bf16 %v3996
    %v4338 = vunpack.c.h.bf16 %v3996
    %v4339 = vunpack.c.l.bf16 %v3997
    %v4340 = vunpack.c.h.bf16 %v3997
    %v4341 = vunpack.c.l.bf16 %v3998
    %v4342 = vunpack.c.l.bf16 %v3999
    %v4343 = vunpack.c.h.bf16 %v3999
    %v4344 = vunpack.c.l.bf16 %v4000
    %v4345 = vunpack.c.h.bf16 %v4000
    %v4346 = vunpack.c.l.bf16 %v4001
    %v4347 = vunpack.c.h.bf16 %v4001
    %v4348 = vunpack.c.l.bf16 %v4002
    %v4349 = vunpack.c.l.bf16 %v4003
    %v4350 = vunpack.c.h.bf16 %v4003
    %v4351 = vunpack.c.l.bf16 %v4004
    %v4352 = vunpack.c.h.bf16 %v4004
    %v4353 = vunpack.c.l.bf16 %v4005
    %v4354 = vunpack.c.h.bf16 %v4005
    %v4355 = vunpack.c.l.bf16 %v4006
    %v4356 = vunpack.c.l.bf16 %v4007
    %v4357 = vunpack.c.h.bf16 %v4007
    %v4358 = vunpack.c.l.bf16 %v4008
    %v4359 = vunpack.c.h.bf16 %v4008
    %v4360 = vunpack.c.l.bf16 %v4009
    %v4361 = vunpack.c.h.bf16 %v4009
    %v4362 = vunpack.c.l.bf16 %v4010
    %v4363 = vunpack.c.l.bf16 %v4011
    %v4364 = vunpack.c.h.bf16 %v4011
    %v4365 = vunpack.c.l.bf16 %v4012
    %v4366 = vunpack.c.h.bf16 %v4012
    %v4367 = vunpack.c.l.bf16 %v4013
    %v4368 = vunpack.c.h.bf16 %v4013
    %v4369 = vunpack.c.l.bf16 %v4014
    %v4370 = vunpack.c.l.bf16 %v4015
    %v4371 = vunpack.c.h.bf16 %v4015
    %v4372 = vunpack.c.l.bf16 %v4016
    %v4373 = vunpack.c.h.bf16 %v4016
    %v4374 = vunpack.c.l.bf16 %v4017
    %v4375 = vunpack.c.h.bf16 %v4017
    %v4376 = vunpack.c.l.bf16 %v4018
    %v4377 = vunpack.c.l.bf16 %v4019
    %v4378 = vunpack.c.h.bf16 %v4019
    %v4379 = vunpack.c.l.bf16 %v4020
    %v4380 = vunpack.c.h.bf16 %v4020
    %v4381 = vunpack.c.l.bf16 %v4021
    %v4382 = vunpack.c.h.bf16 %v4021
    %v4383 = vunpack.c.l.bf16 %v4022
    %v4384 = vunpack.c.l.bf16 %v4023
    %v4385 = vunpack.c.h.bf16 %v4023
    %v4386 = vunpack.c.l.bf16 %v4024
    %v4387 = vunpack.c.h.bf16 %v4024
    %v4388 = vunpack.c.l.bf16 %v4025
    %v4389 = vunpack.c.h.bf16 %v4025
    %v4390 = vunpack.c.l.bf16 %v4026
    %v4391 = vunpack.c.l.bf16 %v4027
    %v4392 = vunpack.c.h.bf16 %v4027
    %v4393 = vunpack.c.l.bf16 %v4028
    %v4394 = vunpack.c.h.bf16 %v4028
    %v4395 = vunpack.c.l.bf16 %v4029
    %v4396 = vunpack.c.h.bf16 %v4029
    %v4397 = vunpack.c.l.bf16 %v4030
    %v4398 = vunpack.c.l.bf16 %v4031
    %v4399 = vunpack.c.h.bf16 %v4031
    %v4400 = vunpack.c.l.bf16 %v4032
    %v4401 = vunpack.c.h.bf16 %v4032
    %v4402 = vunpack.c.l.bf16 %v4033
    %v4403 = vunpack.c.h.bf16 %v4033
    %v4404 = vunpack.c.l.bf16 %v4034
    %v4405 = vunpack.c.l.bf16 %v4035
    %v4406 = vunpack.c.h.bf16 %v4035
    %v4407 = vunpack.c.l.bf16 %v4036
    %v4408 = vunpack.c.h.bf16 %v4036
    %v4409 = vunpack.c.l.bf16 %v4037
    %v4410 = vunpack.c.h.bf16 %v4037
    %v4411 = vunpack.c.l.bf16 %v4038
    %v4412 = vunpack.c.l.bf16 %v4039
    %v4413 = vunpack.c.h.bf16 %v4039
    %v4414 = vunpack.c.l.bf16 %v4040
    %v4415 = vunpack.c.h.bf16 %v4040
    %v4416 = vunpack.c.l.bf16 %v4041
    %v4417 = vunpack.c.h.bf16 %v4041
    %v4418 = vunpack.c.l.bf16 %v4042
    %v4419 = vunpack.c.l.bf16 %v4043
    %v4420 = vunpack.c.h.bf16 %v4043
    %v4421 = vunpack.c.l.bf16 %v4044
    %v4422 = vunpack.c.h.bf16 %v4044
    %v4423 = vunpack.c.l.bf16 %v4045
    %v4424 = vunpack.c.h.bf16 %v4045
    %v4425 = vunpack.c.l.bf16 %v4046
    %v4426 = vunpack.c.l.bf16 %v4047
    %v4427 = vunpack.c.h.bf16 %v4047
    %v4428 = vunpack.c.l.bf16 %v4048
    %v4429 = vunpack.c.h.bf16 %v4048
    %v4430 = vunpack.c.l.bf16 %v4049
    %v4431 = vunpack.c.h.bf16 %v4049
    %v4432 = vunpack.c.l.bf16 %v4050
    %v4433 = vunpack.c.l.bf16 %v4051
    %v4434 = vunpack.c.h.bf16 %v4051
    %v4435 = vunpack.c.l.bf16 %v4052
    %v4436 = vunpack.c.h.bf16 %v4052
    %v4437 = vunpack.c.l.bf16 %v4053
    %v4438 = vunpack.c.h.bf16 %v4053
    %v4439 = vunpack.c.l.bf16 %v4054
    %v4440 = vunpack.c.l.bf16 %v4055
    %v4441 = vunpack.c.h.bf16 %v4055
    %v4442 = vunpack.c.l.bf16 %v4056
    %v4443 = vunpack.c.h.bf16 %v4056
    %v4444 = vunpack.c.l.bf16 %v4057
    %v4445 = vunpack.c.h.bf16 %v4057
    %v4446 = vunpack.c.l.bf16 %v4058
    %v4447 = vunpack.c.l.bf16 %v4059
    %v4448 = vunpack.c.h.bf16 %v4059
    %v4449 = vunpack.c.l.bf16 %v4060
    %v4450 = vunpack.c.h.bf16 %v4060
    %v4451 = vunpack.c.l.bf16 %v4061
    %v4452 = vunpack.c.h.bf16 %v4061
    %v4453 = vunpack.c.l.bf16 %v4062
    %v4454 = vunpack.c.l.bf16 %v4063
    %v4455 = vunpack.c.h.bf16 %v4063
    %v4456 = vunpack.c.l.bf16 %v4064
    %v4457 = vunpack.c.h.bf16 %v4064
    %v4458 = vunpack.c.l.bf16 %v4065
    %v4459 = vunpack.c.h.bf16 %v4065
    %v4460 = vunpack.c.l.bf16 %v4066
    %v4461 = vunpack.c.l.bf16 %v4067
    %v4462 = vunpack.c.h.bf16 %v4067
    %v4463 = vunpack.c.l.bf16 %v4068
    %v4464 = vunpack.c.h.bf16 %v4068
    %v4465 = vunpack.c.l.bf16 %v4069
    %v4466 = vunpack.c.h.bf16 %v4069
    %v4467 = vunpack.c.l.bf16 %v4070
    %v4468 = vunpack.c.l.bf16 %v4071
    %v4469 = vunpack.c.h.bf16 %v4071
    %v4470 = vunpack.c.l.bf16 %v4072
    %v4471 = vunpack.c.h.bf16 %v4072
    %v4472 = vunpack.c.l.bf16 %v4073
    %v4473 = vunpack.c.h.bf16 %v4073
    %v4474 = vunpack.c.l.bf16 %v4074
    %v4475 = vunpack.c.l.bf16 %v4075
    %v4476 = vunpack.c.h.bf16 %v4075
    %v4477 = vunpack.c.l.bf16 %v4076
    %v4478 = vunpack.c.h.bf16 %v4076
    %v4479 = vunpack.c.l.bf16 %v4077
    %v4480 = vunpack.c.h.bf16 %v4077
    %v4481 = vunpack.c.l.bf16 %v4078
    %v4482 = vunpack.c.l.bf16 %v4079
    %v4483 = vunpack.c.h.bf16 %v4079
    %v4484 = vunpack.c.l.bf16 %v4080
    %v4485 = vunpack.c.h.bf16 %v4080
    %v4486 = vunpack.c.l.bf16 %v4081
    %v4487 = vunpack.c.h.bf16 %v4081
    %v4488 = vunpack.c.l.bf16 %v4082
    %v4489 = vunpack.c.l.bf16 %v4083
    %v4490 = vunpack.c.h.bf16 %v4083
    %v4491 = vunpack.c.l.bf16 %v4084
    %v4492 = vunpack.c.h.bf16 %v4084
    %v4493 = vunpack.c.l.bf16 %v4085
    %v4494 = vunpack.c.h.bf16 %v4085
    %v4495 = vunpack.c.l.bf16 %v4086
    %v4496 = vunpack.c.l.bf16 %v4087
    %v4497 = vunpack.c.h.bf16 %v4087
    %v4498 = vunpack.c.l.bf16 %v4088
    %v4499 = vunpack.c.h.bf16 %v4088
    %v4500 = vunpack.c.l.bf16 %v4089
    %v4501 = vunpack.c.h.bf16 %v4089
    %v4502 = vunpack.c.l.bf16 %v4090
    %v4503 = vunpack.c.l.bf16 %v4091
    %v4504 = vunpack.c.h.bf16 %v4091
    %v4505 = vunpack.c.l.bf16 %v4092
    %v4506 = vunpack.c.h.bf16 %v4092
    %v4507 = vunpack.c.l.bf16 %v4093
    %v4508 = vunpack.c.h.bf16 %v4093
    %v4509 = vunpack.c.l.bf16 %v4094
    %v4510 = vunpack.c.l.bf16 %v4095
    %v4511 = vunpack.c.h.bf16 %v4095
    %v4512 = vunpack.c.l.bf16 %v4096
    %v4513 = vunpack.c.h.bf16 %v4096
    %v4514 = vunpack.c.l.bf16 %v4097
    %v4515 = vunpack.c.h.bf16 %v4097
    %v4516 = vunpack.c.l.bf16 %v4098
    %v4517 = vunpack.c.l.bf16 %v4099
    %v4518 = vunpack.c.h.bf16 %v4099
    %v4519 = vunpack.c.l.bf16 %v4100
    %v4520 = vunpack.c.h.bf16 %v4100
    %v4521 = vunpack.c.l.bf16 %v4101
    %v4522 = vunpack.c.h.bf16 %v4101
    %v4523 = vunpack.c.l.bf16 %v4102
    %v4524 = vunpack.c.l.bf16 %v4103
    %v4525 = vunpack.c.h.bf16 %v4103
    %v4526 = vunpack.c.l.bf16 %v4104
    %v4527 = vunpack.c.h.bf16 %v4104
    %v4528 = vunpack.c.l.bf16 %v4105
    %v4529 = vunpack.c.h.bf16 %v4105
    %v4530 = vunpack.c.l.bf16 %v4106
    %v4531 = vunpack.c.l.bf16 %v4107
    %v4532 = vunpack.c.h.bf16 %v4107
    %v4533 = vunpack.c.l.bf16 %v4108
    %v4534 = vunpack.c.h.bf16 %v4108
    %v4535 = vunpack.c.l.bf16 %v4109
    %v4536 = vunpack.c.h.bf16 %v4109
    %v4537 = vunpack.c.l.bf16 %v4110
    %v4538 = vunpack.c.l.bf16 %v4111
    %v4539 = vunpack.c.h.bf16 %v4111
    %v4540 = vunpack.c.l.bf16 %v4112
    %v4541 = vunpack.c.h.bf16 %v4112
    %v4542 = vunpack.c.l.bf16 %v4113
    %v4543 = vunpack.c.h.bf16 %v4113
    %v4544 = vunpack.c.l.bf16 %v4114
    %v4545 = vunpack.c.l.bf16 %v4115
    %v4546 = vunpack.c.h.bf16 %v4115
    %v4547 = vunpack.c.l.bf16 %v4116
    %v4548 = vunpack.c.h.bf16 %v4116
    %v4549 = vunpack.c.l.bf16 %v4117
    %v4550 = vunpack.c.h.bf16 %v4117
    %v4551 = vunpack.c.l.bf16 %v4118
    %v4552 = vunpack.c.l.bf16 %v4119
    %v4553 = vunpack.c.h.bf16 %v4119
    %v4554 = vunpack.c.l.bf16 %v4120
    %v4555 = vunpack.c.h.bf16 %v4120
    %v4556 = vunpack.c.l.bf16 %v4121
    %v4557 = vunpack.c.h.bf16 %v4121
    %v4558 = vunpack.c.l.bf16 %v4122
    %v4559 = vunpack.c.l.bf16 %v4123
    %v4560 = vunpack.c.h.bf16 %v4123
    %v4561 = vunpack.c.l.bf16 %v4124
    %v4562 = vunpack.c.h.bf16 %v4124
    %v4563 = vunpack.c.l.bf16 %v4125
    %v4564 = vunpack.c.h.bf16 %v4125
    %v4565 = vunpack.c.l.bf16 %v4126
    %v4566 = vunpack.c.l.bf16 %v4127
    %v4567 = vunpack.c.h.bf16 %v4127
    %v4568 = vunpack.c.l.bf16 %v4128
    %v4569 = vunpack.c.h.bf16 %v4128
    %v4570 = vunpack.c.l.bf16 %v4129
    %v4571 = vunpack.c.h.bf16 %v4129
    %v4572 = vunpack.c.l.bf16 %v4130
    %v4573 = vunpack.c.l.bf16 %v4131
    %v4574 = vunpack.c.h.bf16 %v4131
    %v4575 = vunpack.c.l.bf16 %v4132
    %v4576 = vunpack.c.h.bf16 %v4132
    %v4577 = vunpack.c.l.bf16 %v4133
    %v4578 = vunpack.c.h.bf16 %v4133
    %v4579 = vunpack.c.l.bf16 %v4134
    %v4580 = vunpack.c.l.bf16 %v4135
    %v4581 = vunpack.c.h.bf16 %v4135
    %v4582 = vunpack.c.l.bf16 %v4136
    %v4583 = vunpack.c.h.bf16 %v4136
    %v4584 = vunpack.c.l.bf16 %v4137
    %v4585 = vunpack.c.h.bf16 %v4137
    %v4586 = vunpack.c.l.bf16 %v4138
    %v4587 = vld [vmem:[%s13] sm:$0xff]
    %v4589 = vlaneseq
    %v4590 = vshrl.u32 %v4589, 7
    %v4591 = vsub.s32 0, %v4590
    %v4592 = vrot.slane %v4587, %v4591
    %v4593 = vlaneseq
    %v4594 = vshrl.u32 %v4593, 7
    %v4595 = vsub.s32 1, %v4594
    %v4596 = vrot.slane %v4587, %v4595
    %v4597 = vlaneseq
    %v4598 = vshrl.u32 %v4597, 7
    %v4599 = vsub.s32 2, %v4598
    %v4600 = vrot.slane %v4587, %v4599
    %v4601 = vlaneseq
    %v4602 = vshrl.u32 %v4601, 7
    %v4603 = vsub.s32 3, %v4602
    %v4604 = vrot.slane %v4587, %v4603
    %v4605 = vlaneseq
    %v4606 = vshrl.u32 %v4605, 7
    %v4607 = vsub.s32 4, %v4606
    %v4608 = vrot.slane %v4587, %v4607
    %v4609 = vlaneseq
    %v4610 = vshrl.u32 %v4609, 7
    %v4611 = vsub.s32 5, %v4610
    %v4612 = vrot.slane %v4587, %v4611
    %v4613 = vlaneseq
    %v4614 = vshrl.u32 %v4613, 7
    %v4615 = vsub.s32 6, %v4614
    %v4616 = vrot.slane %v4587, %v4615
    %4624 = vmatprep.subr.mxu0 %v4140
    %4625 = vmatpush1.msra.mxu0 %v4139
    %4626 = vmatprep.subr.mxu0 %v4147
    %4627 = vmatpush1.msra.mxu0 %v4146
    %4628 = vmatprep.subr.mxu0 %v4154
    %4629 = vmatpush1.msra.mxu0 %v4153
    %4630 = vmatprep.subr.mxu0 %v4161
    %4631 = vmatpush1.msra.mxu0 %v4160
    %4632 = vmatprep.subr.mxu0 %v4168
    %4633 = vmatpush1.msra.mxu0 %v4167
    %4634 = vmatprep.subr.mxu0 %v4175
    %4635 = vmatpush1.msra.mxu0 %v4174
    %4636 = vmatprep.subr.mxu0 %v4182
    %4637 = vmatpush1.msra.mxu0 %v4181
    %4638 = vmatprep.subr.mxu0 %v4189
    %4639 = vmatpush1.msra.mxu0 %v4188
    %4640 = vmatprep.subr.mxu0 %v4196
    %4641 = vmatpush1.msra.mxu0 %v4195
    %4642 = vmatprep.subr.mxu0 %v4203
    %4643 = vmatpush1.msra.mxu0 %v4202
    %4644 = vmatprep.subr.mxu0 %v4210
    %4645 = vmatpush1.msra.mxu0 %v4209
    %4646 = vmatprep.subr.mxu0 %v4217
    %4647 = vmatpush1.msra.mxu0 %v4216
    %4648 = vmatprep.subr.mxu0 %v4224
    %4649 = vmatpush1.msra.mxu0 %v4223
    %4650 = vmatprep.subr.mxu0 %v4231
    %4651 = vmatpush1.msra.mxu0 %v4230
    %4652 = vmatprep.subr.mxu0 %v4238
    %4653 = vmatpush1.msra.mxu0 %v4237
    %4654 = vmatprep.subr.mxu0 %v4245
    %4655 = vmatpush1.msra.mxu0 %v4244
    %4656 = vmatprep.subr.mxu0 %v4252
    %4657 = vmatpush1.msra.mxu0 %v4251
    %4658 = vmatprep.subr.mxu0 %v4259
    %4659 = vmatpush1.msra.mxu0 %v4258
    %4660 = vmatprep.subr.mxu0 %v4266
    %4661 = vmatpush1.msra.mxu0 %v4265
    %4662 = vmatprep.subr.mxu0 %v4273
    %4663 = vmatpush1.msra.mxu0 %v4272
    %4664 = vmatprep.subr.mxu0 %v4280
    %4665 = vmatpush1.msra.mxu0 %v4279
    %4666 = vmatprep.subr.mxu0 %v4287
    %4667 = vmatpush1.msra.mxu0 %v4286
    %4668 = vmatprep.subr.mxu0 %v4294
    %4669 = vmatpush1.msra.mxu0 %v4293
    %4670 = vmatprep.subr.mxu0 %v4301
    %4671 = vmatpush1.msra.mxu0 %v4300
    %4672 = vmatprep.subr.mxu0 %v4308
    %4673 = vmatpush1.msra.mxu0 %v4307
    %4674 = vmatprep.subr.mxu0 %v4315
    %4675 = vmatpush1.msra.mxu0 %v4314
    %4676 = vmatprep.subr.mxu0 %v4322
    %4677 = vmatpush1.msra.mxu0 %v4321
    %4678 = vmatprep.subr.mxu0 %v4329
    %4679 = vmatpush1.msra.mxu0 %v4328
    %4680 = vmatprep.subr.mxu0 %v4336
    %4681 = vmatpush1.msra.mxu0 %v4335
    %4682 = vmatprep.subr.mxu0 %v4343
    %4683 = vmatpush1.msra.mxu0 %v4342
    %4684 = vmatprep.subr.mxu0 %v4350
    %4685 = vmatpush1.msra.mxu0 %v4349
    %4686 = vmatprep.subr.mxu0 %v4357
    %4687 = vmatpush1.msra.mxu0 %v4356
    %4688 = vmatprep.mubr.f32.mxu0 %v3880
    %4689 = vmatmul.mubr.f32.gmra.mrb[0].mxu0 %v3879
    %v4690 = vpop.f32.mrb[0].mxu0
    %v4691 = vadd.f32 %v4592, %v4690
    %v4692 = vpop.f32.mrb[0].mxu0
    %v4693 = vadd.f32 %v4596, %v4692
    %4694 = vdwg.mxu0
    %4695 = vmatprep.subr.mxu0 %v4364
    %4696 = vmatpush1.msra.mxu0 %v4363
    %4697 = vmatprep.subr.mxu0 %v4371
    %4698 = vmatpush1.msra.mxu0 %v4370
    %4699 = vmatprep.subr.mxu0 %v4378
    %4700 = vmatpush1.msra.mxu0 %v4377
    %4701 = vmatprep.subr.mxu0 %v4385
    %4702 = vmatpush1.msra.mxu0 %v4384
    %4703 = vmatprep.subr.mxu0 %v4392
    %4704 = vmatpush1.msra.mxu0 %v4391
    %4705 = vmatprep.subr.mxu0 %v4399
    %4706 = vmatpush1.msra.mxu0 %v4398
    %4707 = vmatprep.subr.mxu0 %v4406
    %4708 = vmatpush1.msra.mxu0 %v4405
    %4709 = vmatprep.subr.mxu0 %v4413
    %4710 = vmatpush1.msra.mxu0 %v4412
    %4711 = vmatprep.subr.mxu0 %v4420
    %4712 = vmatpush1.msra.mxu0 %v4419
    %4713 = vmatprep.subr.mxu0 %v4427
    %4714 = vmatpush1.msra.mxu0 %v4426
    %4715 = vmatprep.subr.mxu0 %v4434
    %4716 = vmatpush1.msra.mxu0 %v4433
    %4717 = vmatprep.subr.mxu0 %v4441
    %4718 = vmatpush1.msra.mxu0 %v4440
    %4719 = vmatprep.subr.mxu0 %v4448
    %4720 = vmatpush1.msra.mxu0 %v4447
    %4721 = vmatprep.subr.mxu0 %v4455
    %4722 = vmatpush1.msra.mxu0 %v4454
    %4723 = vmatprep.subr.mxu0 %v4462
    %4724 = vmatpush1.msra.mxu0 %v4461
    %4725 = vmatprep.subr.mxu0 %v4469
    %4726 = vmatpush1.msra.mxu0 %v4468
    %4727 = vmatprep.subr.mxu0 %v4476
    %4728 = vmatpush1.msra.mxu0 %v4475
    %4729 = vmatprep.subr.mxu0 %v4483
    %4730 = vmatpush1.msra.mxu0 %v4482
    %4731 = vmatprep.subr.mxu0 %v4490
    %4732 = vmatpush1.msra.mxu0 %v4489
    %4733 = vmatprep.subr.mxu0 %v4497
    %4734 = vmatpush1.msra.mxu0 %v4496
    %4735 = vmatprep.subr.mxu0 %v4504
    %4736 = vmatpush1.msra.mxu0 %v4503
    %4737 = vmatprep.subr.mxu0 %v4511
    %4738 = vmatpush1.msra.mxu0 %v4510
    %4739 = vmatprep.subr.mxu0 %v4518
    %4740 = vmatpush1.msra.mxu0 %v4517
    %4741 = vmatprep.subr.mxu0 %v4525
    %4742 = vmatpush1.msra.mxu0 %v4524
    %4743 = vmatprep.subr.mxu0 %v4532
    %4744 = vmatpush1.msra.mxu0 %v4531
    %4745 = vmatprep.subr.mxu0 %v4539
    %4746 = vmatpush1.msra.mxu0 %v4538
    %4747 = vmatprep.subr.mxu0 %v4546
    %4748 = vmatpush1.msra.mxu0 %v4545
    %4749 = vmatprep.subr.mxu0 %v4553
    %4750 = vmatpush1.msra.mxu0 %v4552
    %4751 = vmatprep.subr.mxu0 %v4560
    %4752 = vmatpush1.msra.mxu0 %v4559
    %4753 = vmatprep.subr.mxu0 %v4567
    %4754 = vmatpush1.msra.mxu0 %v4566
    %4755 = vmatprep.subr.mxu0 %v4574
    %4756 = vmatpush1.msra.mxu0 %v4573
    %4757 = vmatprep.subr.mxu0 %v4581
    %4758 = vmatpush1.msra.mxu0 %v4580
    %4759 = vmatprep.mubr.f32.mxu0 %v3882
    %4760 = vmatmul.mubr.f32.gmra.mrb[0].mxu0 %v3881
    %v4761 = vpop.f32.mrb[0].mxu0
    %v4762 = vadd.f32 %v4691, %v4761
    %v4763 = vpop.f32.mrb[0].mxu0
    %v4764 = vadd.f32 %v4693, %v4763
    %4765 = vdwg.mxu0
    %4766 = vmatprep.subr.mxu0 %v4142
    %4767 = vmatpush1.msra.mxu0 %v4141
    %4768 = vmatprep.subr.mxu0 %v4149
    %4769 = vmatpush1.msra.mxu0 %v4148
    %4770 = vmatprep.subr.mxu0 %v4156
    %4771 = vmatpush1.msra.mxu0 %v4155
    %4772 = vmatprep.subr.mxu0 %v4163
    %4773 = vmatpush1.msra.mxu0 %v4162
    %4774 = vmatprep.subr.mxu0 %v4170
    %4775 = vmatpush1.msra.mxu0 %v4169
    %4776 = vmatprep.subr.mxu0 %v4177
    %4777 = vmatpush1.msra.mxu0 %v4176
    %4778 = vmatprep.subr.mxu0 %v4184
    %4779 = vmatpush1.msra.mxu0 %v4183
    %4780 = vmatprep.subr.mxu0 %v4191
    %4781 = vmatpush1.msra.mxu0 %v4190
    %4782 = vmatprep.subr.mxu0 %v4198
    %4783 = vmatpush1.msra.mxu0 %v4197
    %4784 = vmatprep.subr.mxu0 %v4205
    %4785 = vmatpush1.msra.mxu0 %v4204
    %4786 = vmatprep.subr.mxu0 %v4212
    %4787 = vmatpush1.msra.mxu0 %v4211
    %4788 = vmatprep.subr.mxu0 %v4219
    %4789 = vmatpush1.msra.mxu0 %v4218
    %4790 = vmatprep.subr.mxu0 %v4226
    %4791 = vmatpush1.msra.mxu0 %v4225
    %4792 = vmatprep.subr.mxu0 %v4233
    %4793 = vmatpush1.msra.mxu0 %v4232
    %4794 = vmatprep.subr.mxu0 %v4240
    %4795 = vmatpush1.msra.mxu0 %v4239
    %4796 = vmatprep.subr.mxu0 %v4247
    %4797 = vmatpush1.msra.mxu0 %v4246
    %4798 = vmatprep.subr.mxu0 %v4254
    %4799 = vmatpush1.msra.mxu0 %v4253
    %4800 = vmatprep.subr.mxu0 %v4261
    %4801 = vmatpush1.msra.mxu0 %v4260
    %4802 = vmatprep.subr.mxu0 %v4268
    %4803 = vmatpush1.msra.mxu0 %v4267
    %4804 = vmatprep.subr.mxu0 %v4275
    %4805 = vmatpush1.msra.mxu0 %v4274
    %4806 = vmatprep.subr.mxu0 %v4282
    %4807 = vmatpush1.msra.mxu0 %v4281
    %4808 = vmatprep.subr.mxu0 %v4289
    %4809 = vmatpush1.msra.mxu0 %v4288
    %4810 = vmatprep.subr.mxu0 %v4296
    %4811 = vmatpush1.msra.mxu0 %v4295
    %4812 = vmatprep.subr.mxu0 %v4303
    %4813 = vmatpush1.msra.mxu0 %v4302
    %4814 = vmatprep.subr.mxu0 %v4310
    %4815 = vmatpush1.msra.mxu0 %v4309
    %4816 = vmatprep.subr.mxu0 %v4317
    %4817 = vmatpush1.msra.mxu0 %v4316
    %4818 = vmatprep.subr.mxu0 %v4324
    %4819 = vmatpush1.msra.mxu0 %v4323
    %4820 = vmatprep.subr.mxu0 %v4331
    %4821 = vmatpush1.msra.mxu0 %v4330
    %4822 = vmatprep.subr.mxu0 %v4338
    %4823 = vmatpush1.msra.mxu0 %v4337
    %4824 = vmatprep.subr.mxu0 %v4345
    %4825 = vmatpush1.msra.mxu0 %v4344
    %4826 = vmatprep.subr.mxu0 %v4352
    %4827 = vmatpush1.msra.mxu0 %v4351
    %4828 = vmatprep.subr.mxu0 %v4359
    %4829 = vmatpush1.msra.mxu0 %v4358
    %4830 = vmatprep.mubr.f32.mxu0 %v3880
    %4831 = vmatmul.mubr.f32.gmra.mrb[0].mxu0 %v3879
    %v4832 = vpop.f32.mrb[0].mxu0
    %v4833 = vadd.f32 %v4600, %v4832
    %v4834 = vpop.f32.mrb[0].mxu0
    %v4835 = vadd.f32 %v4604, %v4834
    %4836 = vdwg.mxu0
    %4837 = vmatprep.subr.mxu0 %v4366
    %4838 = vmatpush1.msra.mxu0 %v4365
    %4839 = vmatprep.subr.mxu0 %v4373
    %4840 = vmatpush1.msra.mxu0 %v4372
    %4841 = vmatprep.subr.mxu0 %v4380
    %4842 = vmatpush1.msra.mxu0 %v4379
    %4843 = vmatprep.subr.mxu0 %v4387
    %4844 = vmatpush1.msra.mxu0 %v4386
    %4845 = vmatprep.subr.mxu0 %v4394
    %4846 = vmatpush1.msra.mxu0 %v4393
    %4847 = vmatprep.subr.mxu0 %v4401
    %4848 = vmatpush1.msra.mxu0 %v4400
    %4849 = vmatprep.subr.mxu0 %v4408
    %4850 = vmatpush1.msra.mxu0 %v4407
    %4851 = vmatprep.subr.mxu0 %v4415
    %4852 = vmatpush1.msra.mxu0 %v4414
    %4853 = vmatprep.subr.mxu0 %v4422
    %4854 = vmatpush1.msra.mxu0 %v4421
    %4855 = vmatprep.subr.mxu0 %v4429
    %4856 = vmatpush1.msra.mxu0 %v4428
    %4857 = vmatprep.subr.mxu0 %v4436
    %4858 = vmatpush1.msra.mxu0 %v4435
    %4859 = vmatprep.subr.mxu0 %v4443
    %4860 = vmatpush1.msra.mxu0 %v4442
    %4861 = vmatprep.subr.mxu0 %v4450
    %4862 = vmatpush1.msra.mxu0 %v4449
    %4863 = vmatprep.subr.mxu0 %v4457
    %4864 = vmatpush1.msra.mxu0 %v4456
    %4865 = vmatprep.subr.mxu0 %v4464
    %4866 = vmatpush1.msra.mxu0 %v4463
    %4867 = vmatprep.subr.mxu0 %v4471
    %4868 = vmatpush1.msra.mxu0 %v4470
    %4869 = vmatprep.subr.mxu0 %v4478
    %4870 = vmatpush1.msra.mxu0 %v4477
    %4871 = vmatprep.subr.mxu0 %v4485
    %4872 = vmatpush1.msra.mxu0 %v4484
    %4873 = vmatprep.subr.mxu0 %v4492
    %4874 = vmatpush1.msra.mxu0 %v4491
    %4875 = vmatprep.subr.mxu0 %v4499
    %4876 = vmatpush1.msra.mxu0 %v4498
    %4877 = vmatprep.subr.mxu0 %v4506
    %4878 = vmatpush1.msra.mxu0 %v4505
    %4879 = vmatprep.subr.mxu0 %v4513
    %4880 = vmatpush1.msra.mxu0 %v4512
    %4881 = vmatprep.subr.mxu0 %v4520
    %4882 = vmatpush1.msra.mxu0 %v4519
    %4883 = vmatprep.subr.mxu0 %v4527
    %4884 = vmatpush1.msra.mxu0 %v4526
    %4885 = vmatprep.subr.mxu0 %v4534
    %4886 = vmatpush1.msra.mxu0 %v4533
    %4887 = vmatprep.subr.mxu0 %v4541
    %4888 = vmatpush1.msra.mxu0 %v4540
    %4889 = vmatprep.subr.mxu0 %v4548
    %4890 = vmatpush1.msra.mxu0 %v4547
    %4891 = vmatprep.subr.mxu0 %v4555
    %4892 = vmatpush1.msra.mxu0 %v4554
    %4893 = vmatprep.subr.mxu0 %v4562
    %4894 = vmatpush1.msra.mxu0 %v4561
    %4895 = vmatprep.subr.mxu0 %v4569
    %4896 = vmatpush1.msra.mxu0 %v4568
    %4897 = vmatprep.subr.mxu0 %v4576
    %4898 = vmatpush1.msra.mxu0 %v4575
    %4899 = vmatprep.subr.mxu0 %v4583
    %4900 = vmatpush1.msra.mxu0 %v4582
    %4901 = vmatprep.mubr.f32.mxu0 %v3882
    %4902 = vmatmul.mubr.f32.gmra.mrb[0].mxu0 %v3881
    %v4903 = vpop.f32.mrb[0].mxu0
    %v4904 = vadd.f32 %v4833, %v4903
    %v4905 = vpop.f32.mrb[0].mxu0
    %v4906 = vadd.f32 %v4835, %v4905
    %4907 = vdwg.mxu0
    %4908 = vmatprep.subr.mxu0 %v4144
    %4909 = vmatpush1.msra.mxu0 %v4143
    %4910 = vmatprep.subr.mxu0 %v4151
    %4911 = vmatpush1.msra.mxu0 %v4150
    %4912 = vmatprep.subr.mxu0 %v4158
    %4913 = vmatpush1.msra.mxu0 %v4157
    %4914 = vmatprep.subr.mxu0 %v4165
    %4915 = vmatpush1.msra.mxu0 %v4164
    %4916 = vmatprep.subr.mxu0 %v4172
    %4917 = vmatpush1.msra.mxu0 %v4171
    %4918 = vmatprep.subr.mxu0 %v4179
    %4919 = vmatpush1.msra.mxu0 %v4178
    %4920 = vmatprep.subr.mxu0 %v4186
    %4921 = vmatpush1.msra.mxu0 %v4185
    %4922 = vmatprep.subr.mxu0 %v4193
    %4923 = vmatpush1.msra.mxu0 %v4192
    %4924 = vmatprep.subr.mxu0 %v4200
    %4925 = vmatpush1.msra.mxu0 %v4199
    %4926 = vmatprep.subr.mxu0 %v4207
    %4927 = vmatpush1.msra.mxu0 %v4206
    %4928 = vmatprep.subr.mxu0 %v4214
    %4929 = vmatpush1.msra.mxu0 %v4213
    %4930 = vmatprep.subr.mxu0 %v4221
    %4931 = vmatpush1.msra.mxu0 %v4220
    %4932 = vmatprep.subr.mxu0 %v4228
    %4933 = vmatpush1.msra.mxu0 %v4227
    %4934 = vmatprep.subr.mxu0 %v4235
    %4935 = vmatpush1.msra.mxu0 %v4234
    %4936 = vmatprep.subr.mxu0 %v4242
    %4937 = vmatpush1.msra.mxu0 %v4241
    %4938 = vmatprep.subr.mxu0 %v4249
    %4939 = vmatpush1.msra.mxu0 %v4248
    %4940 = vmatprep.subr.mxu0 %v4256
    %4941 = vmatpush1.msra.mxu0 %v4255
    %4942 = vmatprep.subr.mxu0 %v4263
    %4943 = vmatpush1.msra.mxu0 %v4262
    %4944 = vmatprep.subr.mxu0 %v4270
    %4945 = vmatpush1.msra.mxu0 %v4269
    %4946 = vmatprep.subr.mxu0 %v4277
    %4947 = vmatpush1.msra.mxu0 %v4276
    %4948 = vmatprep.subr.mxu0 %v4284
    %4949 = vmatpush1.msra.mxu0 %v4283
    %4950 = vmatprep.subr.mxu0 %v4291
    %4951 = vmatpush1.msra.mxu0 %v4290
    %4952 = vmatprep.subr.mxu0 %v4298
    %4953 = vmatpush1.msra.mxu0 %v4297
    %4954 = vmatprep.subr.mxu0 %v4305
    %4955 = vmatpush1.msra.mxu0 %v4304
    %4956 = vmatprep.subr.mxu0 %v4312
    %4957 = vmatpush1.msra.mxu0 %v4311
    %4958 = vmatprep.subr.mxu0 %v4319
    %4959 = vmatpush1.msra.mxu0 %v4318
    %4960 = vmatprep.subr.mxu0 %v4326
    %4961 = vmatpush1.msra.mxu0 %v4325
    %4962 = vmatprep.subr.mxu0 %v4333
    %4963 = vmatpush1.msra.mxu0 %v4332
    %4964 = vmatprep.subr.mxu0 %v4340
    %4965 = vmatpush1.msra.mxu0 %v4339
    %4966 = vmatprep.subr.mxu0 %v4347
    %4967 = vmatpush1.msra.mxu0 %v4346
    %4968 = vmatprep.subr.mxu0 %v4354
    %4969 = vmatpush1.msra.mxu0 %v4353
    %4970 = vmatprep.subr.mxu0 %v4361
    %4971 = vmatpush1.msra.mxu0 %v4360
    %4972 = vmatprep.mubr.f32.mxu0 %v3880
    %4973 = vmatmul.mubr.f32.gmra.mrb[0].mxu0 %v3879
    %v4974 = vpop.f32.mrb[0].mxu0
    %v4975 = vadd.f32 %v4608, %v4974
    %v4976 = vpop.f32.mrb[0].mxu0
    %v4977 = vadd.f32 %v4612, %v4976
    %4978 = vdwg.mxu0
    %4979 = vmatprep.subr.mxu0 %v4368
    %4980 = vmatpush1.msra.mxu0 %v4367
    %4981 = vmatprep.subr.mxu0 %v4375
    %4982 = vmatpush1.msra.mxu0 %v4374
    %4983 = vmatprep.subr.mxu0 %v4382
    %4984 = vmatpush1.msra.mxu0 %v4381
    %4985 = vmatprep.subr.mxu0 %v4389
    %4986 = vmatpush1.msra.mxu0 %v4388
    %4987 = vmatprep.subr.mxu0 %v4396
    %4988 = vmatpush1.msra.mxu0 %v4395
    %4989 = vmatprep.subr.mxu0 %v4403
    %4990 = vmatpush1.msra.mxu0 %v4402
    %4991 = vmatprep.subr.mxu0 %v4410
    %4992 = vmatpush1.msra.mxu0 %v4409
    %4993 = vmatprep.subr.mxu0 %v4417
    %4994 = vmatpush1.msra.mxu0 %v4416
    %4995 = vmatprep.subr.mxu0 %v4424
    %4996 = vmatpush1.msra.mxu0 %v4423
    %4997 = vmatprep.subr.mxu0 %v4431
    %4998 = vmatpush1.msra.mxu0 %v4430
    %4999 = vmatprep.subr.mxu0 %v4438
    %5000 = vmatpush1.msra.mxu0 %v4437
    %5001 = vmatprep.subr.mxu0 %v4445
    %5002 = vmatpush1.msra.mxu0 %v4444
    %5003 = vmatprep.subr.mxu0 %v4452
    %5004 = vmatpush1.msra.mxu0 %v4451
    %5005 = vmatprep.subr.mxu0 %v4459
    %5006 = vmatpush1.msra.mxu0 %v4458
    %5007 = vmatprep.subr.mxu0 %v4466
    %5008 = vmatpush1.msra.mxu0 %v4465
    %5009 = vmatprep.subr.mxu0 %v4473
    %5010 = vmatpush1.msra.mxu0 %v4472
    %5011 = vmatprep.subr.mxu0 %v4480
    %5012 = vmatpush1.msra.mxu0 %v4479
    %5013 = vmatprep.subr.mxu0 %v4487
    %5014 = vmatpush1.msra.mxu0 %v4486
    %5015 = vmatprep.subr.mxu0 %v4494
    %5016 = vmatpush1.msra.mxu0 %v4493
    %5017 = vmatprep.subr.mxu0 %v4501
    %5018 = vmatpush1.msra.mxu0 %v4500
    %5019 = vmatprep.subr.mxu0 %v4508
    %5020 = vmatpush1.msra.mxu0 %v4507
    %5021 = vmatprep.subr.mxu0 %v4515
    %5022 = vmatpush1.msra.mxu0 %v4514
    %5023 = vmatprep.subr.mxu0 %v4522
    %5024 = vmatpush1.msra.mxu0 %v4521
    %5025 = vmatprep.subr.mxu0 %v4529
    %5026 = vmatpush1.msra.mxu0 %v4528
    %5027 = vmatprep.subr.mxu0 %v4536
    %5028 = vmatpush1.msra.mxu0 %v4535
    %5029 = vmatprep.subr.mxu0 %v4543
    %5030 = vmatpush1.msra.mxu0 %v4542
    %5031 = vmatprep.subr.mxu0 %v4550
    %5032 = vmatpush1.msra.mxu0 %v4549
    %5033 = vmatprep.subr.mxu0 %v4557
    %5034 = vmatpush1.msra.mxu0 %v4556
    %5035 = vmatprep.subr.mxu0 %v4564
    %5036 = vmatpush1.msra.mxu0 %v4563
    %5037 = vmatprep.subr.mxu0 %v4571
    %5038 = vmatpush1.msra.mxu0 %v4570
    %5039 = vmatprep.subr.mxu0 %v4578
    %5040 = vmatpush1.msra.mxu0 %v4577
    %5041 = vmatprep.subr.mxu0 %v4585
    %5042 = vmatpush1.msra.mxu0 %v4584
    %5043 = vmatprep.mubr.f32.mxu0 %v3882
    %5044 = vmatmul.mubr.f32.gmra.mrb[0].mxu0 %v3881
    %v5045 = vpop.f32.mrb[0].mxu0
    %v5046 = vadd.f32 %v4975, %v5045
    %v5047 = vpop.f32.mrb[0].mxu0
    %v5048 = vadd.f32 %v4977, %v5047
    %5049 = vdwg.mxu0
    %5050 = vmatprep.subr.mxu0 0.0
    %5051 = vmatpush1.msra.mxu0 %v4145
    %5052 = vmatprep.subr.mxu0 0.0
    %5053 = vmatpush1.msra.mxu0 %v4152
    %5054 = vmatprep.subr.mxu0 0.0
    %5055 = vmatpush1.msra.mxu0 %v4159
    %5056 = vmatprep.subr.mxu0 0.0
    %5057 = vmatpush1.msra.mxu0 %v4166
    %5058 = vmatprep.subr.mxu0 0.0
    %5059 = vmatpush1.msra.mxu0 %v4173
    %5060 = vmatprep.subr.mxu0 0.0
    %5061 = vmatpush1.msra.mxu0 %v4180
    %5062 = vmatprep.subr.mxu0 0.0
    %5063 = vmatpush1.msra.mxu0 %v4187
    %5064 = vmatprep.subr.mxu0 0.0
    %5065 = vmatpush1.msra.mxu0 %v4194
    %5066 = vmatprep.subr.mxu0 0.0
    %5067 = vmatpush1.msra.mxu0 %v4201
    %5068 = vmatprep.subr.mxu0 0.0
    %5069 = vmatpush1.msra.mxu0 %v4208
    %5070 = vmatprep.subr.mxu0 0.0
    %5071 = vmatpush1.msra.mxu0 %v4215
    %5072 = vmatprep.subr.mxu0 0.0
    %5073 = vmatpush1.msra.mxu0 %v4222
    %5074 = vmatprep.subr.mxu0 0.0
    %5075 = vmatpush1.msra.mxu0 %v4229
    %5076 = vmatprep.subr.mxu0 0.0
    %5077 = vmatpush1.msra.mxu0 %v4236
    %5078 = vmatprep.subr.mxu0 0.0
    %5079 = vmatpush1.msra.mxu0 %v4243
    %5080 = vmatprep.subr.mxu0 0.0
    %5081 = vmatpush1.msra.mxu0 %v4250
    %5082 = vmatprep.subr.mxu0 0.0
    %5083 = vmatpush1.msra.mxu0 %v4257
    %5084 = vmatprep.subr.mxu0 0.0
    %5085 = vmatpush1.msra.mxu0 %v4264
    %5086 = vmatprep.subr.mxu0 0.0
    %5087 = vmatpush1.msra.mxu0 %v4271
    %5088 = vmatprep.subr.mxu0 0.0
    %5089 = vmatpush1.msra.mxu0 %v4278
    %5090 = vmatprep.subr.mxu0 0.0
    %5091 = vmatpush1.msra.mxu0 %v4285
    %5092 = vmatprep.subr.mxu0 0.0
    %5093 = vmatpush1.msra.mxu0 %v4292
    %5094 = vmatprep.subr.mxu0 0.0
    %5095 = vmatpush1.msra.mxu0 %v4299
    %5096 = vmatprep.subr.mxu0 0.0
    %5097 = vmatpush1.msra.mxu0 %v4306
    %5098 = vmatprep.subr.mxu0 0.0
    %5099 = vmatpush1.msra.mxu0 %v4313
    %5100 = vmatprep.subr.mxu0 0.0
    %5101 = vmatpush1.msra.mxu0 %v4320
    %5102 = vmatprep.subr.mxu0 0.0
    %5103 = vmatpush1.msra.mxu0 %v4327
    %5104 = vmatprep.subr.mxu0 0.0
    %5105 = vmatpush1.msra.mxu0 %v4334
    %5106 = vmatprep.subr.mxu0 0.0
    %5107 = vmatpush1.msra.mxu0 %v4341
    %5108 = vmatprep.subr.mxu0 0.0
    %5109 = vmatpush1.msra.mxu0 %v4348
    %5110 = vmatprep.subr.mxu0 0.0
    %5111 = vmatpush1.msra.mxu0 %v4355
    %5112 = vmatprep.subr.mxu0 0.0
    %5113 = vmatpush1.msra.mxu0 %v4362
    %5114 = vmatprep.mubr.f32.mxu0 %v3880
    %5115 = vmatmul.mubr.f32.gmra.mrb[0].mxu0 %v3879
    %v5116 = vpop.f32.mrb[0].mxu0
    %v5117 = vadd.f32 %v4616, %v5116
    %v5118 = vpop.f32.mrb[0].mxu0
    %5119 = vdwg.mxu0
    %5120 = vmatprep.subr.mxu0 0.0
    %5121 = vmatpush1.msra.mxu0 %v4369
    %5122 = vmatprep.subr.mxu0 0.0
    %5123 = vmatpush1.msra.mxu0 %v4376
    %5124 = vmatprep.subr.mxu0 0.0
    %5125 = vmatpush1.msra.mxu0 %v4383
    %5126 = vmatprep.subr.mxu0 0.0
    %5127 = vmatpush1.msra.mxu0 %v4390
    %5128 = vmatprep.subr.mxu0 0.0
    %5129 = vmatpush1.msra.mxu0 %v4397
    %5130 = vmatprep.subr.mxu0 0.0
    %5131 = vmatpush1.msra.mxu0 %v4404
    %5132 = vmatprep.subr.mxu0 0.0
    %5133 = vmatpush1.msra.mxu0 %v4411
    %5134 = vmatprep.subr.mxu0 0.0
    %5135 = vmatpush1.msra.mxu0 %v4418
    %5136 = vmatprep.subr.mxu0 0.0
    %5137 = vmatpush1.msra.mxu0 %v4425
    %5138 = vmatprep.subr.mxu0 0.0
    %5139 = vmatpush1.msra.mxu0 %v4432
    %5140 = vmatprep.subr.mxu0 0.0
    %5141 = vmatpush1.msra.mxu0 %v4439
    %5142 = vmatprep.subr.mxu0 0.0
    %5143 = vmatpush1.msra.mxu0 %v4446
    %5144 = vmatprep.subr.mxu0 0.0
    %5145 = vmatpush1.msra.mxu0 %v4453
    %5146 = vmatprep.subr.mxu0 0.0
    %5147 = vmatpush1.msra.mxu0 %v4460
    %5148 = vmatprep.subr.mxu0 0.0
    %5149 = vmatpush1.msra.mxu0 %v4467
    %5150 = vmatprep.subr.mxu0 0.0
    %5151 = vmatpush1.msra.mxu0 %v4474
    %5152 = vmatprep.subr.mxu0 0.0
    %5153 = vmatpush1.msra.mxu0 %v4481
    %5154 = vmatprep.subr.mxu0 0.0
    %5155 = vmatpush1.msra.mxu0 %v4488
    %5156 = vmatprep.subr.mxu0 0.0
    %5157 = vmatpush1.msra.mxu0 %v4495
    %5158 = vmatprep.subr.mxu0 0.0
    %5159 = vmatpush1.msra.mxu0 %v4502
    %5160 = vmatprep.subr.mxu0 0.0
    %5161 = vmatpush1.msra.mxu0 %v4509
    %5162 = vmatprep.subr.mxu0 0.0
    %5163 = vmatpush1.msra.mxu0 %v4516
    %5164 = vmatprep.subr.mxu0 0.0
    %5165 = vmatpush1.msra.mxu0 %v4523
    %5166 = vmatprep.subr.mxu0 0.0
    %5167 = vmatpush1.msra.mxu0 %v4530
    %5168 = vmatprep.subr.mxu0 0.0
    %5169 = vmatpush1.msra.mxu0 %v4537
    %5170 = vmatprep.subr.mxu0 0.0
    %5171 = vmatpush1.msra.mxu0 %v4544
    %5172 = vmatprep.subr.mxu0 0.0
    %5173 = vmatpush1.msra.mxu0 %v4551
    %5174 = vmatprep.subr.mxu0 0.0
    %5175 = vmatpush1.msra.mxu0 %v4558
    %5176 = vmatprep.subr.mxu0 0.0
    %5177 = vmatpush1.msra.mxu0 %v4565
    %5178 = vmatprep.subr.mxu0 0.0
    %5179 = vmatpush1.msra.mxu0 %v4572
    %5180 = vmatprep.subr.mxu0 0.0
    %5181 = vmatpush1.msra.mxu0 %v4579
    %5182 = vmatprep.subr.mxu0 0.0
    %5183 = vmatpush1.msra.mxu0 %v4586
    %5184 = vmatprep.mubr.f32.mxu0 %v3882
    %5185 = vmatmul.mubr.f32.gmra.mrb[0].mxu0 %v3881
    %v5186 = vpop.f32.mrb[0].mxu0
    %v5187 = vadd.f32 %v5117, %v5186
    %v5188 = vpop.f32.mrb[0].mxu0
    %5189 = vdwg.mxu0
    %v5190 = vxor.u32 %v4762, 2147483648
    %v5191 = vxor.u32 %v4764, 2147483648
    %v5192 = vxor.u32 %v4904, 2147483648
    %v5193 = vxor.u32 %v4906, 2147483648
    %v5194 = vxor.u32 %v5046, 2147483648
    %v5195 = vxor.u32 %v5048, 2147483648
    %v5196 = vxor.u32 %v5187, 2147483648
    %v5197 = vmul.f32 %v5190, 1.442695
    %v5198 = vpow.pop %v5197
    %v5199 = vmul.f32 %v5191, 1.442695
    %v5200 = vpow.pop %v5199
    %v5201 = vmul.f32 %v5192, 1.442695
    %v5202 = vpow.pop %v5201
    %v5203 = vmul.f32 %v5193, 1.442695
    %v5204 = vpow.pop %v5203
    %v5205 = vmul.f32 %v5194, 1.442695
    %v5206 = vpow.pop %v5205
    %v5207 = vmul.f32 %v5195, 1.442695
    %v5208 = vpow.pop %v5207
    %v5209 = vmul.f32 %v5196, 1.442695
    %v5210 = vpow.pop %v5209
    %v5211 = vadd.f32 %v5198, 1.0
    %v5212 = vadd.f32 %v5200, 1.0
    %v5213 = vadd.f32 %v5202, 1.0
    %v5214 = vadd.f32 %v5204, 1.0
    %v5215 = vadd.f32 %v5206, 1.0
    %v5216 = vadd.f32 %v5208, 1.0
    %v5217 = vadd.f32 %v5210, 1.0
    %v5218 = vrcp.pop %v5211
    %v5219 = vmul.f32 1.0, %v5218
    %v5220 = vrcp.pop %v5212
    %v5221 = vmul.f32 1.0, %v5220
    %v5222 = vrcp.pop %v5213
    %v5223 = vmul.f32 1.0, %v5222
    %v5224 = vrcp.pop %v5214
    %v5225 = vmul.f32 1.0, %v5224
    %v5226 = vrcp.pop %v5215
    %v5227 = vmul.f32 1.0, %v5226
    %v5228 = vrcp.pop %v5216
    %v5229 = vmul.f32 1.0, %v5228
    %v5230 = vrcp.pop %v5217
    %v5231 = vmul.f32 1.0, %v5230
    %5232 = vst [vmem:[#allocation13] sm:$0xff] %v5219
    %5233 = vst [vmem:[#allocation13 + $0x8] sm:$0xff] %v5221
    %5234 = vst [vmem:[#allocation13 + $0x10] sm:$0xff] %v5223
    %5235 = vst [vmem:[#allocation13 + $0x18] sm:$0xff] %v5225
    %5236 = vst [vmem:[#allocation13 + $0x20] sm:$0xff] %v5227
    %5237 = vst [vmem:[#allocation13 + $0x28] sm:$0xff] %v5229
    %5238 = vst [vmem:[#allocation13 + $0x30] sm:$0xff] %v5231
    %5239 = vst [vmem:[#allocation14] sm:$0xff] %v2661
    %5240 = vst [vmem:[#allocation14 + $0x8] sm:$0xff] %v2663
    %5241 = vst [vmem:[#allocation16] sm:$0xff] %v2803
    %5242 = vst [vmem:[#allocation16 + $0x8] sm:$0xff] %v2805
    // Predicated region
    $region82: #{vae_forward.1} parent=1 // pred_check
      _
    $region83: #{vae_forward.1} parent=1 // pred_check_branch
      %5244 = sbr.rel (0) target = $region85
    $region84: #{vae_forward.1} parent=1 // pred_region
      %s5246 = ssub.s32 896, 896
      %5247 = vsyncadd [#allocation4], %s5246
      %s5249 = sshll.u32 [#allocation13], 4
      %s5250 = int_to_ptr.vmem [resolvable:$true] %s5249
      %5252 = dma.vmem_to_hbm [thread:$0]  %s5250, 896, %s14, [#allocation4]
    $region85: #{vae_forward.1} parent=1 // pred_fallthru
      _
    // Predicated region
    $region86: #{vae_forward.1} parent=1 // pred_check
      _
    $region87: #{vae_forward.1} parent=1 // pred_check_branch
      %5254 = sbr.rel (0) target = $region89
    $region88: #{vae_forward.1} parent=1 // pred_region
      %s5256 = ssub.s32 256, 256
      %5257 = vsyncadd [#allocation15], %s5256
      %s5259 = sshll.u32 [#allocation14], 4
      %s5260 = int_to_ptr.vmem [resolvable:$true] %s5259
      %5262 = dma.vmem_to_hbm [thread:$0]  %s5260, 256, %s15, [#allocation15]
    $region89: #{vae_forward.1} parent=1 // pred_fallthru
      _
    // Predicated region
    $region90: #{vae_forward.1} parent=1 // pred_check
      _
    $region91: #{vae_forward.1} parent=1 // pred_check_branch
      %5264 = sbr.rel (0) target = $region93
    $region92: #{vae_forward.1} parent=1 // pred_region
      %s5266 = ssub.s32 256, 256
      %5267 = vsyncadd [#allocation15], %s5266
      %s5269 = sshll.u32 [#allocation16], 4
      %s5270 = int_to_ptr.vmem [resolvable:$true] %s5269
      %5272 = dma.vmem_to_hbm [thread:$0]  %s5270, 256, %s16, [#allocation15]
    $region93: #{vae_forward.1} parent=1 // pred_fallthru
      _
    // Predicated region
    $region94: #{vae_forward.1} parent=1 // pred_check
      _
    $region95: #{vae_forward.1} parent=1 // pred_check_branch
      %5274 = sbr.rel (0) target = $region97
    $region96: #{vae_forward.1} parent=1 // pred_region
      %5275 = dma.done [#allocation4], 896
    $region97: #{vae_forward.1} parent=1 // pred_fallthru
      _
    // Predicated region
    $region98: #{vae_forward.1} parent=1 // pred_check
      _
    $region99: #{vae_forward.1} parent=1 // pred_check_branch
      %5277 = sbr.rel (0) target = $region101
    $region100: #{vae_forward.1} parent=1 // pred_region
      %5278 = dma.done [#allocation15], 256
    $region101: #{vae_forward.1} parent=1 // pred_fallthru
      _
    // Predicated region
    $region102: #{vae_forward.1} parent=1 // pred_check
      _
    $region103: #{vae_forward.1} parent=1 // pred_check_branch
      %5280 = sbr.rel (0) target = $region105
    $region104: #{vae_forward.1} parent=1 // pred_region
      %5281 = dma.done [#allocation15], 256
    $region105: #{vae_forward.1} parent=1 // pred_fallthru
      _
    %5282 = vsyncpa [#allocation3], 1
    %5283 = vsyncpa [#allocation6], 1
    %5284 = vsyncpa [#allocation9], 1
    %5285 = vsyncpa [#allocation12], 1
    %5286 = vsyncpa [#allocation4], 1
    %5287 = vsyncpa [#allocation15], 1

</llo_original>
